<compile_context>
chip_gen: v5e
topology: v5e:2x2
jax: 0.10.0
libtpu: 0.0.40
codegen_flags: <defaults>
</compile_context>

<pallas_src>
import jax
import jax.numpy as jnp
import numpy as np
from jax.experimental import pallas as pl
from jax.experimental.pallas import tpu as pltpu

MODES1 = 8
MODES2 = 8
CHUNK = 8  # sublane rows processed per inner-loop iteration (1 f32 vreg row-group)


# --------------------------------------------------------------------------- #
# Kernel
# --------------------------------------------------------------------------- #
def _spectral_cmul_kernel(xr_ref, xi_ref, wr_ref, wi_ref, or_ref, oi_ref):
    """Complex channel mixing on one (t_tile, S2) activation tile.

    xr/xi : (Cin,  TT, S2)  float32   real / imag planes (both corners on lanes)
    wr/wi : (Cin, Tco, S2)  float32   weight block (VMEM-resident, single-buffered)
    or/oi : (Tco,  TT, S2)  float32

    out[o] = sum_i x[i] * w[i, o]   (complex, elementwise over (TT, S2))

    The TT axis is processed in CHUNK-row slices so accumulators and
    temporaries are small (CHUNK, S2) values that stay in vregs (no spills).
    """
    ci = xr_ref.shape[0]
    tco = or_ref.shape[0]
    tt = xr_ref.shape[1]
    n_chunks = tt // CHUNK

    @pl.loop(0, n_chunks)
    def _chunk(c):
        r0 = pl.multiple_of(c * CHUNK, CHUNK)
        for o in range(tco):
            # i = 0 initializes the accumulators directly (no zeros + add).
            xr0 = xr_ref[0, pl.ds(r0, CHUNK), :]
            xi0 = xi_ref[0, pl.ds(r0, CHUNK), :]
            wr0 = wr_ref[0, pl.ds(o, 1), :]
            wi0 = wi_ref[0, pl.ds(o, 1), :]
            acc_r = xr0 * wr0 - xi0 * wi0
            acc_i = xr0 * wi0 + xi0 * wr0
            for i in range(1, ci):
                xr_i = xr_ref[i, pl.ds(r0, CHUNK), :]
                xi_i = xi_ref[i, pl.ds(r0, CHUNK), :]
                wr_io = wr_ref[i, pl.ds(o, 1), :]
                wi_io = wi_ref[i, pl.ds(o, 1), :]
                # Direct 4-multiply complex MAC (VPU: mul and add cost the same).
                acc_r = (acc_r + xr_i * wr_io) - xi_i * wi_io
                acc_i = (acc_i + xr_i * wi_io) + xi_i * wr_io
            or_ref[o, pl.ds(r0, CHUNK), :] = acc_r
            oi_ref[o, pl.ds(r0, CHUNK), :] = acc_i


# --------------------------------------------------------------------------- #
# Tiling / VMEM planning
# --------------------------------------------------------------------------- #
def _round_up(x, m):
    return ((x + m - 1) // m) * m


def _vmem_budget_bytes():
    """Half of physical per-core VMEM (generation-aware), with a safe fallback."""
    cap = 64 * 1024 * 1024  # conservative fallback (v7x per-TC physical VMEM)
    try:
        info = pltpu.get_tpu_info()
        cap = int(getattr(info, "vmem_capacity_bytes", cap))
    except Exception:
        pass
    return max(cap // 2, 16 * 1024 * 1024)


def _plan_tiles(ci, co, t, s2, budget, t_tile=None, co_tile=None):
    """Pick (co_tile, t_tile) so single-buffered weights + double-buffered
    activation/output tiles fit the VMEM budget."""
    # --- Cout block: (tco, S2) weight block must obey the (8,128) rule. -------
    if co_tile is None:
        allowed = [d for d in range(co, 0, -1)
                   if co % d == 0 and (d == co or d % 8 == 0)]
        co_tile = allowed[-1]
        for d in allowed:  # descending: prefer the fewest Cout grid steps
            if 2 * ci * d * s2 * 4 <= budget // 4:
                co_tile = d
                break
    assert co % co_tile == 0 and (co_tile == co or co_tile % 8 == 0)

    w_bytes = 2 * ci * co_tile * s2 * 4  # r+i planes, single-buffered (Buffered(1))

    # --- t tile: x and out are double-buffered f32 r/i planes. ---------------
    if t_tile is None:
        per_row = 2 * 2 * (ci + co_tile) * s2 * 4
        t_tile = (budget - w_bytes) // max(per_row, 1)
        t_tile = min(1024, t_tile)
    t_tile = max(CHUNK, (int(t_tile) // CHUNK) * CHUNK)
    t_tile = min(t_tile, _round_up(t, CHUNK))
    return co_tile, t_tile, w_bytes


# --------------------------------------------------------------------------- #
# Pallas-backed fused complex einsum over both spectral corners
# --------------------------------------------------------------------------- #
def _fourier_channel_mix(x_low, x_high, w1, w2, t_tile=None, co_tile=None):
    """Fused complex einsum 'bitvxy,iovxy->botvxy' on both corners.

    x_low / x_high : complex64 (b, ci, t, v, m1, m2)
    w1 / w2        : complex64 (ci, co, v, m1, m2)
    returns (out_low, out_high), each complex64 (b, co, t, v, m1, m2)
    """
    b, ci, t, v, m1, m2 = x_low.shape
    co = w1.shape[1]
    S2 = 2 * v * m1 * m2          # both corners on the lane axis (128*v for modes=8)

    # ---- pack x in NATURAL (b, ci, t, S2) order (no leading-dim transposes) --
    xc = jnp.stack([x_low, x_high], axis=3)            # (b, ci, t, 2, v, m1, m2)
    xc = xc.reshape(b, ci, t, S2)
    xr = jnp.real(xc).astype(jnp.float32)
    xi = jnp.imag(xc).astype(jnp.float32)

    # ---- pack w: (ci, co, v, m1, m2) x2 -> (ci, co, S2) -----------------------
    wc = jnp.stack([w1, w2], axis=2).reshape(ci, co, S2)
    wr = jnp.real(wc).astype(jnp.float32)
    wi = jnp.imag(wc).astype(jnp.float32)

    # ---- generation-aware tiling plan -----------------------------------------
    budget = _vmem_budget_bytes()
    co_tile, t_tile, _ = _plan_tiles(ci, co, t, S2, budget,
                                     t_tile=t_tile, co_tile=co_tile)

    t_pad = _round_up(max(t, t_tile), t_tile)
    if t_pad != t:
        pad = ((0, 0), (0, 0), (0, t_pad - t), (0, 0))
        xr = jnp.pad(xr, pad)
        xi = jnp.pad(xi, pad)

    grid = (co // co_tile, b, t_pad // t_tile)

    x_spec = pl.BlockSpec((pl.Squeezed(), ci, t_tile, S2),
                          lambda oc, bb, tb: (bb, 0, tb, 0))
    w_spec = pl.BlockSpec((ci, co_tile, S2),
                          lambda oc, bb, tb: (0, oc, 0),
                          pipeline_mode=pl.Buffered(1))   # block constant per oc
    o_spec = pl.BlockSpec((pl.Squeezed(), co_tile, t_tile, S2),
                          lambda oc, bb, tb: (bb, oc, tb, 0))

    or_, oi_ = pl.pallas_call(
        _spectral_cmul_kernel,
        out_shape=(
            jax.ShapeDtypeStruct((b, co, t_pad, S2), jnp.float32),
            jax.ShapeDtypeStruct((b, co, t_pad, S2), jnp.float32),
        ),
        grid=grid,
        in_specs=[x_spec, x_spec, w_spec, w_spec],
        out_specs=(o_spec, o_spec),
        compiler_params=pltpu.CompilerParams(
            dimension_semantics=("parallel", "parallel", "parallel"),
            vmem_limit_bytes=int(budget),
        ),
    )(xr, xi, wr, wi)

    # ---- unpack: (b, co, t, S2) -> per-corner (b, co, t, v, m1, m2) complex ---
    out_c = jax.lax.complex(or_[:, :, :t, :], oi_[:, :, :t, :])
    out_c = out_c.reshape(b, co, t, 2, v, m1, m2)
    return out_c[:, :, :, 0], out_c[:, :, :, 1]


# --------------------------------------------------------------------------- #
# Forward pass
# --------------------------------------------------------------------------- #
def spectral_conv_forward(x, w1, w2, modes1=MODES1, modes2=MODES2,
                          t_tile=None, co_tile=None):
    """Forward pass matching SpectralConv.forward (PyTorch)."""
    b, ci, t, v, h, w = x.shape
    co = w1.shape[1]
    w_half = w // 2 + 1
    # Same assumption as the PyTorch module; overlapping corners would silently
    # overwrite each other, so make it explicit.
    assert h >= 2 * modes1 and w_half >= modes2, "spatial dims too small for modes"

    # TODO(synk): rfft2/irfft2 have no Pallas equivalent; done with jnp.fft.
    x_ft = jnp.fft.rfft2(x.astype(jnp.float32), axes=(-2, -1))  # complex64

    out_low, out_high = _fourier_channel_mix(
        x_ft[..., :modes1, :modes2],
        x_ft[..., h - modes1:, :modes2],
        w1, w2, t_tile=t_tile, co_tile=co_tile)

    # Assemble the output spectrum in a single concat+pad (no zeros + scatters).
    mid = jnp.zeros((b, co, t, v, h - 2 * modes1, modes2), jnp.complex64)
    stacked = jnp.concatenate([out_low, mid, out_high], axis=-2)   # (b,co,t,v,h,modes2)
    out_ft = jnp.pad(stacked, [(0, 0)] * 5 + [(0, w_half - modes2)])

    return jnp.fft.irfft2(out_ft, s=(h, w), axes=(-2, -1)).astype(jnp.float32)


def _reference_forward(x, w1, w2, modes1=MODES1, modes2=MODES2):
    """Pure-JAX reference (einsum) for validation."""
    b, ci, t, v, h, w = x.shape
    co = w1.shape[1]
    x_ft = jnp.fft.rfft2(x.astype(jnp.float32), axes=(-2, -1))
    out_ft = jnp.zeros((b, co, t, v, h, w // 2 + 1), jnp.complex64)
    low = jnp.einsum('bitvxy,iovxy->botvxy', x_ft[..., :modes1, :modes2], w1)
    high = jnp.einsum('bitvxy,iovxy->botvxy', x_ft[..., h - modes1:, :modes2], w2)
    out_ft = out_ft.at[..., :modes1, :modes2].set(low)
    out_ft = out_ft.at[..., h - modes1:, :modes2].set(high)
    return jnp.fft.irfft2(out_ft, s=(h, w), axes=(-2, -1)).astype(jnp.float32)


if __name__ == "__main__":
    key = jax.random.PRNGKey(0)
    k1, k2, k3, k4, kx, ky = jax.random.split(key, 6)

    jit_fwd = jax.jit(spectral_conv_forward,
                      static_argnames=("modes1", "modes2", "t_tile", "co_tile"))

    # ---- test 1: small shapes consistent with (b, in_ch, t, vars, h, w) ------
    b, ci, co, t, v, h, w = 2, 4, 4, 3, 2, 16, 16
    scale = 1.0 / (ci * co)
    wshape = (ci, co, v, MODES1, MODES2)
    w1 = (scale * (jax.random.uniform(k1, wshape)
                   + 1j * jax.random.uniform(k2, wshape))).astype(jnp.complex64)
    w2 = (scale * (jax.random.uniform(k3, wshape)
                   + 1j * jax.random.uniform(k4, wshape))).astype(jnp.complex64)
    x = jax.random.normal(kx, (b, ci, t, v, h, w), jnp.float32)

    out = jax.block_until_ready(jit_fwd(x, w1, w2))
    ref = _reference_forward(x, w1, w2)
    np.testing.assert_allclose(np.asarray(out), np.asarray(ref), rtol=1e-3, atol=1e-3)
    assert out.shape == (b, co, t, v, h, w) and out.dtype == jnp.float32

    # ---- test 2: multi-step grid (forced small t tile exercises pipelining) ---
    b2, t2 = 2, 16                     # grid = (1, 2, 2) with t_tile=8
    x2 = jax.random.normal(ky, (b2, ci, t2, v, h, w), jnp.float32)
    out2 = jax.block_until_ready(jit_fwd(x2, w1, w2, t_tile=8))
    ref2 = _reference_forward(x2, w1, w2)
    np.testing.assert_allclose(np.asarray(out2), np.asarray(ref2), rtol=1e-3, atol=1e-3)

    print("KERNEL_OK")
</pallas_src>

<mosaic_0001>
module attributes {stable_mosaic.version = 11 : i64} {
  func.func @_spectral_cmul_kernel(%arg0: i32, %arg1: i32, %arg2: i32, %arg3: memref<1x4x8x256xf32, #tpu.memory_space<vmem>>, %arg4: memref<1x4x8x256xf32, #tpu.memory_space<vmem>>, %arg5: memref<4x4x256xf32, #tpu.memory_space<vmem>>, %arg6: memref<4x4x256xf32, #tpu.memory_space<vmem>>, %arg7: memref<1x4x8x256xf32, #tpu.memory_space<vmem>>, %arg8: memref<1x4x8x256xf32, #tpu.memory_space<vmem>>) attributes {dimension_semantics = [#tpu.dimension_semantics<parallel>, #tpu.dimension_semantics<parallel>, #tpu.dimension_semantics<parallel>], iteration_bounds = array<i64: 1, 2, 1>, scalar_prefetch = 0 : i64, scratch_operands = 0 : i64, tpu.core_type = #tpu.core_type<tc>, window_params = [{transform_indices = @transform_0, window_bounds = array<i64: 1, 4, 8, 256>}, {transform_indices = @transform_1, window_bounds = array<i64: 1, 4, 8, 256>}, {pipeline_mode = #tpu.pipeline_mode<synchronous>, transform_indices = @transform_2, window_bounds = array<i64: 4, 4, 256>}, {pipeline_mode = #tpu.pipeline_mode<synchronous>, transform_indices = @transform_3, window_bounds = array<i64: 4, 4, 256>}, {transform_indices = @transform_4, window_bounds = array<i64: 1, 4, 8, 256>}, {transform_indices = @transform_5, window_bounds = array<i64: 1, 4, 8, 256>}]} {
    %c0_i32 = arith.constant 0 : i32
    %c1_i32 = arith.constant 1 : i32
    %0 = arith.muli %c0_i32, %c1_i32 : i32
    %c0_i32_0 = arith.constant 0 : i32
    %1 = arith.addi %c0_i32_0, %0 : i32
    %c8_i32 = arith.constant 8 : i32
    %2 = arith.muli %1, %c8_i32 : i32
    %3 = tpu.assume_multiple %2, 8 : i32
    %c0 = arith.constant 0 : index
    %c0_1 = arith.constant 0 : index
    %4 = arith.index_cast %3 : i32 to index
    %c0_2 = arith.constant 0 : index
    %5 = vector.load %arg3[%c0, %c0_1, %4, %c0_2] : memref<1x4x8x256xf32, #tpu.memory_space<vmem>>, vector<1x1x8x256xf32>
    %6 = vector.shape_cast %5 : vector<1x1x8x256xf32> to vector<8x256xf32>
    %c0_3 = arith.constant 0 : index
    %c0_4 = arith.constant 0 : index
    %7 = arith.index_cast %3 : i32 to index
    %c0_5 = arith.constant 0 : index
    %8 = vector.load %arg4[%c0_3, %c0_4, %7, %c0_5] : memref<1x4x8x256xf32, #tpu.memory_space<vmem>>, vector<1x1x8x256xf32>
    %9 = vector.shape_cast %8 : vector<1x1x8x256xf32> to vector<8x256xf32>
    %c0_6 = arith.constant 0 : index
    %c0_7 = arith.constant 0 : index
    %c0_8 = arith.constant 0 : index
    %10 = vector.load %arg5[%c0_6, %c0_7, %c0_8] : memref<4x4x256xf32, #tpu.memory_space<vmem>>, vector<1x1x256xf32>
    %11 = vector.shape_cast %10 : vector<1x1x256xf32> to vector<1x256xf32>
    %c0_9 = arith.constant 0 : index
    %c0_10 = arith.constant 0 : index
    %c0_11 = arith.constant 0 : index
    %12 = vector.load %arg6[%c0_9, %c0_10, %c0_11] : memref<4x4x256xf32, #tpu.memory_space<vmem>>, vector<1x1x256xf32>
    %13 = vector.shape_cast %12 : vector<1x1x256xf32> to vector<1x256xf32>
    %14 = vector.broadcast %11 : vector<1x256xf32> to vector<8x256xf32>
    %15 = arith.mulf %6, %14 : vector<8x256xf32>
    %16 = vector.broadcast %13 : vector<1x256xf32> to vector<8x256xf32>
    %17 = arith.mulf %9, %16 : vector<8x256xf32>
    %18 = arith.subf %15, %17 : vector<8x256xf32>
    %19 = vector.broadcast %13 : vector<1x256xf32> to vector<8x256xf32>
    %20 = arith.mulf %6, %19 : vector<8x256xf32>
    %21 = vector.broadcast %11 : vector<1x256xf32> to vector<8x256xf32>
    %22 = arith.mulf %9, %21 : vector<8x256xf32>
    %23 = arith.addf %20, %22 : vector<8x256xf32>
    %c0_12 = arith.constant 0 : index
    %c1 = arith.constant 1 : index
    %24 = arith.index_cast %3 : i32 to index
    %c0_13 = arith.constant 0 : index
    %25 = vector.load %arg3[%c0_12, %c1, %24, %c0_13] : memref<1x4x8x256xf32, #tpu.memory_space<vmem>>, vector<1x1x8x256xf32>
    %26 = vector.shape_cast %25 : vector<1x1x8x256xf32> to vector<8x256xf32>
    %c0_14 = arith.constant 0 : index
    %c1_15 = arith.constant 1 : index
    %27 = arith.index_cast %3 : i32 to index
    %c0_16 = arith.constant 0 : index
    %28 = vector.load %arg4[%c0_14, %c1_15, %27, %c0_16] : memref<1x4x8x256xf32, #tpu.memory_space<vmem>>, vector<1x1x8x256xf32>
    %29 = vector.shape_cast %28 : vector<1x1x8x256xf32> to vector<8x256xf32>
    %c1_17 = arith.constant 1 : index
    %c0_18 = arith.constant 0 : index
    %c0_19 = arith.constant 0 : index
    %30 = vector.load %arg5[%c1_17, %c0_18, %c0_19] : memref<4x4x256xf32, #tpu.memory_space<vmem>>, vector<1x1x256xf32>
    %31 = vector.shape_cast %30 : vector<1x1x256xf32> to vector<1x256xf32>
    %c1_20 = arith.constant 1 : index
    %c0_21 = arith.constant 0 : index
    %c0_22 = arith.constant 0 : index
    %32 = vector.load %arg6[%c1_20, %c0_21, %c0_22] : memref<4x4x256xf32, #tpu.memory_space<vmem>>, vector<1x1x256xf32>
    %33 = vector.shape_cast %32 : vector<1x1x256xf32> to vector<1x256xf32>
    %34 = vector.broadcast %31 : vector<1x256xf32> to vector<8x256xf32>
    %35 = arith.mulf %26, %34 : vector<8x256xf32>
    %36 = arith.addf %18, %35 : vector<8x256xf32>
    %37 = vector.broadcast %33 : vector<1x256xf32> to vector<8x256xf32>
    %38 = arith.mulf %29, %37 : vector<8x256xf32>
    %39 = arith.subf %36, %38 : vector<8x256xf32>
    %40 = vector.broadcast %33 : vector<1x256xf32> to vector<8x256xf32>
    %41 = arith.mulf %26, %40 : vector<8x256xf32>
    %42 = arith.addf %23, %41 : vector<8x256xf32>
    %43 = vector.broadcast %31 : vector<1x256xf32> to vector<8x256xf32>
    %44 = arith.mulf %29, %43 : vector<8x256xf32>
    %45 = arith.addf %42, %44 : vector<8x256xf32>
    %c0_23 = arith.constant 0 : index
    %c2 = arith.constant 2 : index
    %46 = arith.index_cast %3 : i32 to index
    %c0_24 = arith.constant 0 : index
    %47 = vector.load %arg3[%c0_23, %c2, %46, %c0_24] : memref<1x4x8x256xf32, #tpu.memory_space<vmem>>, vector<1x1x8x256xf32>
    %48 = vector.shape_cast %47 : vector<1x1x8x256xf32> to vector<8x256xf32>
    %c0_25 = arith.constant 0 : index
    %c2_26 = arith.constant 2 : index
    %49 = arith.index_cast %3 : i32 to index
    %c0_27 = arith.constant 0 : index
    %50 = vector.load %arg4[%c0_25, %c2_26, %49, %c0_27] : memref<1x4x8x256xf32, #tpu.memory_space<vmem>>, vector<1x1x8x256xf32>
    %51 = vector.shape_cast %50 : vector<1x1x8x256xf32> to vector<8x256xf32>
    %c2_28 = arith.constant 2 : index
    %c0_29 = arith.constant 0 : index
    %c0_30 = arith.constant 0 : index
    %52 = vector.load %arg5[%c2_28, %c0_29, %c0_30] : memref<4x4x256xf32, #tpu.memory_space<vmem>>, vector<1x1x256xf32>
    %53 = vector.shape_cast %52 : vector<1x1x256xf32> to vector<1x256xf32>
    %c2_31 = arith.constant 2 : index
    %c0_32 = arith.constant 0 : index
    %c0_33 = arith.constant 0 : index
    %54 = vector.load %arg6[%c2_31, %c0_32, %c0_33] : memref<4x4x256xf32, #tpu.memory_space<vmem>>, vector<1x1x256xf32>
    %55 = vector.shape_cast %54 : vector<1x1x256xf32> to vector<1x256xf32>
    %56 = vector.broadcast %53 : vector<1x256xf32> to vector<8x256xf32>
    %57 = arith.mulf %48, %56 : vector<8x256xf32>
    %58 = arith.addf %39, %57 : vector<8x256xf32>
    %59 = vector.broadcast %55 : vector<1x256xf32> to vector<8x256xf32>
    %60 = arith.mulf %51, %59 : vector<8x256xf32>
    %61 = arith.subf %58, %60 : vector<8x256xf32>
    %62 = vector.broadcast %55 : vector<1x256xf32> to vector<8x256xf32>
    %63 = arith.mulf %48, %62 : vector<8x256xf32>
    %64 = arith.addf %45, %63 : vector<8x256xf32>
    %65 = vector.broadcast %53 : vector<1x256xf32> to vector<8x256xf32>
    %66 = arith.mulf %51, %65 : vector<8x256xf32>
    %67 = arith.addf %64, %66 : vector<8x256xf32>
    %c0_34 = arith.constant 0 : index
    %c3 = arith.constant 3 : index
    %68 = arith.index_cast %3 : i32 to index
    %c0_35 = arith.constant 0 : index
    %69 = vector.load %arg3[%c0_34, %c3, %68, %c0_35] : memref<1x4x8x256xf32, #tpu.memory_space<vmem>>, vector<1x1x8x256xf32>
    %70 = vector.shape_cast %69 : vector<1x1x8x256xf32> to vector<8x256xf32>
    %c0_36 = arith.constant 0 : index
    %c3_37 = arith.constant 3 : index
    %71 = arith.index_cast %3 : i32 to index
    %c0_38 = arith.constant 0 : index
    %72 = vector.load %arg4[%c0_36, %c3_37, %71, %c0_38] : memref<1x4x8x256xf32, #tpu.memory_space<vmem>>, vector<1x1x8x256xf32>
    %73 = vector.shape_cast %72 : vector<1x1x8x256xf32> to vector<8x256xf32>
    %c3_39 = arith.constant 3 : index
    %c0_40 = arith.constant 0 : index
    %c0_41 = arith.constant 0 : index
    %74 = vector.load %arg5[%c3_39, %c0_40, %c0_41] : memref<4x4x256xf32, #tpu.memory_space<vmem>>, vector<1x1x256xf32>
    %75 = vector.shape_cast %74 : vector<1x1x256xf32> to vector<1x256xf32>
    %c3_42 = arith.constant 3 : index
    %c0_43 = arith.constant 0 : index
    %c0_44 = arith.constant 0 : index
    %76 = vector.load %arg6[%c3_42, %c0_43, %c0_44] : memref<4x4x256xf32, #tpu.memory_space<vmem>>, vector<1x1x256xf32>
    %77 = vector.shape_cast %76 : vector<1x1x256xf32> to vector<1x256xf32>
    %78 = vector.broadcast %75 : vector<1x256xf32> to vector<8x256xf32>
    %79 = arith.mulf %70, %78 : vector<8x256xf32>
    %80 = arith.addf %61, %79 : vector<8x256xf32>
    %81 = vector.broadcast %77 : vector<1x256xf32> to vector<8x256xf32>
    %82 = arith.mulf %73, %81 : vector<8x256xf32>
    %83 = arith.subf %80, %82 : vector<8x256xf32>
    %84 = vector.broadcast %77 : vector<1x256xf32> to vector<8x256xf32>
    %85 = arith.mulf %70, %84 : vector<8x256xf32>
    %86 = arith.addf %67, %85 : vector<8x256xf32>
    %87 = vector.broadcast %75 : vector<1x256xf32> to vector<8x256xf32>
    %88 = arith.mulf %73, %87 : vector<8x256xf32>
    %89 = arith.addf %86, %88 : vector<8x256xf32>
    %c0_45 = arith.constant 0 : index
    %c0_46 = arith.constant 0 : index
    %90 = arith.index_cast %3 : i32 to index
    %c0_47 = arith.constant 0 : index
    %91 = vector.load %arg7[%c0_45, %c0_46, %90, %c0_47] : memref<1x4x8x256xf32, #tpu.memory_space<vmem>>, vector<1x1x8x256xf32>
    %92 = vector.shape_cast %91 : vector<1x1x8x256xf32> to vector<8x256xf32>
    %93 = vector.shape_cast %83 : vector<8x256xf32> to vector<1x1x8x256xf32>
    tpu.vector_store %arg7[%c0_45, %c0_46, %90, %c0_47], %93 {strides = array<i32>} : memref<1x4x8x256xf32, #tpu.memory_space<vmem>>, vector<1x1x8x256xf32>,
    %c0_48 = arith.constant 0 : index
    %c0_49 = arith.constant 0 : index
    %94 = arith.index_cast %3 : i32 to index
    %c0_50 = arith.constant 0 : index
    %95 = vector.load %arg8[%c0_48, %c0_49, %94, %c0_50] : memref<1x4x8x256xf32, #tpu.memory_space<vmem>>, vector<1x1x8x256xf32>
    %96 = vector.shape_cast %95 : vector<1x1x8x256xf32> to vector<8x256xf32>
    %97 = vector.shape_cast %89 : vector<8x256xf32> to vector<1x1x8x256xf32>
    tpu.vector_store %arg8[%c0_48, %c0_49, %94, %c0_50], %97 {strides = array<i32>} : memref<1x4x8x256xf32, #tpu.memory_space<vmem>>, vector<1x1x8x256xf32>,
    %c0_51 = arith.constant 0 : index
    %c0_52 = arith.constant 0 : index
    %98 = arith.index_cast %3 : i32 to index
    %c0_53 = arith.constant 0 : index
    %99 = vector.load %arg3[%c0_51, %c0_52, %98, %c0_53] : memref<1x4x8x256xf32, #tpu.memory_space<vmem>>, vector<1x1x8x256xf32>
    %100 = vector.shape_cast %99 : vector<1x1x8x256xf32> to vector<8x256xf32>
    %c0_54 = arith.constant 0 : index
    %c0_55 = arith.constant 0 : index
    %101 = arith.index_cast %3 : i32 to index
    %c0_56 = arith.constant 0 : index
    %102 = vector.load %arg4[%c0_54, %c0_55, %101, %c0_56] : memref<1x4x8x256xf32, #tpu.memory_space<vmem>>, vector<1x1x8x256xf32>
    %103 = vector.shape_cast %102 : vector<1x1x8x256xf32> to vector<8x256xf32>
    %c0_57 = arith.constant 0 : index
    %c1_58 = arith.constant 1 : index
    %c0_59 = arith.constant 0 : index
    %104 = vector.load %arg5[%c0_57, %c1_58, %c0_59] : memref<4x4x256xf32, #tpu.memory_space<vmem>>, vector<1x1x256xf32>
    %105 = vector.shape_cast %104 : vector<1x1x256xf32> to vector<1x256xf32>
    %c0_60 = arith.constant 0 : index
    %c1_61 = arith.constant 1 : index
    %c0_62 = arith.constant 0 : index
    %106 = vector.load %arg6[%c0_60, %c1_61, %c0_62] : memref<4x4x256xf32, #tpu.memory_space<vmem>>, vector<1x1x256xf32>
    %107 = vector.shape_cast %106 : vector<1x1x256xf32> to vector<1x256xf32>
    %108 = vector.broadcast %105 : vector<1x256xf32> to vector<8x256xf32>
    %109 = arith.mulf %100, %108 : vector<8x256xf32>
    %110 = vector.broadcast %107 : vector<1x256xf32> to vector<8x256xf32>
    %111 = arith.mulf %103, %110 : vector<8x256xf32>
    %112 = arith.subf %109, %111 : vector<8x256xf32>
    %113 = vector.broadcast %107 : vector<1x256xf32> to vector<8x256xf32>
    %114 = arith.mulf %100, %113 : vector<8x256xf32>
    %115 = vector.broadcast %105 : vector<1x256xf32> to vector<8x256xf32>
    %116 = arith.mulf %103, %115 : vector<8x256xf32>
    %117 = arith.addf %114, %116 : vector<8x256xf32>
    %c0_63 = arith.constant 0 : index
    %c1_64 = arith.constant 1 : index
    %118 = arith.index_cast %3 : i32 to index
    %c0_65 = arith.constant 0 : index
    %119 = vector.load %arg3[%c0_63, %c1_64, %118, %c0_65] : memref<1x4x8x256xf32, #tpu.memory_space<vmem>>, vector<1x1x8x256xf32>
    %120 = vector.shape_cast %119 : vector<1x1x8x256xf32> to vector<8x256xf32>
    %c0_66 = arith.constant 0 : index
    %c1_67 = arith.constant 1 : index
    %121 = arith.index_cast %3 : i32 to index
    %c0_68 = arith.constant 0 : index
    %122 = vector.load %arg4[%c0_66, %c1_67, %121, %c0_68] : memref<1x4x8x256xf32, #tpu.memory_space<vmem>>, vector<1x1x8x256xf32>
    %123 = vector.shape_cast %122 : vector<1x1x8x256xf32> to vector<8x256xf32>
    %c1_69 = arith.constant 1 : index
    %c1_70 = arith.constant 1 : index
    %c0_71 = arith.constant 0 : index
    %124 = vector.load %arg5[%c1_69, %c1_70, %c0_71] : memref<4x4x256xf32, #tpu.memory_space<vmem>>, vector<1x1x256xf32>
    %125 = vector.shape_cast %124 : vector<1x1x256xf32> to vector<1x256xf32>
    %c1_72 = arith.constant 1 : index
    %c1_73 = arith.constant 1 : index
    %c0_74 = arith.constant 0 : index
    %126 = vector.load %arg6[%c1_72, %c1_73, %c0_74] : memref<4x4x256xf32, #tpu.memory_space<vmem>>, vector<1x1x256xf32>
    %127 = vector.shape_cast %126 : vector<1x1x256xf32> to vector<1x256xf32>
    %128 = vector.broadcast %125 : vector<1x256xf32> to vector<8x256xf32>
    %129 = arith.mulf %120, %128 : vector<8x256xf32>
    %130 = arith.addf %112, %129 : vector<8x256xf32>
    %131 = vector.broadcast %127 : vector<1x256xf32> to vector<8x256xf32>
    %132 = arith.mulf %123, %131 : vector<8x256xf32>
    %133 = arith.subf %130, %132 : vector<8x256xf32>
    %134 = vector.broadcast %127 : vector<1x256xf32> to vector<8x256xf32>
    %135 = arith.mulf %120, %134 : vector<8x256xf32>
    %136 = arith.addf %117, %135 : vector<8x256xf32>
    %137 = vector.broadcast %125 : vector<1x256xf32> to vector<8x256xf32>
    %138 = arith.mulf %123, %137 : vector<8x256xf32>
    %139 = arith.addf %136, %138 : vector<8x256xf32>
    %c0_75 = arith.constant 0 : index
    %c2_76 = arith.constant 2 : index
    %140 = arith.index_cast %3 : i32 to index
    %c0_77 = arith.constant 0 : index
    %141 = vector.load %arg3[%c0_75, %c2_76, %140, %c0_77] : memref<1x4x8x256xf32, #tpu.memory_space<vmem>>, vector<1x1x8x256xf32>
    %142 = vector.shape_cast %141 : vector<1x1x8x256xf32> to vector<8x256xf32>
    %c0_78 = arith.constant 0 : index
    %c2_79 = arith.constant 2 : index
    %143 = arith.index_cast %3 : i32 to index
    %c0_80 = arith.constant 0 : index
    %144 = vector.load %arg4[%c0_78, %c2_79, %143, %c0_80] : memref<1x4x8x256xf32, #tpu.memory_space<vmem>>, vector<1x1x8x256xf32>
    %145 = vector.shape_cast %144 : vector<1x1x8x256xf32> to vector<8x256xf32>
    %c2_81 = arith.constant 2 : index
    %c1_82 = arith.constant 1 : index
    %c0_83 = arith.constant 0 : index
    %146 = vector.load %arg5[%c2_81, %c1_82, %c0_83] : memref<4x4x256xf32, #tpu.memory_space<vmem>>, vector<1x1x256xf32>
    %147 = vector.shape_cast %146 : vector<1x1x256xf32> to vector<1x256xf32>
    %c2_84 = arith.constant 2 : index
    %c1_85 = arith.constant 1 : index
    %c0_86 = arith.constant 0 : index
    %148 = vector.load %arg6[%c2_84, %c1_85, %c0_86] : memref<4x4x256xf32, #tpu.memory_space<vmem>>, vector<1x1x256xf32>
    %149 = vector.shape_cast %148 : vector<1x1x256xf32> to vector<1x256xf32>
    %150 = vector.broadcast %147 : vector<1x256xf32> to vector<8x256xf32>
    %151 = arith.mulf %142, %150 : vector<8x256xf32>
    %152 = arith.addf %133, %151 : vector<8x256xf32>
    %153 = vector.broadcast %149 : vector<1x256xf32> to vector<8x256xf32>
    %154 = arith.mulf %145, %153 : vector<8x256xf32>
    %155 = arith.subf %152, %154 : vector<8x256xf32>
    %156 = vector.broadcast %149 : vector<1x256xf32> to vector<8x256xf32>
    %157 = arith.mulf %142, %156 : vector<8x256xf32>
    %158 = arith.addf %139, %157 : vector<8x256xf32>
    %159 = vector.broadcast %147 : vector<1x256xf32> to vector<8x256xf32>
    %160 = arith.mulf %145, %159 : vector<8x256xf32>
    %161 = arith.addf %158, %160 : vector<8x256xf32>
    %c0_87 = arith.constant 0 : index
    %c3_88 = arith.constant 3 : index
    %162 = arith.index_cast %3 : i32 to index
    %c0_89 = arith.constant 0 : index
    %163 = vector.load %arg3[%c0_87, %c3_88, %162, %c0_89] : memref<1x4x8x256xf32, #tpu.memory_space<vmem>>, vector<1x1x8x256xf32>
    %164 = vector.shape_cast %163 : vector<1x1x8x256xf32> to vector<8x256xf32>
    %c0_90 = arith.constant 0 : index
    %c3_91 = arith.constant 3 : index
    %165 = arith.index_cast %3 : i32 to index
    %c0_92 = arith.constant 0 : index
    %166 = vector.load %arg4[%c0_90, %c3_91, %165, %c0_92] : memref<1x4x8x256xf32, #tpu.memory_space<vmem>>, vector<1x1x8x256xf32>
    %167 = vector.shape_cast %166 : vector<1x1x8x256xf32> to vector<8x256xf32>
    %c3_93 = arith.constant 3 : index
    %c1_94 = arith.constant 1 : index
    %c0_95 = arith.constant 0 : index
    %168 = vector.load %arg5[%c3_93, %c1_94, %c0_95] : memref<4x4x256xf32, #tpu.memory_space<vmem>>, vector<1x1x256xf32>
    %169 = vector.shape_cast %168 : vector<1x1x256xf32> to vector<1x256xf32>
    %c3_96 = arith.constant 3 : index
    %c1_97 = arith.constant 1 : index
    %c0_98 = arith.constant 0 : index
    %170 = vector.load %arg6[%c3_96, %c1_97, %c0_98] : memref<4x4x256xf32, #tpu.memory_space<vmem>>, vector<1x1x256xf32>
    %171 = vector.shape_cast %170 : vector<1x1x256xf32> to vector<1x256xf32>
    %172 = vector.broadcast %169 : vector<1x256xf32> to vector<8x256xf32>
    %173 = arith.mulf %164, %172 : vector<8x256xf32>
    %174 = arith.addf %155, %173 : vector<8x256xf32>
    %175 = vector.broadcast %171 : vector<1x256xf32> to vector<8x256xf32>
    %176 = arith.mulf %167, %175 : vector<8x256xf32>
    %177 = arith.subf %174, %176 : vector<8x256xf32>
    %178 = vector.broadcast %171 : vector<1x256xf32> to vector<8x256xf32>
    %179 = arith.mulf %164, %178 : vector<8x256xf32>
    %180 = arith.addf %161, %179 : vector<8x256xf32>
    %181 = vector.broadcast %169 : vector<1x256xf32> to vector<8x256xf32>
    %182 = arith.mulf %167, %181 : vector<8x256xf32>
    %183 = arith.addf %180, %182 : vector<8x256xf32>
    %c0_99 = arith.constant 0 : index
    %c1_100 = arith.constant 1 : index
    %184 = arith.index_cast %3 : i32 to index
    %c0_101 = arith.constant 0 : index
    %185 = vector.load %arg7[%c0_99, %c1_100, %184, %c0_101] : memref<1x4x8x256xf32, #tpu.memory_space<vmem>>, vector<1x1x8x256xf32>
    %186 = vector.shape_cast %185 : vector<1x1x8x256xf32> to vector<8x256xf32>
    %187 = vector.shape_cast %177 : vector<8x256xf32> to vector<1x1x8x256xf32>
    tpu.vector_store %arg7[%c0_99, %c1_100, %184, %c0_101], %187 {strides = array<i32>} : memref<1x4x8x256xf32, #tpu.memory_space<vmem>>, vector<1x1x8x256xf32>,
    %c0_102 = arith.constant 0 : index
    %c1_103 = arith.constant 1 : index
    %188 = arith.index_cast %3 : i32 to index
    %c0_104 = arith.constant 0 : index
    %189 = vector.load %arg8[%c0_102, %c1_103, %188, %c0_104] : memref<1x4x8x256xf32, #tpu.memory_space<vmem>>, vector<1x1x8x256xf32>
    %190 = vector.shape_cast %189 : vector<1x1x8x256xf32> to vector<8x256xf32>
    %191 = vector.shape_cast %183 : vector<8x256xf32> to vector<1x1x8x256xf32>
    tpu.vector_store %arg8[%c0_102, %c1_103, %188, %c0_104], %191 {strides = array<i32>} : memref<1x4x8x256xf32, #tpu.memory_space<vmem>>, vector<1x1x8x256xf32>,
    %c0_105 = arith.constant 0 : index
    %c0_106 = arith.constant 0 : index
    %192 = arith.index_cast %3 : i32 to index
    %c0_107 = arith.constant 0 : index
    %193 = vector.load %arg3[%c0_105, %c0_106, %192, %c0_107] : memref<1x4x8x256xf32, #tpu.memory_space<vmem>>, vector<1x1x8x256xf32>
    %194 = vector.shape_cast %193 : vector<1x1x8x256xf32> to vector<8x256xf32>
    %c0_108 = arith.constant 0 : index
    %c0_109 = arith.constant 0 : index
    %195 = arith.index_cast %3 : i32 to index
    %c0_110 = arith.constant 0 : index
    %196 = vector.load %arg4[%c0_108, %c0_109, %195, %c0_110] : memref<1x4x8x256xf32, #tpu.memory_space<vmem>>, vector<1x1x8x256xf32>
    %197 = vector.shape_cast %196 : vector<1x1x8x256xf32> to vector<8x256xf32>
    %c0_111 = arith.constant 0 : index
    %c2_112 = arith.constant 2 : index
    %c0_113 = arith.constant 0 : index
    %198 = vector.load %arg5[%c0_111, %c2_112, %c0_113] : memref<4x4x256xf32, #tpu.memory_space<vmem>>, vector<1x1x256xf32>
    %199 = vector.shape_cast %198 : vector<1x1x256xf32> to vector<1x256xf32>
    %c0_114 = arith.constant 0 : index
    %c2_115 = arith.constant 2 : index
    %c0_116 = arith.constant 0 : index
    %200 = vector.load %arg6[%c0_114, %c2_115, %c0_116] : memref<4x4x256xf32, #tpu.memory_space<vmem>>, vector<1x1x256xf32>
    %201 = vector.shape_cast %200 : vector<1x1x256xf32> to vector<1x256xf32>
    %202 = vector.broadcast %199 : vector<1x256xf32> to vector<8x256xf32>
    %203 = arith.mulf %194, %202 : vector<8x256xf32>
    %204 = vector.broadcast %201 : vector<1x256xf32> to vector<8x256xf32>
    %205 = arith.mulf %197, %204 : vector<8x256xf32>
    %206 = arith.subf %203, %205 : vector<8x256xf32>
    %207 = vector.broadcast %201 : vector<1x256xf32> to vector<8x256xf32>
    %208 = arith.mulf %194, %207 : vector<8x256xf32>
    %209 = vector.broadcast %199 : vector<1x256xf32> to vector<8x256xf32>
    %210 = arith.mulf %197, %209 : vector<8x256xf32>
    %211 = arith.addf %208, %210 : vector<8x256xf32>
    %c0_117 = arith.constant 0 : index
    %c1_118 = arith.constant 1 : index
    %212 = arith.index_cast %3 : i32 to index
    %c0_119 = arith.constant 0 : index
    %213 = vector.load %arg3[%c0_117, %c1_118, %212, %c0_119] : memref<1x4x8x256xf32, #tpu.memory_space<vmem>>, vector<1x1x8x256xf32>
    %214 = vector.shape_cast %213 : vector<1x1x8x256xf32> to vector<8x256xf32>
    %c0_120 = arith.constant 0 : index
    %c1_121 = arith.constant 1 : index
    %215 = arith.index_cast %3 : i32 to index
    %c0_122 = arith.constant 0 : index
    %216 = vector.load %arg4[%c0_120, %c1_121, %215, %c0_122] : memref<1x4x8x256xf32, #tpu.memory_space<vmem>>, vector<1x1x8x256xf32>
    %217 = vector.shape_cast %216 : vector<1x1x8x256xf32> to vector<8x256xf32>
    %c1_123 = arith.constant 1 : index
    %c2_124 = arith.constant 2 : index
    %c0_125 = arith.constant 0 : index
    %218 = vector.load %arg5[%c1_123, %c2_124, %c0_125] : memref<4x4x256xf32, #tpu.memory_space<vmem>>, vector<1x1x256xf32>
    %219 = vector.shape_cast %218 : vector<1x1x256xf32> to vector<1x256xf32>
    %c1_126 = arith.constant 1 : index
    %c2_127 = arith.constant 2 : index
    %c0_128 = arith.constant 0 : index
    %220 = vector.load %arg6[%c1_126, %c2_127, %c0_128] : memref<4x4x256xf32, #tpu.memory_space<vmem>>, vector<1x1x256xf32>
    %221 = vector.shape_cast %220 : vector<1x1x256xf32> to vector<1x256xf32>
    %222 = vector.broadcast %219 : vector<1x256xf32> to vector<8x256xf32>
    %223 = arith.mulf %214, %222 : vector<8x256xf32>
    %224 = arith.addf %206, %223 : vector<8x256xf32>
    %225 = vector.broadcast %221 : vector<1x256xf32> to vector<8x256xf32>
    %226 = arith.mulf %217, %225 : vector<8x256xf32>
    %227 = arith.subf %224, %226 : vector<8x256xf32>
    %228 = vector.broadcast %221 : vector<1x256xf32> to vector<8x256xf32>
    %229 = arith.mulf %214, %228 : vector<8x256xf32>
    %230 = arith.addf %211, %229 : vector<8x256xf32>
    %231 = vector.broadcast %219 : vector<1x256xf32> to vector<8x256xf32>
    %232 = arith.mulf %217, %231 : vector<8x256xf32>
    %233 = arith.addf %230, %232 : vector<8x256xf32>
    %c0_129 = arith.constant 0 : index
    %c2_130 = arith.constant 2 : index
    %234 = arith.index_cast %3 : i32 to index
    %c0_131 = arith.constant 0 : index
    %235 = vector.load %arg3[%c0_129, %c2_130, %234, %c0_131] : memref<1x4x8x256xf32, #tpu.memory_space<vmem>>, vector<1x1x8x256xf32>
    %236 = vector.shape_cast %235 : vector<1x1x8x256xf32> to vector<8x256xf32>
    %c0_132 = arith.constant 0 : index
    %c2_133 = arith.constant 2 : index
    %237 = arith.index_cast %3 : i32 to index
    %c0_134 = arith.constant 0 : index
    %238 = vector.load %arg4[%c0_132, %c2_133, %237, %c0_134] : memref<1x4x8x256xf32, #tpu.memory_space<vmem>>, vector<1x1x8x256xf32>
    %239 = vector.shape_cast %238 : vector<1x1x8x256xf32> to vector<8x256xf32>
    %c2_135 = arith.constant 2 : index
    %c2_136 = arith.constant 2 : index
    %c0_137 = arith.constant 0 : index
    %240 = vector.load %arg5[%c2_135, %c2_136, %c0_137] : memref<4x4x256xf32, #tpu.memory_space<vmem>>, vector<1x1x256xf32>
    %241 = vector.shape_cast %240 : vector<1x1x256xf32> to vector<1x256xf32>
    %c2_138 = arith.constant 2 : index
    %c2_139 = arith.constant 2 : index
    %c0_140 = arith.constant 0 : index
    %242 = vector.load %arg6[%c2_138, %c2_139, %c0_140] : memref<4x4x256xf32, #tpu.memory_space<vmem>>, vector<1x1x256xf32>
    %243 = vector.shape_cast %242 : vector<1x1x256xf32> to vector<1x256xf32>
    %244 = vector.broadcast %241 : vector<1x256xf32> to vector<8x256xf32>
    %245 = arith.mulf %236, %244 : vector<8x256xf32>
    %246 = arith.addf %227, %245 : vector<8x256xf32>
    %247 = vector.broadcast %243 : vector<1x256xf32> to vector<8x256xf32>
    %248 = arith.mulf %239, %247 : vector<8x256xf32>
    %249 = arith.subf %246, %248 : vector<8x256xf32>
    %250 = vector.broadcast %243 : vector<1x256xf32> to vector<8x256xf32>
    %251 = arith.mulf %236, %250 : vector<8x256xf32>
    %252 = arith.addf %233, %251 : vector<8x256xf32>
    %253 = vector.broadcast %241 : vector<1x256xf32> to vector<8x256xf32>
    %254 = arith.mulf %239, %253 : vector<8x256xf32>
    %255 = arith.addf %252, %254 : vector<8x256xf32>
    %c0_141 = arith.constant 0 : index
    %c3_142 = arith.constant 3 : index
    %256 = arith.index_cast %3 : i32 to index
    %c0_143 = arith.constant 0 : index
    %257 = vector.load %arg3[%c0_141, %c3_142, %256, %c0_143] : memref<1x4x8x256xf32, #tpu.memory_space<vmem>>, vector<1x1x8x256xf32>
    %258 = vector.shape_cast %257 : vector<1x1x8x256xf32> to vector<8x256xf32>
    %c0_144 = arith.constant 0 : index
    %c3_145 = arith.constant 3 : index
    %259 = arith.index_cast %3 : i32 to index
    %c0_146 = arith.constant 0 : index
    %260 = vector.load %arg4[%c0_144, %c3_145, %259, %c0_146] : memref<1x4x8x256xf32, #tpu.memory_space<vmem>>, vector<1x1x8x256xf32>
    %261 = vector.shape_cast %260 : vector<1x1x8x256xf32> to vector<8x256xf32>
    %c3_147 = arith.constant 3 : index
    %c2_148 = arith.constant 2 : index
    %c0_149 = arith.constant 0 : index
    %262 = vector.load %arg5[%c3_147, %c2_148, %c0_149] : memref<4x4x256xf32, #tpu.memory_space<vmem>>, vector<1x1x256xf32>
    %263 = vector.shape_cast %262 : vector<1x1x256xf32> to vector<1x256xf32>
    %c3_150 = arith.constant 3 : index
    %c2_151 = arith.constant 2 : index
    %c0_152 = arith.constant 0 : index
    %264 = vector.load %arg6[%c3_150, %c2_151, %c0_152] : memref<4x4x256xf32, #tpu.memory_space<vmem>>, vector<1x1x256xf32>
    %265 = vector.shape_cast %264 : vector<1x1x256xf32> to vector<1x256xf32>
    %266 = vector.broadcast %263 : vector<1x256xf32> to vector<8x256xf32>
    %267 = arith.mulf %258, %266 : vector<8x256xf32>
    %268 = arith.addf %249, %267 : vector<8x256xf32>
    %269 = vector.broadcast %265 : vector<1x256xf32> to vector<8x256xf32>
    %270 = arith.mulf %261, %269 : vector<8x256xf32>
    %271 = arith.subf %268, %270 : vector<8x256xf32>
    %272 = vector.broadcast %265 : vector<1x256xf32> to vector<8x256xf32>
    %273 = arith.mulf %258, %272 : vector<8x256xf32>
    %274 = arith.addf %255, %273 : vector<8x256xf32>
    %275 = vector.broadcast %263 : vector<1x256xf32> to vector<8x256xf32>
    %276 = arith.mulf %261, %275 : vector<8x256xf32>
    %277 = arith.addf %274, %276 : vector<8x256xf32>
    %c0_153 = arith.constant 0 : index
    %c2_154 = arith.constant 2 : index
    %278 = arith.index_cast %3 : i32 to index
    %c0_155 = arith.constant 0 : index
    %279 = vector.load %arg7[%c0_153, %c2_154, %278, %c0_155] : memref<1x4x8x256xf32, #tpu.memory_space<vmem>>, vector<1x1x8x256xf32>
    %280 = vector.shape_cast %279 : vector<1x1x8x256xf32> to vector<8x256xf32>
    %281 = vector.shape_cast %271 : vector<8x256xf32> to vector<1x1x8x256xf32>
    tpu.vector_store %arg7[%c0_153, %c2_154, %278, %c0_155], %281 {strides = array<i32>} : memref<1x4x8x256xf32, #tpu.memory_space<vmem>>, vector<1x1x8x256xf32>,
    %c0_156 = arith.constant 0 : index
    %c2_157 = arith.constant 2 : index
    %282 = arith.index_cast %3 : i32 to index
    %c0_158 = arith.constant 0 : index
    %283 = vector.load %arg8[%c0_156, %c2_157, %282, %c0_158] : memref<1x4x8x256xf32, #tpu.memory_space<vmem>>, vector<1x1x8x256xf32>
    %284 = vector.shape_cast %283 : vector<1x1x8x256xf32> to vector<8x256xf32>
    %285 = vector.shape_cast %277 : vector<8x256xf32> to vector<1x1x8x256xf32>
    tpu.vector_store %arg8[%c0_156, %c2_157, %282, %c0_158], %285 {strides = array<i32>} : memref<1x4x8x256xf32, #tpu.memory_space<vmem>>, vector<1x1x8x256xf32>,
    %c0_159 = arith.constant 0 : index
    %c0_160 = arith.constant 0 : index
    %286 = arith.index_cast %3 : i32 to index
    %c0_161 = arith.constant 0 : index
    %287 = vector.load %arg3[%c0_159, %c0_160, %286, %c0_161] : memref<1x4x8x256xf32, #tpu.memory_space<vmem>>, vector<1x1x8x256xf32>
    %288 = vector.shape_cast %287 : vector<1x1x8x256xf32> to vector<8x256xf32>
    %c0_162 = arith.constant 0 : index
    %c0_163 = arith.constant 0 : index
    %289 = arith.index_cast %3 : i32 to index
    %c0_164 = arith.constant 0 : index
    %290 = vector.load %arg4[%c0_162, %c0_163, %289, %c0_164] : memref<1x4x8x256xf32, #tpu.memory_space<vmem>>, vector<1x1x8x256xf32>
    %291 = vector.shape_cast %290 : vector<1x1x8x256xf32> to vector<8x256xf32>
    %c0_165 = arith.constant 0 : index
    %c3_166 = arith.constant 3 : index
    %c0_167 = arith.constant 0 : index
    %292 = vector.load %arg5[%c0_165, %c3_166, %c0_167] : memref<4x4x256xf32, #tpu.memory_space<vmem>>, vector<1x1x256xf32>
    %293 = vector.shape_cast %292 : vector<1x1x256xf32> to vector<1x256xf32>
    %c0_168 = arith.constant 0 : index
    %c3_169 = arith.constant 3 : index
    %c0_170 = arith.constant 0 : index
    %294 = vector.load %arg6[%c0_168, %c3_169, %c0_170] : memref<4x4x256xf32, #tpu.memory_space<vmem>>, vector<1x1x256xf32>
    %295 = vector.shape_cast %294 : vector<1x1x256xf32> to vector<1x256xf32>
    %296 = vector.broadcast %293 : vector<1x256xf32> to vector<8x256xf32>
    %297 = arith.mulf %288, %296 : vector<8x256xf32>
    %298 = vector.broadcast %295 : vector<1x256xf32> to vector<8x256xf32>
    %299 = arith.mulf %291, %298 : vector<8x256xf32>
    %300 = arith.subf %297, %299 : vector<8x256xf32>
    %301 = vector.broadcast %295 : vector<1x256xf32> to vector<8x256xf32>
    %302 = arith.mulf %288, %301 : vector<8x256xf32>
    %303 = vector.broadcast %293 : vector<1x256xf32> to vector<8x256xf32>
    %304 = arith.mulf %291, %303 : vector<8x256xf32>
    %305 = arith.addf %302, %304 : vector<8x256xf32>
    %c0_171 = arith.constant 0 : index
    %c1_172 = arith.constant 1 : index
    %306 = arith.index_cast %3 : i32 to index
    %c0_173 = arith.constant 0 : index
    %307 = vector.load %arg3[%c0_171, %c1_172, %306, %c0_173] : memref<1x4x8x256xf32, #tpu.memory_space<vmem>>, vector<1x1x8x256xf32>
    %308 = vector.shape_cast %307 : vector<1x1x8x256xf32> to vector<8x256xf32>
    %c0_174 = arith.constant 0 : index
    %c1_175 = arith.constant 1 : index
    %309 = arith.index_cast %3 : i32 to index
    %c0_176 = arith.constant 0 : index
    %310 = vector.load %arg4[%c0_174, %c1_175, %309, %c0_176] : memref<1x4x8x256xf32, #tpu.memory_space<vmem>>, vector<1x1x8x256xf32>
    %311 = vector.shape_cast %310 : vector<1x1x8x256xf32> to vector<8x256xf32>
    %c1_177 = arith.constant 1 : index
    %c3_178 = arith.constant 3 : index
    %c0_179 = arith.constant 0 : index
    %312 = vector.load %arg5[%c1_177, %c3_178, %c0_179] : memref<4x4x256xf32, #tpu.memory_space<vmem>>, vector<1x1x256xf32>
    %313 = vector.shape_cast %312 : vector<1x1x256xf32> to vector<1x256xf32>
    %c1_180 = arith.constant 1 : index
    %c3_181 = arith.constant 3 : index
    %c0_182 = arith.constant 0 : index
    %314 = vector.load %arg6[%c1_180, %c3_181, %c0_182] : memref<4x4x256xf32, #tpu.memory_space<vmem>>, vector<1x1x256xf32>
    %315 = vector.shape_cast %314 : vector<1x1x256xf32> to vector<1x256xf32>
    %316 = vector.broadcast %313 : vector<1x256xf32> to vector<8x256xf32>
    %317 = arith.mulf %308, %316 : vector<8x256xf32>
    %318 = arith.addf %300, %317 : vector<8x256xf32>
    %319 = vector.broadcast %315 : vector<1x256xf32> to vector<8x256xf32>
    %320 = arith.mulf %311, %319 : vector<8x256xf32>
    %321 = arith.subf %318, %320 : vector<8x256xf32>
    %322 = vector.broadcast %315 : vector<1x256xf32> to vector<8x256xf32>
    %323 = arith.mulf %308, %322 : vector<8x256xf32>
    %324 = arith.addf %305, %323 : vector<8x256xf32>
    %325 = vector.broadcast %313 : vector<1x256xf32> to vector<8x256xf32>
    %326 = arith.mulf %311, %325 : vector<8x256xf32>
    %327 = arith.addf %324, %326 : vector<8x256xf32>
    %c0_183 = arith.constant 0 : index
    %c2_184 = arith.constant 2 : index
    %328 = arith.index_cast %3 : i32 to index
    %c0_185 = arith.constant 0 : index
    %329 = vector.load %arg3[%c0_183, %c2_184, %328, %c0_185] : memref<1x4x8x256xf32, #tpu.memory_space<vmem>>, vector<1x1x8x256xf32>
    %330 = vector.shape_cast %329 : vector<1x1x8x256xf32> to vector<8x256xf32>
    %c0_186 = arith.constant 0 : index
    %c2_187 = arith.constant 2 : index
    %331 = arith.index_cast %3 : i32 to index
    %c0_188 = arith.constant 0 : index
    %332 = vector.load %arg4[%c0_186, %c2_187, %331, %c0_188] : memref<1x4x8x256xf32, #tpu.memory_space<vmem>>, vector<1x1x8x256xf32>
    %333 = vector.shape_cast %332 : vector<1x1x8x256xf32> to vector<8x256xf32>
    %c2_189 = arith.constant 2 : index
    %c3_190 = arith.constant 3 : index
    %c0_191 = arith.constant 0 : index
    %334 = vector.load %arg5[%c2_189, %c3_190, %c0_191] : memref<4x4x256xf32, #tpu.memory_space<vmem>>, vector<1x1x256xf32>
    %335 = vector.shape_cast %334 : vector<1x1x256xf32> to vector<1x256xf32>
    %c2_192 = arith.constant 2 : index
    %c3_193 = arith.constant 3 : index
    %c0_194 = arith.constant 0 : index
    %336 = vector.load %arg6[%c2_192, %c3_193, %c0_194] : memref<4x4x256xf32, #tpu.memory_space<vmem>>, vector<1x1x256xf32>
    %337 = vector.shape_cast %336 : vector<1x1x256xf32> to vector<1x256xf32>
    %338 = vector.broadcast %335 : vector<1x256xf32> to vector<8x256xf32>
    %339 = arith.mulf %330, %338 : vector<8x256xf32>
    %340 = arith.addf %321, %339 : vector<8x256xf32>
    %341 = vector.broadcast %337 : vector<1x256xf32> to vector<8x256xf32>
    %342 = arith.mulf %333, %341 : vector<8x256xf32>
    %343 = arith.subf %340, %342 : vector<8x256xf32>
    %344 = vector.broadcast %337 : vector<1x256xf32> to vector<8x256xf32>
    %345 = arith.mulf %330, %344 : vector<8x256xf32>
    %346 = arith.addf %327, %345 : vector<8x256xf32>
    %347 = vector.broadcast %335 : vector<1x256xf32> to vector<8x256xf32>
    %348 = arith.mulf %333, %347 : vector<8x256xf32>
    %349 = arith.addf %346, %348 : vector<8x256xf32>
    %c0_195 = arith.constant 0 : index
    %c3_196 = arith.constant 3 : index
    %350 = arith.index_cast %3 : i32 to index
    %c0_197 = arith.constant 0 : index
    %351 = vector.load %arg3[%c0_195, %c3_196, %350, %c0_197] : memref<1x4x8x256xf32, #tpu.memory_space<vmem>>, vector<1x1x8x256xf32>
    %352 = vector.shape_cast %351 : vector<1x1x8x256xf32> to vector<8x256xf32>
    %c0_198 = arith.constant 0 : index
    %c3_199 = arith.constant 3 : index
    %353 = arith.index_cast %3 : i32 to index
    %c0_200 = arith.constant 0 : index
    %354 = vector.load %arg4[%c0_198, %c3_199, %353, %c0_200] : memref<1x4x8x256xf32, #tpu.memory_space<vmem>>, vector<1x1x8x256xf32>
    %355 = vector.shape_cast %354 : vector<1x1x8x256xf32> to vector<8x256xf32>
    %c3_201 = arith.constant 3 : index
    %c3_202 = arith.constant 3 : index
    %c0_203 = arith.constant 0 : index
    %356 = vector.load %arg5[%c3_201, %c3_202, %c0_203] : memref<4x4x256xf32, #tpu.memory_space<vmem>>, vector<1x1x256xf32>
    %357 = vector.shape_cast %356 : vector<1x1x256xf32> to vector<1x256xf32>
    %c3_204 = arith.constant 3 : index
    %c3_205 = arith.constant 3 : index
    %c0_206 = arith.constant 0 : index
    %358 = vector.load %arg6[%c3_204, %c3_205, %c0_206] : memref<4x4x256xf32, #tpu.memory_space<vmem>>, vector<1x1x256xf32>
    %359 = vector.shape_cast %358 : vector<1x1x256xf32> to vector<1x256xf32>
    %360 = vector.broadcast %357 : vector<1x256xf32> to vector<8x256xf32>
    %361 = arith.mulf %352, %360 : vector<8x256xf32>
    %362 = arith.addf %343, %361 : vector<8x256xf32>
    %363 = vector.broadcast %359 : vector<1x256xf32> to vector<8x256xf32>
    %364 = arith.mulf %355, %363 : vector<8x256xf32>
    %365 = arith.subf %362, %364 : vector<8x256xf32>
    %366 = vector.broadcast %359 : vector<1x256xf32> to vector<8x256xf32>
    %367 = arith.mulf %352, %366 : vector<8x256xf32>
    %368 = arith.addf %349, %367 : vector<8x256xf32>
    %369 = vector.broadcast %357 : vector<1x256xf32> to vector<8x256xf32>
    %370 = arith.mulf %355, %369 : vector<8x256xf32>
    %371 = arith.addf %368, %370 : vector<8x256xf32>
    %c0_207 = arith.constant 0 : index
    %c3_208 = arith.constant 3 : index
    %372 = arith.index_cast %3 : i32 to index
    %c0_209 = arith.constant 0 : index
    %373 = vector.load %arg7[%c0_207, %c3_208, %372, %c0_209] : memref<1x4x8x256xf32, #tpu.memory_space<vmem>>, vector<1x1x8x256xf32>
    %374 = vector.shape_cast %373 : vector<1x1x8x256xf32> to vector<8x256xf32>
    %375 = vector.shape_cast %365 : vector<8x256xf32> to vector<1x1x8x256xf32>
    tpu.vector_store %arg7[%c0_207, %c3_208, %372, %c0_209], %375 {strides = array<i32>} : memref<1x4x8x256xf32, #tpu.memory_space<vmem>>, vector<1x1x8x256xf32>,
    %c0_210 = arith.constant 0 : index
    %c3_211 = arith.constant 3 : index
    %376 = arith.index_cast %3 : i32 to index
    %c0_212 = arith.constant 0 : index
    %377 = vector.load %arg8[%c0_210, %c3_211, %376, %c0_212] : memref<1x4x8x256xf32, #tpu.memory_space<vmem>>, vector<1x1x8x256xf32>
    %378 = vector.shape_cast %377 : vector<1x1x8x256xf32> to vector<8x256xf32>
    %379 = vector.shape_cast %371 : vector<8x256xf32> to vector<1x1x8x256xf32>
    tpu.vector_store %arg8[%c0_210, %c3_211, %376, %c0_212], %379 {strides = array<i32>} : memref<1x4x8x256xf32, #tpu.memory_space<vmem>>, vector<1x1x8x256xf32>,
    %c1_i32_213 = arith.constant 1 : i32
    return
  }
  func.func @transform_0(%arg0: i32, %arg1: i32, %arg2: i32) -> (i32, i32, i32, i32) {
    %c0_i32 = arith.constant 0 : i32
    %c0_i32_0 = arith.constant 0 : i32
    %c0_i32_1 = arith.constant 0 : i32
    return %arg1, %c0_i32, %arg2, %c0_i32_0 : i32, i32, i32, i32
  }
  func.func @transform_1(%arg0: i32, %arg1: i32, %arg2: i32) -> (i32, i32, i32, i32) {
    %c0_i32 = arith.constant 0 : i32
    %c0_i32_0 = arith.constant 0 : i32
    %c0_i32_1 = arith.constant 0 : i32
    return %arg1, %c0_i32, %arg2, %c0_i32_0 : i32, i32, i32, i32
  }
  func.func @transform_2(%arg0: i32, %arg1: i32, %arg2: i32) -> (i32, i32, i32) {
    %c0_i32 = arith.constant 0 : i32
    %c0_i32_0 = arith.constant 0 : i32
    %c0_i32_1 = arith.constant 0 : i32
    return %c0_i32, %arg0, %c0_i32_0 : i32, i32, i32
  }
  func.func @transform_3(%arg0: i32, %arg1: i32, %arg2: i32) -> (i32, i32, i32) {
    %c0_i32 = arith.constant 0 : i32
    %c0_i32_0 = arith.constant 0 : i32
    %c0_i32_1 = arith.constant 0 : i32
    return %c0_i32, %arg0, %c0_i32_0 : i32, i32, i32
  }
  func.func @transform_4(%arg0: i32, %arg1: i32, %arg2: i32) -> (i32, i32, i32, i32) {
    %c0_i32 = arith.constant 0 : i32
    %c0_i32_0 = arith.constant 0 : i32
    return %arg1, %arg0, %arg2, %c0_i32 : i32, i32, i32, i32
  }
  func.func @transform_5(%arg0: i32, %arg1: i32, %arg2: i32) -> (i32, i32, i32, i32) {
    %c0_i32 = arith.constant 0 : i32
    %c0_i32_0 = arith.constant 0 : i32
    return %arg1, %arg0, %arg2, %c0_i32 : i32, i32, i32, i32
  }
}

</mosaic_0001>

<llo_original>
// kernel: custom-call
$region0: #{custom-call}
  %s0 = inlined_call_operand.hbm [shape: c64[4,4,2,8,8], index: 0, kind: input, shape index: {}]
  %s1 = inlined_call_operand.vmem [shape: f32[4,4,2,8,8], index: 1, kind: output, shape index: {}]
  $region1: #{custom-call} parent=0
    #allocation0 [shape = 's32[1]{0}', space=sflag, size = 0x4, scoped, tag = 'scoped memory for custom-call']
    %2 = vsyncpa [#allocation0], 0
    %s4 = sshll.u32 %s0, 4
    %s5 = int_to_ptr.hbm [resolvable:$true] %s4
    %s6 = sshll.u32 %s1, 4
    %s7 = int_to_ptr.vmem [resolvable:$true] %s6
    %9 = dma.hbm_to_vmem [thread:$0]  %s5, 4096, %s7, [#allocation0]
    %11 = dma.done [#allocation0], 4096
    %12 = vsyncpa [#allocation0], 1

// kernel: custom-call.1
$region0: #{custom-call.1}
  %s0 = inlined_call_operand.hbm [shape: c64[4,4,2,8,8], index: 0, kind: input, shape index: {}]
  %s1 = inlined_call_operand.vmem [shape: f32[4,4,2,8,8], index: 1, kind: output, shape index: {}]
  %s2 = scalar_lea.hbm %s0, 256
  $region1: #{custom-call.1} parent=0
    #allocation0 [shape = 's32[1]{0}', space=sflag, size = 0x4, scoped, tag = 'scoped memory for custom-call.1']
    %3 = vsyncpa [#allocation0], 0
    %s5 = sshll.u32 %s2, 4
    %s6 = int_to_ptr.hbm [resolvable:$true] %s5
    %s7 = sshll.u32 %s1, 4
    %s8 = int_to_ptr.vmem [resolvable:$true] %s7
    %10 = dma.hbm_to_vmem [thread:$0]  %s6, 4096, %s8, [#allocation0]
    %12 = dma.done [#allocation0], 4096
    %13 = vsyncpa [#allocation0], 1

// kernel: spectral_conv_forward.1
$region0: #{spectral_conv_forward.1}
  #allocation0 [shape = 'u32[]', space=smem, size = 0x4, offset = 0x4, fixed_abs, tag = 'smem constant byte address 0x4 - core index']
  #allocation1 [shape = 'u32[72,128]{1,0:T(1,128)}', space=vmem, size = 0x9000, scoped, tag = 'internal scratch']
  %s0 = inlined_call_operand.vmem [shape: f32[2,4,8,256], index: 0, kind: input, shape index: {}]
  %s1 = inlined_call_operand.vmem [shape: f32[2,4,8,256], index: 1, kind: input, shape index: {}]
  %s2 = inlined_call_operand.vmem [shape: f32[4,4,256], index: 2, kind: input, shape index: {}]
  %s3 = inlined_call_operand.vmem [shape: f32[4,4,256], index: 3, kind: input, shape index: {}]
  %s4 = inlined_call_operand.vmem [shape: f32[2,4,8,256], index: 4, kind: output, shape index: {0}]
  %s5 = inlined_call_operand.vmem [shape: f32[2,4,8,256], index: 5, kind: output, shape index: {1}]
  %6 = xla_tuple %s4, %s5
  %s7 = sld [smem:[#allocation0]]
  $region57: #{spectral_conv_forward.1} parent=0
    _
  %s9 = ssub.s32 1, %s7
  %s10 = scalar_select 0, %s9, %s7
  loop: start=0, step=1, limit=4
  $region2: #{spectral_conv_forward.1} parent=0 // loop_pre_header
    _
  $region3: #{spectral_conv_forward.1} parent=0 // loop_header
    %s12 = sphi 0, %s16
    %p13 = scmp.ge.s32.totalorder %s12, 4
    %s19 = sphi 0, %s38
    %s20 = sphi 0, %s34
    %s21 = sphi 0, %s30
    %s22 = sphi 0, %s19
    %s23 = sphi 0, %s20
    %s24 = sphi 0, %s21
    %s25 = sphi 0, %s22
    %s26 = sphi 0, %s23
    %s27 = sphi 0, %s24
    %s43 = sphi 0, %s45
    %s46 = sphi 0, %s43
    %s47 = sphi 0, %s46
    %s63 = sphi 0, %s47
    %s71 = sphi 0, %s73
    %s74 = sphi 0, %s71
    %s75 = sphi 0, %s74
    %s91 = sphi 0, %s75
    %s97 = sphi 0, %s99
    %s100 = sphi 0, %s97
    %s101 = sphi 0, %s100
    %s117 = sphi 0, %s101
    %s123 = sphi 0, %s125
    %s126 = sphi 0, %s123
    %s127 = sphi 0, %s126
    %s143 = sphi 0, %s127
    %s153 = sphi 0, %s155
    %s156 = sphi 0, %s153
    %s157 = sphi 0, %s156
    %s173 = sphi 0, %s157
    %s183 = sphi 0, %s185
    %s186 = sphi 0, %s183
    %s187 = sphi 0, %s186
    %s203 = sphi 0, %s187
  $region4: #{spectral_conv_forward.1} parent=0 // loop_header_branch
    %15 = sbr.rel (%p13) target = $region8
  $region5: #{spectral_conv_forward.1} parent=0 // loop_body
    %s17 = ssub.s32 %s12, 1
    %s18 = ssub.s32 %s12, 2
    %s28 = sadd.s32 1, %s21
    %p29 = scmp.ge.s32.totalorder %s28, 1
    %s30 = scalar_select %p29, 0, %s28
    %s31 = sadd.s32 1, %s20
    %s32 = scalar_select %p29, %s31, %s20
    %p33 = scmp.ge.s32.totalorder %s32, 2
    %s34 = scalar_select %p33, 0, %s32
    %s35 = sadd.s32 1, %s19
    %s36 = scalar_select %p33, %s35, %s19
    %p37 = scmp.ge.s32.totalorder %s36, 1
    %s38 = scalar_select %p37, 0, %s36
    %s39 = ssub.s32 %s20, %s34
    %s40 = ssub.s32 %s21, %s30
    %s41 = sor.u32 %s39, %s40
    %p42 = scmp.eq.s32.totalorder %s41, 0
    %s44 = sadd.s32 %s43, 1
    %s45 = scalar_select %p42, %s43, %s44
    %p48 = pneg %p42
    %p49 = scmp.eq.s32.totalorder %s12, 1
    %p50 = por %p48, %p49
    %p51 = scmp.ne.s32.totalorder %s43, %s46
    %p52 = scmp.eq.s32.totalorder %s12, 0
    %p53 = por %p51, %p52
    %p54 = scmp.ne.s32.totalorder %s43, %s46
    %p55 = scmp.eq.s32.totalorder %s17, 1
    %p56 = por %p54, %p55
    %p57 = scmp.ne.s32.totalorder %s46, %s47
    %p58 = scmp.eq.s32.totalorder %s17, 0
    %p59 = por %p57, %p58
    %p60 = scmp.ne.s32.totalorder %s46, %s47
    %p61 = scmp.eq.s32.totalorder %s18, 1
    %p62 = por %p60, %p61
    %p64 = scmp.ne.s32.totalorder %s47, %s63
    %p65 = scmp.eq.s32.totalorder %s18, 0
    %p66 = por %p64, %p65
    %s67 = ssub.s32 %s20, %s34
    %s68 = ssub.s32 %s21, %s30
    %s69 = sor.u32 %s67, %s68
    %p70 = scmp.eq.s32.totalorder %s69, 0
    %s72 = sadd.s32 %s71, 1
    %s73 = scalar_select %p70, %s71, %s72
    %p76 = pneg %p70
    %p77 = scmp.eq.s32.totalorder %s12, 1
    %p78 = por %p76, %p77
    %p79 = scmp.ne.s32.totalorder %s71, %s74
    %p80 = scmp.eq.s32.totalorder %s12, 0
    %p81 = por %p79, %p80
    %p82 = scmp.ne.s32.totalorder %s71, %s74
    %p83 = scmp.eq.s32.totalorder %s17, 1
    %p84 = por %p82, %p83
    %p85 = scmp.ne.s32.totalorder %s74, %s75
    %p86 = scmp.eq.s32.totalorder %s17, 0
    %p87 = por %p85, %p86
    %p88 = scmp.ne.s32.totalorder %s74, %s75
    %p89 = scmp.eq.s32.totalorder %s18, 1
    %p90 = por %p88, %p89
    %p92 = scmp.ne.s32.totalorder %s75, %s91
    %p93 = scmp.eq.s32.totalorder %s18, 0
    %p94 = por %p92, %p93
    %s95 = ssub.s32 %s19, %s38
    %p96 = scmp.eq.s32.totalorder %s95, 0
    %s98 = sadd.s32 %s97, 1
    %s99 = scalar_select %p96, %s97, %s98
    %p102 = pneg %p96
    %p103 = scmp.eq.s32.totalorder %s12, 1
    %p104 = por %p102, %p103
    %p105 = scmp.ne.s32.totalorder %s97, %s100
    %p106 = scmp.eq.s32.totalorder %s12, 0
    %p107 = por %p105, %p106
    %p108 = scmp.ne.s32.totalorder %s97, %s100
    %p109 = scmp.eq.s32.totalorder %s17, 1
    %p110 = por %p108, %p109
    %p111 = scmp.ne.s32.totalorder %s100, %s101
    %p112 = scmp.eq.s32.totalorder %s17, 0
    %p113 = por %p111, %p112
    %p114 = scmp.ne.s32.totalorder %s100, %s101
    %p115 = scmp.eq.s32.totalorder %s18, 1
    %p116 = por %p114, %p115
    %p118 = scmp.ne.s32.totalorder %s101, %s117
    %p119 = scmp.eq.s32.totalorder %s18, 0
    %p120 = por %p118, %p119
    %s121 = ssub.s32 %s19, %s38
    %p122 = scmp.eq.s32.totalorder %s121, 0
    %s124 = sadd.s32 %s123, 1
    %s125 = scalar_select %p122, %s123, %s124
    %p128 = pneg %p122
    %p129 = scmp.eq.s32.totalorder %s12, 1
    %p130 = por %p128, %p129
    %p131 = scmp.ne.s32.totalorder %s123, %s126
    %p132 = scmp.eq.s32.totalorder %s12, 0
    %p133 = por %p131, %p132
    %p134 = scmp.ne.s32.totalorder %s123, %s126
    %p135 = scmp.eq.s32.totalorder %s17, 1
    %p136 = por %p134, %p135
    %p137 = scmp.ne.s32.totalorder %s126, %s127
    %p138 = scmp.eq.s32.totalorder %s17, 0
    %p139 = por %p137, %p138
    %p140 = scmp.ne.s32.totalorder %s126, %s127
    %p141 = scmp.eq.s32.totalorder %s18, 1
    %p142 = por %p140, %p141
    %p144 = scmp.ne.s32.totalorder %s127, %s143
    %p145 = scmp.eq.s32.totalorder %s18, 0
    %p146 = por %p144, %p145
    %s147 = ssub.s32 %s20, %s34
    %s148 = ssub.s32 %s19, %s38
    %s149 = sor.u32 %s147, %s148
    %s150 = ssub.s32 %s21, %s30
    %s151 = sor.u32 %s149, %s150
    %p152 = scmp.eq.s32.totalorder %s151, 0
    %s154 = sadd.s32 %s153, 1
    %s155 = scalar_select %p152, %s153, %s154
    %p158 = pneg %p152
    %p159 = scmp.eq.s32.totalorder %s12, 1
    %p160 = por %p158, %p159
    %p161 = scmp.ne.s32.totalorder %s153, %s156
    %p162 = scmp.eq.s32.totalorder %s12, 0
    %p163 = por %p161, %p162
    %p164 = scmp.ne.s32.totalorder %s153, %s156
    %p165 = scmp.eq.s32.totalorder %s17, 1
    %p166 = por %p164, %p165
    %p167 = scmp.ne.s32.totalorder %s156, %s157
    %p168 = scmp.eq.s32.totalorder %s17, 0
    %p169 = por %p167, %p168
    %p170 = scmp.ne.s32.totalorder %s156, %s157
    %p171 = scmp.eq.s32.totalorder %s18, 1
    %p172 = por %p170, %p171
    %p174 = scmp.ne.s32.totalorder %s157, %s173
    %p175 = scmp.eq.s32.totalorder %s18, 0
    %p176 = por %p174, %p175
    %s177 = ssub.s32 %s20, %s34
    %s178 = ssub.s32 %s19, %s38
    %s179 = sor.u32 %s177, %s178
    %s180 = ssub.s32 %s21, %s30
    %s181 = sor.u32 %s179, %s180
    %p182 = scmp.eq.s32.totalorder %s181, 0
    %s184 = sadd.s32 %s183, 1
    %s185 = scalar_select %p182, %s183, %s184
    %p188 = pneg %p182
    %p189 = scmp.eq.s32.totalorder %s12, 1
    %p190 = por %p188, %p189
    %p191 = scmp.ne.s32.totalorder %s183, %s186
    %p192 = scmp.eq.s32.totalorder %s12, 0
    %p193 = por %p191, %p192
    %p194 = scmp.ne.s32.totalorder %s183, %s186
    %p195 = scmp.eq.s32.totalorder %s17, 1
    %p196 = por %p194, %p195
    %p197 = scmp.ne.s32.totalorder %s186, %s187
    %p198 = scmp.eq.s32.totalorder %s17, 0
    %p199 = por %p197, %p198
    %p200 = scmp.ne.s32.totalorder %s186, %s187
    %p201 = scmp.eq.s32.totalorder %s18, 1
    %p202 = por %p200, %p201
    %p204 = scmp.ne.s32.totalorder %s187, %s203
    %p205 = scmp.eq.s32.totalorder %s18, 0
    %p206 = por %p204, %p205
    %p207 = scmp.le.s32.totalorder 1, %s12
    %p208 = scmp.lt.s32.totalorder %s12, 3
    %p209 = pnand %p207, %p208
    %p210 = pneg %p209
    // Predicated region
    $region9: #{spectral_conv_forward.1} parent=5 // pred_check
      _
    $region10: #{spectral_conv_forward.1} parent=5 // pred_check_branch
      %212 = sbr.rel (%p209) target = $region12
    $region11: #{spectral_conv_forward.1} parent=5 // pred_region
      %s213 = ssub.s32 %s12, 1
      // Predicated region
      $region13: #{spectral_conv_forward.1} parent=11 // pred_check
        %p214 = pneg %p113
      $region14: #{spectral_conv_forward.1} parent=11 // pred_check_branch
        %216 = sbr.rel (%p214) target = $region16
      $region15: #{spectral_conv_forward.1} parent=11 // pred_region
        %p217 = scmp.lt.s32.totalorder %s22, 0
        %s218 = scalar_select %p217, %s22, 0
        %s219 = smul.addr %s218, 2
        %s220 = smul.addr %s219, 4
        %s221 = scalar_lea.vmem %s2, %s220
      $region16: #{spectral_conv_forward.1} parent=11 // pred_fallthru
        _
      // Predicated region
      $region17: #{spectral_conv_forward.1} parent=11 // pred_check
        %p222 = pneg %p139
      $region18: #{spectral_conv_forward.1} parent=11 // pred_check_branch
        %224 = sbr.rel (%p222) target = $region20
      $region19: #{spectral_conv_forward.1} parent=11 // pred_region
        %p225 = scmp.lt.s32.totalorder %s22, 0
        %s226 = scalar_select %p225, %s22, 0
        %s227 = smul.addr %s226, 2
        %s228 = smul.addr %s227, 4
        %s229 = scalar_lea.vmem %s3, %s228
      $region20: #{spectral_conv_forward.1} parent=11 // pred_fallthru
        _
    $region12: #{spectral_conv_forward.1} parent=5 // pred_fallthru
      _
    %p230 = scmp.lt.s32.totalorder %s12, 2
    // Predicated region
    $region21: #{spectral_conv_forward.1} parent=5 // pred_check
      %p231 = pneg %p230
    $region22: #{spectral_conv_forward.1} parent=5 // pred_check_branch
      %233 = sbr.rel (%p231) target = $region24
    $region23: #{spectral_conv_forward.1} parent=5 // pred_region
      // Predicated region
      $region25: #{spectral_conv_forward.1} parent=23 // pred_check
        %p234 = pneg %p53
      $region26: #{spectral_conv_forward.1} parent=23 // pred_check_branch
        %236 = sbr.rel (%p234) target = $region28
      $region27: #{spectral_conv_forward.1} parent=23 // pred_region
        %p237 = scmp.lt.s32.totalorder %s20, 1
        %s238 = scalar_select %p237, %s20, 1
        %p239 = scmp.lt.s32.totalorder %s21, 0
        %s240 = scalar_select %p239, %s21, 0
        %s241 = smul.addr %s240, 2
        %s242 = smul.addr %s238, 8
        %s243 = sadd.s32 %s241, %s242
        %s244 = smul.addr %s243, 8
        %s245 = scalar_lea.vmem %s0, %s244
      $region28: #{spectral_conv_forward.1} parent=23 // pred_fallthru
        _
      // Predicated region
      $region29: #{spectral_conv_forward.1} parent=23 // pred_check
        %p246 = pneg %p81
      $region30: #{spectral_conv_forward.1} parent=23 // pred_check_branch
        %248 = sbr.rel (%p246) target = $region32
      $region31: #{spectral_conv_forward.1} parent=23 // pred_region
        %p249 = scmp.lt.s32.totalorder %s20, 1
        %s250 = scalar_select %p249, %s20, 1
        %p251 = scmp.lt.s32.totalorder %s21, 0
        %s252 = scalar_select %p251, %s21, 0
        %s253 = smul.addr %s252, 2
        %s254 = smul.addr %s250, 8
        %s255 = sadd.s32 %s253, %s254
        %s256 = smul.addr %s255, 8
        %s257 = scalar_lea.vmem %s1, %s256
      $region32: #{spectral_conv_forward.1} parent=23 // pred_fallthru
        _
    $region24: #{spectral_conv_forward.1} parent=5 // pred_fallthru
      _
    %p258 = scmp.le.s32.totalorder 1, %s12
    %p259 = scmp.lt.s32.totalorder %s12, 3
    %p260 = pnand %p258, %p259
    %p261 = pneg %p260
    // Predicated region
    $region33: #{spectral_conv_forward.1} parent=5 // pred_check
      _
    $region34: #{spectral_conv_forward.1} parent=5 // pred_check_branch
      %263 = sbr.rel (%p260) target = $region36
    $region35: #{spectral_conv_forward.1} parent=5 // pred_region
      %s264 = ssub.s32 %s12, 1
      %p265 = scmp.lt.s32.totalorder %s23, 1
      %s266 = scalar_select %p265, %s23, 1
      %p267 = scmp.lt.s32.totalorder %s24, 0
      %s268 = scalar_select %p267, %s24, 0
      %s269 = smul.addr %s268, 2
      %s270 = smul.addr %s266, 8
      %s271 = sadd.s32 %s269, %s270
      %s272 = smul.addr %s271, 8
      %s273 = scalar_lea.vmem %s0, %s272
      %p274 = pneg %p59
      %p275 = pneg %p56
      %p276 = scmp.lt.s32.totalorder %s23, 1
      %s277 = scalar_select %p276, %s23, 1
      %p278 = scmp.lt.s32.totalorder %s24, 0
      %s279 = scalar_select %p278, %s24, 0
      %s280 = smul.addr %s279, 2
      %s281 = smul.addr %s277, 8
      %s282 = sadd.s32 %s280, %s281
      %s283 = smul.addr %s282, 8
      %s284 = scalar_lea.vmem %s1, %s283
      %p285 = pneg %p87
      %p286 = pneg %p84
      %p287 = scmp.lt.s32.totalorder %s22, 0
      %s288 = scalar_select %p287, %s22, 0
      %s289 = smul.addr %s288, 2
      %s290 = smul.addr %s289, 4
      %s291 = scalar_lea.vmem %s2, %s290
      %p292 = pneg %p113
      %p293 = pneg %p110
      %p294 = scmp.lt.s32.totalorder %s22, 0
      %s295 = scalar_select %p294, %s22, 0
      %s296 = smul.addr %s295, 2
      %s297 = smul.addr %s296, 4
      %s298 = scalar_lea.vmem %s3, %s297
      %p299 = pneg %p139
      %p300 = pneg %p136
      %p301 = pneg %p169
      %p302 = pneg %p166
      %s303 = smul.u32 4, %s22
      %p304 = scmp.lt.s32.totalorder %s23, 1
      %s305 = scalar_select %p304, %s23, 1
      %p306 = scmp.lt.s32.totalorder %s303, 3
      %s307 = scalar_select %p306, %s303, 3
      %p308 = scmp.lt.s32.totalorder %s24, 0
      %s309 = scalar_select %p308, %s24, 0
      %s310 = smul.addr %s309, 2
      %s311 = smul.addr %s307, 2
      %s312 = sadd.s32 %s310, %s311
      %s313 = smul.addr %s305, 8
      %s314 = sadd.s32 %s312, %s313
      %s315 = smul.addr %s314, 8
      %s316 = scalar_lea.vmem %s4, %s315
      %p317 = pneg %p199
      %p318 = pneg %p196
      %s319 = smul.u32 4, %s22
      %p320 = scmp.lt.s32.totalorder %s23, 1
      %s321 = scalar_select %p320, %s23, 1
      %p322 = scmp.lt.s32.totalorder %s319, 3
      %s323 = scalar_select %p322, %s319, 3
      %p324 = scmp.lt.s32.totalorder %s24, 0
      %s325 = scalar_select %p324, %s24, 0
      %s326 = smul.addr %s325, 2
      %s327 = smul.addr %s323, 2
      %s328 = sadd.s32 %s326, %s327
      %s329 = smul.addr %s321, 8
      %s330 = sadd.s32 %s328, %s329
      %s331 = smul.addr %s330, 8
      %s332 = scalar_lea.vmem %s5, %s331
      %p333 = scmp.lt.s32.totalorder %s23, 1
      %s334 = scalar_select %p333, %s23, 1
      %p335 = scmp.lt.s32.totalorder %s24, 0
      %s336 = scalar_select %p335, %s24, 0
      %s337 = smul.addr %s336, 2
      %s338 = smul.addr %s334, 8
      %s339 = sadd.s32 %s337, %s338
      %s340 = smul.addr %s339, 8
      %s341 = scalar_lea.vmem %s0, %s340
      %p342 = scmp.lt.s32.totalorder %s23, 1
      %s343 = scalar_select %p342, %s23, 1
      %p344 = scmp.lt.s32.totalorder %s24, 0
      %s345 = scalar_select %p344, %s24, 0
      %s346 = smul.addr %s345, 2
      %s347 = smul.addr %s343, 8
      %s348 = sadd.s32 %s346, %s347
      %s349 = smul.addr %s348, 8
      %s350 = scalar_lea.vmem %s1, %s349
      %p351 = scmp.lt.s32.totalorder %s22, 0
      %s352 = scalar_select %p351, %s22, 0
      %s353 = smul.addr %s352, 2
      %s354 = smul.addr %s353, 4
      %s355 = scalar_lea.vmem %s2, %s354
      %p356 = scmp.lt.s32.totalorder %s22, 0
      %s357 = scalar_select %p356, %s22, 0
      %s358 = smul.addr %s357, 2
      %s359 = smul.addr %s358, 4
      %s360 = scalar_lea.vmem %s3, %s359
      %s361 = smul.u32 4, %s22
      %p362 = scmp.lt.s32.totalorder %s23, 1
      %s363 = scalar_select %p362, %s23, 1
      %p364 = scmp.lt.s32.totalorder %s361, 3
      %s365 = scalar_select %p364, %s361, 3
      %p366 = scmp.lt.s32.totalorder %s24, 0
      %s367 = scalar_select %p366, %s24, 0
      %s368 = smul.addr %s367, 2
      %s369 = smul.addr %s365, 2
      %s370 = sadd.s32 %s368, %s369
      %s371 = smul.addr %s363, 8
      %s372 = sadd.s32 %s370, %s371
      %s373 = smul.addr %s372, 8
      %s374 = scalar_lea.vmem %s4, %s373
      %s375 = smul.u32 4, %s22
      %s376 = smul.u32 4, %s22
      %p377 = scmp.lt.s32.totalorder %s23, 1
      %s378 = scalar_select %p377, %s23, 1
      %p379 = scmp.lt.s32.totalorder %s376, 3
      %s380 = scalar_select %p379, %s376, 3
      %p381 = scmp.lt.s32.totalorder %s24, 0
      %s382 = scalar_select %p381, %s24, 0
      %s383 = smul.addr %s382, 2
      %s384 = smul.addr %s380, 2
      %s385 = sadd.s32 %s383, %s384
      %s386 = smul.addr %s378, 8
      %s387 = sadd.s32 %s385, %s386
      %s388 = smul.addr %s387, 8
      %s389 = scalar_lea.vmem %s5, %s388
      %s390 = smul.u32 4, %s22
      %s391 = smul.u32 0, 2
      %s392 = smul.addr %s391, 8
      %s393 = scalar_lea.vmem %s341, %s392
      %v394 = vld [vmem:[%s393] sm:$0xff]
      %v395 = vld [vmem:[%s393 + $0x8] sm:$0xff]
      %s396 = smul.addr %s391, 8
      %s397 = scalar_lea.vmem %s350, %s396
      %v398 = vld [vmem:[%s397] sm:$0xff]
      %v399 = vld [vmem:[%s397 + $0x8] sm:$0xff]
      %v400 = vld [vmem:[%s355] ss:$4 sm:$0x3]
      %v401 = vld [vmem:[%s360] ss:$4 sm:$0x3]
      %v403 = vperm.slane %v400, 0
      %v404 = vperm.slane %v400, 1
      %v407 = vmul.f32 %v394, %v403
      %v408 = vmul.f32 %v395, %v404
      %v410 = vperm.slane %v401, 0
      %v411 = vperm.slane %v401, 1
      %v414 = vmul.f32 %v398, %v410
      %v415 = vmul.f32 %v399, %v411
      %v416 = vsub.f32 %v407, %v414
      %v417 = vsub.f32 %v408, %v415
      %v418 = vmul.f32 %v394, %v410
      %v419 = vmul.f32 %v395, %v411
      %v420 = vmul.f32 %v398, %v403
      %v421 = vmul.f32 %v399, %v404
      %v422 = vadd.f32 %v418, %v420
      %v423 = vadd.f32 %v419, %v421
      %s424 = sadd.s32 %s391, 2
      %s425 = smul.addr %s424, 8
      %s426 = scalar_lea.vmem %s341, %s425
      %v427 = vld [vmem:[%s426] sm:$0xff]
      %v428 = vld [vmem:[%s426 + $0x8] sm:$0xff]
      %s429 = smul.addr %s424, 8
      %s430 = scalar_lea.vmem %s350, %s429
      %v431 = vld [vmem:[%s430] sm:$0xff]
      %v432 = vld [vmem:[%s430 + $0x8] sm:$0xff]
      %s433 = scalar_lea.vmem %s355, 8
      %v434 = vld [vmem:[%s433] ss:$4 sm:$0x3]
      %s435 = scalar_lea.vmem %s360, 8
      %v436 = vld [vmem:[%s435] ss:$4 sm:$0x3]
      %v438 = vperm.slane %v434, 0
      %v439 = vperm.slane %v434, 1
      %v442 = vmul.f32 %v427, %v438
      %v443 = vmul.f32 %v428, %v439
      %v444 = vadd.f32 %v416, %v442
      %v445 = vadd.f32 %v417, %v443
      %v447 = vperm.slane %v436, 0
      %v448 = vperm.slane %v436, 1
      %v451 = vmul.f32 %v431, %v447
      %v452 = vmul.f32 %v432, %v448
      %v453 = vsub.f32 %v444, %v451
      %v454 = vsub.f32 %v445, %v452
      %v455 = vmul.f32 %v427, %v447
      %v456 = vmul.f32 %v428, %v448
      %v457 = vadd.f32 %v422, %v455
      %v458 = vadd.f32 %v423, %v456
      %v459 = vmul.f32 %v431, %v438
      %v460 = vmul.f32 %v432, %v439
      %v461 = vadd.f32 %v457, %v459
      %v462 = vadd.f32 %v458, %v460
      %s463 = sadd.s32 %s391, 4
      %s464 = smul.addr %s463, 8
      %s465 = scalar_lea.vmem %s341, %s464
      %v466 = vld [vmem:[%s465] sm:$0xff]
      %v467 = vld [vmem:[%s465 + $0x8] sm:$0xff]
      %s468 = smul.addr %s463, 8
      %s469 = scalar_lea.vmem %s350, %s468
      %v470 = vld [vmem:[%s469] sm:$0xff]
      %v471 = vld [vmem:[%s469 + $0x8] sm:$0xff]
      %s472 = scalar_lea.vmem %s355, 16
      %v473 = vld [vmem:[%s472] ss:$4 sm:$0x3]
      %s474 = scalar_lea.vmem %s360, 16
      %v475 = vld [vmem:[%s474] ss:$4 sm:$0x3]
      %v477 = vperm.slane %v473, 0
      %v478 = vperm.slane %v473, 1
      %v481 = vmul.f32 %v466, %v477
      %v482 = vmul.f32 %v467, %v478
      %v483 = vadd.f32 %v453, %v481
      %v484 = vadd.f32 %v454, %v482
      %v486 = vperm.slane %v475, 0
      %v487 = vperm.slane %v475, 1
      %v490 = vmul.f32 %v470, %v486
      %v491 = vmul.f32 %v471, %v487
      %v492 = vsub.f32 %v483, %v490
      %v493 = vsub.f32 %v484, %v491
      %v494 = vmul.f32 %v466, %v486
      %v495 = vmul.f32 %v467, %v487
      %v496 = vadd.f32 %v461, %v494
      %v497 = vadd.f32 %v462, %v495
      %v498 = vmul.f32 %v470, %v477
      %v499 = vmul.f32 %v471, %v478
      %v500 = vadd.f32 %v496, %v498
      %v501 = vadd.f32 %v497, %v499
      %s502 = sadd.s32 %s391, 6
      %s503 = smul.addr %s502, 8
      %s504 = scalar_lea.vmem %s341, %s503
      %v505 = vld [vmem:[%s504] sm:$0xff]
      %v506 = vld [vmem:[%s504 + $0x8] sm:$0xff]
      %s507 = smul.addr %s502, 8
      %s508 = scalar_lea.vmem %s350, %s507
      %v509 = vld [vmem:[%s508] sm:$0xff]
      %v510 = vld [vmem:[%s508 + $0x8] sm:$0xff]
      %s511 = scalar_lea.vmem %s355, 24
      %v512 = vld [vmem:[%s511] ss:$4 sm:$0x3]
      %s513 = scalar_lea.vmem %s360, 24
      %v514 = vld [vmem:[%s513] ss:$4 sm:$0x3]
      %v516 = vperm.slane %v512, 0
      %v517 = vperm.slane %v512, 1
      %v520 = vmul.f32 %v505, %v516
      %v521 = vmul.f32 %v506, %v517
      %v522 = vadd.f32 %v492, %v520
      %v523 = vadd.f32 %v493, %v521
      %v525 = vperm.slane %v514, 0
      %v526 = vperm.slane %v514, 1
      %v529 = vmul.f32 %v509, %v525
      %v530 = vmul.f32 %v510, %v526
      %v531 = vsub.f32 %v522, %v529
      %v532 = vsub.f32 %v523, %v530
      %v533 = vmul.f32 %v505, %v525
      %v534 = vmul.f32 %v506, %v526
      %v535 = vadd.f32 %v500, %v533
      %v536 = vadd.f32 %v501, %v534
      %v537 = vmul.f32 %v509, %v516
      %v538 = vmul.f32 %v510, %v517
      %v539 = vadd.f32 %v535, %v537
      %v540 = vadd.f32 %v536, %v538
      %s541 = smul.addr %s391, 8
      %s542 = scalar_lea.vmem %s374, %s541
      %543 = vst [vmem:[%s542] sm:$0xff] %v531
      %544 = vst [vmem:[%s542 + $0x8] sm:$0xff] %v532
      %s545 = smul.addr %s391, 8
      %s546 = scalar_lea.vmem %s389, %s545
      %547 = vst [vmem:[%s546] sm:$0xff] %v539
      %548 = vst [vmem:[%s546 + $0x8] sm:$0xff] %v540
      %v549 = vld [vmem:[%s393] sm:$0xff]
      %v550 = vld [vmem:[%s393 + $0x8] sm:$0xff]
      %v551 = vld [vmem:[%s397] sm:$0xff]
      %v552 = vld [vmem:[%s397 + $0x8] sm:$0xff]
      %s553 = scalar_lea.vmem %s355, 1
      %v554 = vld [vmem:[%s553] ss:$4 sm:$0x3]
      %s555 = scalar_lea.vmem %s360, 1
      %v556 = vld [vmem:[%s555] ss:$4 sm:$0x3]
      %v558 = vperm.slane %v554, 0
      %v559 = vperm.slane %v554, 1
      %v562 = vmul.f32 %v549, %v558
      %v563 = vmul.f32 %v550, %v559
      %v565 = vperm.slane %v556, 0
      %v566 = vperm.slane %v556, 1
      %v569 = vmul.f32 %v551, %v565
      %v570 = vmul.f32 %v552, %v566
      %v571 = vsub.f32 %v562, %v569
      %v572 = vsub.f32 %v563, %v570
      %v573 = vmul.f32 %v549, %v565
      %v574 = vmul.f32 %v550, %v566
      %v575 = vmul.f32 %v551, %v558
      %v576 = vmul.f32 %v552, %v559
      %v577 = vadd.f32 %v573, %v575
      %v578 = vadd.f32 %v574, %v576
      %v579 = vld [vmem:[%s426] sm:$0xff]
      %v580 = vld [vmem:[%s426 + $0x8] sm:$0xff]
      %v581 = vld [vmem:[%s430] sm:$0xff]
      %v582 = vld [vmem:[%s430 + $0x8] sm:$0xff]
      %s583 = scalar_lea.vmem %s433, 1
      %v584 = vld [vmem:[%s583] ss:$4 sm:$0x3]
      %s585 = scalar_lea.vmem %s435, 1
      %v586 = vld [vmem:[%s585] ss:$4 sm:$0x3]
      %v588 = vperm.slane %v584, 0
      %v589 = vperm.slane %v584, 1
      %v592 = vmul.f32 %v579, %v588
      %v593 = vmul.f32 %v580, %v589
      %v594 = vadd.f32 %v571, %v592
      %v595 = vadd.f32 %v572, %v593
      %v597 = vperm.slane %v586, 0
      %v598 = vperm.slane %v586, 1
      %v601 = vmul.f32 %v581, %v597
      %v602 = vmul.f32 %v582, %v598
      %v603 = vsub.f32 %v594, %v601
      %v604 = vsub.f32 %v595, %v602
      %v605 = vmul.f32 %v579, %v597
      %v606 = vmul.f32 %v580, %v598
      %v607 = vadd.f32 %v577, %v605
      %v608 = vadd.f32 %v578, %v606
      %v609 = vmul.f32 %v581, %v588
      %v610 = vmul.f32 %v582, %v589
      %v611 = vadd.f32 %v607, %v609
      %v612 = vadd.f32 %v608, %v610
      %v613 = vld [vmem:[%s465] sm:$0xff]
      %v614 = vld [vmem:[%s465 + $0x8] sm:$0xff]
      %v615 = vld [vmem:[%s469] sm:$0xff]
      %v616 = vld [vmem:[%s469 + $0x8] sm:$0xff]
      %s617 = scalar_lea.vmem %s472, 1
      %v618 = vld [vmem:[%s617] ss:$4 sm:$0x3]
      %s619 = scalar_lea.vmem %s474, 1
      %v620 = vld [vmem:[%s619] ss:$4 sm:$0x3]
      %v622 = vperm.slane %v618, 0
      %v623 = vperm.slane %v618, 1
      %v626 = vmul.f32 %v613, %v622
      %v627 = vmul.f32 %v614, %v623
      %v628 = vadd.f32 %v603, %v626
      %v629 = vadd.f32 %v604, %v627
      %v631 = vperm.slane %v620, 0
      %v632 = vperm.slane %v620, 1
      %v635 = vmul.f32 %v615, %v631
      %v636 = vmul.f32 %v616, %v632
      %v637 = vsub.f32 %v628, %v635
      %v638 = vsub.f32 %v629, %v636
      %v639 = vmul.f32 %v613, %v631
      %v640 = vmul.f32 %v614, %v632
      %v641 = vadd.f32 %v611, %v639
      %v642 = vadd.f32 %v612, %v640
      %v643 = vmul.f32 %v615, %v622
      %v644 = vmul.f32 %v616, %v623
      %v645 = vadd.f32 %v641, %v643
      %v646 = vadd.f32 %v642, %v644
      %v647 = vld [vmem:[%s504] sm:$0xff]
      %v648 = vld [vmem:[%s504 + $0x8] sm:$0xff]
      %v649 = vld [vmem:[%s508] sm:$0xff]
      %v650 = vld [vmem:[%s508 + $0x8] sm:$0xff]
      %s651 = scalar_lea.vmem %s511, 1
      %v652 = vld [vmem:[%s651] ss:$4 sm:$0x3]
      %s653 = scalar_lea.vmem %s513, 1
      %v654 = vld [vmem:[%s653] ss:$4 sm:$0x3]
      %v656 = vperm.slane %v652, 0
      %v657 = vperm.slane %v652, 1
      %v660 = vmul.f32 %v647, %v656
      %v661 = vmul.f32 %v648, %v657
      %v662 = vadd.f32 %v637, %v660
      %v663 = vadd.f32 %v638, %v661
      %v665 = vperm.slane %v654, 0
      %v666 = vperm.slane %v654, 1
      %v669 = vmul.f32 %v649, %v665
      %v670 = vmul.f32 %v650, %v666
      %v671 = vsub.f32 %v662, %v669
      %v672 = vsub.f32 %v663, %v670
      %v673 = vmul.f32 %v647, %v665
      %v674 = vmul.f32 %v648, %v666
      %v675 = vadd.f32 %v645, %v673
      %v676 = vadd.f32 %v646, %v674
      %v677 = vmul.f32 %v649, %v656
      %v678 = vmul.f32 %v650, %v657
      %v679 = vadd.f32 %v675, %v677
      %v680 = vadd.f32 %v676, %v678
      %s681 = smul.addr %s424, 8
      %s682 = scalar_lea.vmem %s374, %s681
      %683 = vst [vmem:[%s682] sm:$0xff] %v671
      %684 = vst [vmem:[%s682 + $0x8] sm:$0xff] %v672
      %s685 = smul.addr %s424, 8
      %s686 = scalar_lea.vmem %s389, %s685
      %687 = vst [vmem:[%s686] sm:$0xff] %v679
      %688 = vst [vmem:[%s686 + $0x8] sm:$0xff] %v680
      %v689 = vld [vmem:[%s393] sm:$0xff]
      %v690 = vld [vmem:[%s393 + $0x8] sm:$0xff]
      %v691 = vld [vmem:[%s397] sm:$0xff]
      %v692 = vld [vmem:[%s397 + $0x8] sm:$0xff]
      %s693 = scalar_lea.vmem %s355, 2
      %v694 = vld [vmem:[%s693] ss:$4 sm:$0x3]
      %s695 = scalar_lea.vmem %s360, 2
      %v696 = vld [vmem:[%s695] ss:$4 sm:$0x3]
      %v698 = vperm.slane %v694, 0
      %v699 = vperm.slane %v694, 1
      %v702 = vmul.f32 %v689, %v698
      %v703 = vmul.f32 %v690, %v699
      %v705 = vperm.slane %v696, 0
      %v706 = vperm.slane %v696, 1
      %v709 = vmul.f32 %v691, %v705
      %v710 = vmul.f32 %v692, %v706
      %v711 = vsub.f32 %v702, %v709
      %v712 = vsub.f32 %v703, %v710
      %v713 = vmul.f32 %v689, %v705
      %v714 = vmul.f32 %v690, %v706
      %v715 = vmul.f32 %v691, %v698
      %v716 = vmul.f32 %v692, %v699
      %v717 = vadd.f32 %v713, %v715
      %v718 = vadd.f32 %v714, %v716
      %v719 = vld [vmem:[%s426] sm:$0xff]
      %v720 = vld [vmem:[%s426 + $0x8] sm:$0xff]
      %v721 = vld [vmem:[%s430] sm:$0xff]
      %v722 = vld [vmem:[%s430 + $0x8] sm:$0xff]
      %s723 = scalar_lea.vmem %s433, 2
      %v724 = vld [vmem:[%s723] ss:$4 sm:$0x3]
      %s725 = scalar_lea.vmem %s435, 2
      %v726 = vld [vmem:[%s725] ss:$4 sm:$0x3]
      %v728 = vperm.slane %v724, 0
      %v729 = vperm.slane %v724, 1
      %v732 = vmul.f32 %v719, %v728
      %v733 = vmul.f32 %v720, %v729
      %v734 = vadd.f32 %v711, %v732
      %v735 = vadd.f32 %v712, %v733
      %v737 = vperm.slane %v726, 0
      %v738 = vperm.slane %v726, 1
      %v741 = vmul.f32 %v721, %v737
      %v742 = vmul.f32 %v722, %v738
      %v743 = vsub.f32 %v734, %v741
      %v744 = vsub.f32 %v735, %v742
      %v745 = vmul.f32 %v719, %v737
      %v746 = vmul.f32 %v720, %v738
      %v747 = vadd.f32 %v717, %v745
      %v748 = vadd.f32 %v718, %v746
      %v749 = vmul.f32 %v721, %v728
      %v750 = vmul.f32 %v722, %v729
      %v751 = vadd.f32 %v747, %v749
      %v752 = vadd.f32 %v748, %v750
      %v753 = vld [vmem:[%s465] sm:$0xff]
      %v754 = vld [vmem:[%s465 + $0x8] sm:$0xff]
      %v755 = vld [vmem:[%s469] sm:$0xff]
      %v756 = vld [vmem:[%s469 + $0x8] sm:$0xff]
      %s757 = scalar_lea.vmem %s472, 2
      %v758 = vld [vmem:[%s757] ss:$4 sm:$0x3]
      %s759 = scalar_lea.vmem %s474, 2
      %v760 = vld [vmem:[%s759] ss:$4 sm:$0x3]
      %v762 = vperm.slane %v758, 0
      %v763 = vperm.slane %v758, 1
      %v766 = vmul.f32 %v753, %v762
      %v767 = vmul.f32 %v754, %v763
      %v768 = vadd.f32 %v743, %v766
      %v769 = vadd.f32 %v744, %v767
      %v771 = vperm.slane %v760, 0
      %v772 = vperm.slane %v760, 1
      %v775 = vmul.f32 %v755, %v771
      %v776 = vmul.f32 %v756, %v772
      %v777 = vsub.f32 %v768, %v775
      %v778 = vsub.f32 %v769, %v776
      %v779 = vmul.f32 %v753, %v771
      %v780 = vmul.f32 %v754, %v772
      %v781 = vadd.f32 %v751, %v779
      %v782 = vadd.f32 %v752, %v780
      %v783 = vmul.f32 %v755, %v762
      %v784 = vmul.f32 %v756, %v763
      %v785 = vadd.f32 %v781, %v783
      %v786 = vadd.f32 %v782, %v784
      %v787 = vld [vmem:[%s504] sm:$0xff]
      %v788 = vld [vmem:[%s504 + $0x8] sm:$0xff]
      %v789 = vld [vmem:[%s508] sm:$0xff]
      %v790 = vld [vmem:[%s508 + $0x8] sm:$0xff]
      %s791 = scalar_lea.vmem %s511, 2
      %v792 = vld [vmem:[%s791] ss:$4 sm:$0x3]
      %s793 = scalar_lea.vmem %s513, 2
      %v794 = vld [vmem:[%s793] ss:$4 sm:$0x3]
      %v796 = vperm.slane %v792, 0
      %v797 = vperm.slane %v792, 1
      %v800 = vmul.f32 %v787, %v796
      %v801 = vmul.f32 %v788, %v797
      %v802 = vadd.f32 %v777, %v800
      %v803 = vadd.f32 %v778, %v801
      %v805 = vperm.slane %v794, 0
      %v806 = vperm.slane %v794, 1
      %v809 = vmul.f32 %v789, %v805
      %v810 = vmul.f32 %v790, %v806
      %v811 = vsub.f32 %v802, %v809
      %v812 = vsub.f32 %v803, %v810
      %v813 = vmul.f32 %v787, %v805
      %v814 = vmul.f32 %v788, %v806
      %v815 = vadd.f32 %v785, %v813
      %v816 = vadd.f32 %v786, %v814
      %v817 = vmul.f32 %v789, %v796
      %v818 = vmul.f32 %v790, %v797
      %v819 = vadd.f32 %v815, %v817
      %v820 = vadd.f32 %v816, %v818
      %s821 = smul.addr %s463, 8
      %s822 = scalar_lea.vmem %s374, %s821
      %823 = vst [vmem:[%s822] sm:$0xff] %v811
      %824 = vst [vmem:[%s822 + $0x8] sm:$0xff] %v812
      %s825 = smul.addr %s463, 8
      %s826 = scalar_lea.vmem %s389, %s825
      %827 = vst [vmem:[%s826] sm:$0xff] %v819
      %828 = vst [vmem:[%s826 + $0x8] sm:$0xff] %v820
      %v829 = vld [vmem:[%s393] sm:$0xff]
      %v830 = vld [vmem:[%s393 + $0x8] sm:$0xff]
      %v831 = vld [vmem:[%s397] sm:$0xff]
      %v832 = vld [vmem:[%s397 + $0x8] sm:$0xff]
      %s833 = scalar_lea.vmem %s355, 3
      %v834 = vld [vmem:[%s833] ss:$4 sm:$0x3]
      %s835 = scalar_lea.vmem %s360, 3
      %v836 = vld [vmem:[%s835] ss:$4 sm:$0x3]
      %v838 = vperm.slane %v834, 0
      %v839 = vperm.slane %v834, 1
      %v842 = vmul.f32 %v829, %v838
      %v843 = vmul.f32 %v830, %v839
      %v845 = vperm.slane %v836, 0
      %v846 = vperm.slane %v836, 1
      %v849 = vmul.f32 %v831, %v845
      %v850 = vmul.f32 %v832, %v846
      %v851 = vsub.f32 %v842, %v849
      %v852 = vsub.f32 %v843, %v850
      %v853 = vmul.f32 %v829, %v845
      %v854 = vmul.f32 %v830, %v846
      %v855 = vmul.f32 %v831, %v838
      %v856 = vmul.f32 %v832, %v839
      %v857 = vadd.f32 %v853, %v855
      %v858 = vadd.f32 %v854, %v856
      %v859 = vld [vmem:[%s426] sm:$0xff]
      %v860 = vld [vmem:[%s426 + $0x8] sm:$0xff]
      %v861 = vld [vmem:[%s430] sm:$0xff]
      %v862 = vld [vmem:[%s430 + $0x8] sm:$0xff]
      %s863 = scalar_lea.vmem %s433, 3
      %v864 = vld [vmem:[%s863] ss:$4 sm:$0x3]
      %s865 = scalar_lea.vmem %s435, 3
      %v866 = vld [vmem:[%s865] ss:$4 sm:$0x3]
      %v868 = vperm.slane %v864, 0
      %v869 = vperm.slane %v864, 1
      %v872 = vmul.f32 %v859, %v868
      %v873 = vmul.f32 %v860, %v869
      %v874 = vadd.f32 %v851, %v872
      %v875 = vadd.f32 %v852, %v873
      %v877 = vperm.slane %v866, 0
      %v878 = vperm.slane %v866, 1
      %v881 = vmul.f32 %v861, %v877
      %v882 = vmul.f32 %v862, %v878
      %v883 = vsub.f32 %v874, %v881
      %v884 = vsub.f32 %v875, %v882
      %v885 = vmul.f32 %v859, %v877
      %v886 = vmul.f32 %v860, %v878
      %v887 = vadd.f32 %v857, %v885
      %v888 = vadd.f32 %v858, %v886
      %v889 = vmul.f32 %v861, %v868
      %v890 = vmul.f32 %v862, %v869
      %v891 = vadd.f32 %v887, %v889
      %v892 = vadd.f32 %v888, %v890
      %v893 = vld [vmem:[%s465] sm:$0xff]
      %v894 = vld [vmem:[%s465 + $0x8] sm:$0xff]
      %v895 = vld [vmem:[%s469] sm:$0xff]
      %v896 = vld [vmem:[%s469 + $0x8] sm:$0xff]
      %s897 = scalar_lea.vmem %s472, 3
      %v898 = vld [vmem:[%s897] ss:$4 sm:$0x3]
      %s899 = scalar_lea.vmem %s474, 3
      %v900 = vld [vmem:[%s899] ss:$4 sm:$0x3]
      %v902 = vperm.slane %v898, 0
      %v903 = vperm.slane %v898, 1
      %v906 = vmul.f32 %v893, %v902
      %v907 = vmul.f32 %v894, %v903
      %v908 = vadd.f32 %v883, %v906
      %v909 = vadd.f32 %v884, %v907
      %v911 = vperm.slane %v900, 0
      %v912 = vperm.slane %v900, 1
      %v915 = vmul.f32 %v895, %v911
      %v916 = vmul.f32 %v896, %v912
      %v917 = vsub.f32 %v908, %v915
      %v918 = vsub.f32 %v909, %v916
      %v919 = vmul.f32 %v893, %v911
      %v920 = vmul.f32 %v894, %v912
      %v921 = vadd.f32 %v891, %v919
      %v922 = vadd.f32 %v892, %v920
      %v923 = vmul.f32 %v895, %v902
      %v924 = vmul.f32 %v896, %v903
      %v925 = vadd.f32 %v921, %v923
      %v926 = vadd.f32 %v922, %v924
      %v927 = vld [vmem:[%s504] sm:$0xff]
      %v928 = vld [vmem:[%s504 + $0x8] sm:$0xff]
      %v929 = vld [vmem:[%s508] sm:$0xff]
      %v930 = vld [vmem:[%s508 + $0x8] sm:$0xff]
      %s931 = scalar_lea.vmem %s511, 3
      %v932 = vld [vmem:[%s931] ss:$4 sm:$0x3]
      %s933 = scalar_lea.vmem %s513, 3
      %v934 = vld [vmem:[%s933] ss:$4 sm:$0x3]
      %v936 = vperm.slane %v932, 0
      %v937 = vperm.slane %v932, 1
      %v940 = vmul.f32 %v927, %v936
      %v941 = vmul.f32 %v928, %v937
      %v942 = vadd.f32 %v917, %v940
      %v943 = vadd.f32 %v918, %v941
      %v945 = vperm.slane %v934, 0
      %v946 = vperm.slane %v934, 1
      %v949 = vmul.f32 %v929, %v945
      %v950 = vmul.f32 %v930, %v946
      %v951 = vsub.f32 %v942, %v949
      %v952 = vsub.f32 %v943, %v950
      %v953 = vmul.f32 %v927, %v945
      %v954 = vmul.f32 %v928, %v946
      %v955 = vadd.f32 %v925, %v953
      %v956 = vadd.f32 %v926, %v954
      %v957 = vmul.f32 %v929, %v936
      %v958 = vmul.f32 %v930, %v937
      %v959 = vadd.f32 %v955, %v957
      %v960 = vadd.f32 %v956, %v958
      %s961 = smul.addr %s502, 8
      %s962 = scalar_lea.vmem %s374, %s961
      %963 = vst [vmem:[%s962] sm:$0xff] %v951
      %964 = vst [vmem:[%s962 + $0x8] sm:$0xff] %v952
      %s965 = smul.addr %s502, 8
      %s966 = scalar_lea.vmem %s389, %s965
      %967 = vst [vmem:[%s966] sm:$0xff] %v959
      %968 = vst [vmem:[%s966 + $0x8] sm:$0xff] %v960
      %s969 = smul.u32 4, %s22
      %p970 = scmp.lt.s32.totalorder %s23, 1
      %s971 = scalar_select %p970, %s23, 1
      %p972 = scmp.lt.s32.totalorder %s969, 3
      %s973 = scalar_select %p972, %s969, 3
      %p974 = scmp.lt.s32.totalorder %s24, 0
      %s975 = scalar_select %p974, %s24, 0
      %s976 = smul.addr %s975, 2
      %s977 = smul.addr %s973, 2
      %s978 = sadd.s32 %s976, %s977
      %s979 = smul.addr %s971, 8
      %s980 = sadd.s32 %s978, %s979
      %s981 = smul.addr %s980, 8
      %s982 = scalar_lea.vmem %s4, %s981
      %s983 = smul.u32 4, %s22
      %p984 = scmp.lt.s32.totalorder %s23, 1
      %s985 = scalar_select %p984, %s23, 1
      %p986 = scmp.lt.s32.totalorder %s983, 3
      %s987 = scalar_select %p986, %s983, 3
      %p988 = scmp.lt.s32.totalorder %s24, 0
      %s989 = scalar_select %p988, %s24, 0
      %s990 = smul.addr %s989, 2
      %s991 = smul.addr %s987, 2
      %s992 = sadd.s32 %s990, %s991
      %s993 = smul.addr %s985, 8
      %s994 = sadd.s32 %s992, %s993
      %s995 = smul.addr %s994, 8
      %s996 = scalar_lea.vmem %s5, %s995
      // Predicated region
      $region37: #{spectral_conv_forward.1} parent=35 // pred_check
        %p997 = pneg %p166
      $region38: #{spectral_conv_forward.1} parent=35 // pred_check_branch
        %999 = sbr.rel (%p997) target = $region40
      $region39: #{spectral_conv_forward.1} parent=35 // pred_region
        %s1000 = smul.u32 4, %s22
      $region40: #{spectral_conv_forward.1} parent=35 // pred_fallthru
        _
      // Predicated region
      $region41: #{spectral_conv_forward.1} parent=35 // pred_check
        %p1001 = pneg %p196
      $region42: #{spectral_conv_forward.1} parent=35 // pred_check_branch
        %1003 = sbr.rel (%p1001) target = $region44
      $region43: #{spectral_conv_forward.1} parent=35 // pred_region
        %s1004 = smul.u32 4, %s22
      $region44: #{spectral_conv_forward.1} parent=35 // pred_fallthru
        _
    $region36: #{spectral_conv_forward.1} parent=5 // pred_fallthru
      _
    %p1005 = scmp.le.s32.totalorder 2, %s12
    // Predicated region
    $region45: #{spectral_conv_forward.1} parent=5 // pred_check
      %p1006 = pneg %p1005
    $region46: #{spectral_conv_forward.1} parent=5 // pred_check_branch
      %1008 = sbr.rel (%p1006) target = $region48
    $region47: #{spectral_conv_forward.1} parent=5 // pred_region
      %s1009 = ssub.s32 %s12, 2
      // Predicated region
      $region49: #{spectral_conv_forward.1} parent=47 // pred_check
        %p1010 = pneg %p172
      $region50: #{spectral_conv_forward.1} parent=47 // pred_check_branch
        %1012 = sbr.rel (%p1010) target = $region52
      $region51: #{spectral_conv_forward.1} parent=47 // pred_region
        %s1013 = smul.u32 4, %s25
        %p1014 = scmp.lt.s32.totalorder %s26, 1
        %s1015 = scalar_select %p1014, %s26, 1
        %p1016 = scmp.lt.s32.totalorder %s1013, 3
        %s1017 = scalar_select %p1016, %s1013, 3
        %p1018 = scmp.lt.s32.totalorder %s27, 0
        %s1019 = scalar_select %p1018, %s27, 0
        %s1020 = smul.addr %s1019, 2
        %s1021 = smul.addr %s1017, 2
        %s1022 = sadd.s32 %s1020, %s1021
        %s1023 = smul.addr %s1015, 8
        %s1024 = sadd.s32 %s1022, %s1023
        %s1025 = smul.addr %s1024, 8
        %s1026 = scalar_lea.vmem %s4, %s1025
      $region52: #{spectral_conv_forward.1} parent=47 // pred_fallthru
        _
      // Predicated region
      $region53: #{spectral_conv_forward.1} parent=47 // pred_check
        %p1027 = pneg %p202
      $region54: #{spectral_conv_forward.1} parent=47 // pred_check_branch
        %1029 = sbr.rel (%p1027) target = $region56
      $region55: #{spectral_conv_forward.1} parent=47 // pred_region
        %s1030 = smul.u32 4, %s25
        %p1031 = scmp.lt.s32.totalorder %s26, 1
        %s1032 = scalar_select %p1031, %s26, 1
        %p1033 = scmp.lt.s32.totalorder %s1030, 3
        %s1034 = scalar_select %p1033, %s1030, 3
        %p1035 = scmp.lt.s32.totalorder %s27, 0
        %s1036 = scalar_select %p1035, %s27, 0
        %s1037 = smul.addr %s1036, 2
        %s1038 = smul.addr %s1034, 2
        %s1039 = sadd.s32 %s1037, %s1038
        %s1040 = smul.addr %s1032, 8
        %s1041 = sadd.s32 %s1039, %s1040
        %s1042 = smul.addr %s1041, 8
        %s1043 = scalar_lea.vmem %s5, %s1042
      $region56: #{spectral_conv_forward.1} parent=47 // pred_fallthru
        _
    $region48: #{spectral_conv_forward.1} parent=5 // pred_fallthru
      _
  $region6: #{spectral_conv_forward.1} parent=0 // loop_footer
    %s16 = sadd.s32 1, %s12
  $region7: #{spectral_conv_forward.1} parent=0 // loop_footer_branch
    %11 = sbr.rel target = $region3
  $region8: #{spectral_conv_forward.1} parent=0 // loop_exit
    _

// kernel: reverse.0
$region0: #{reverse.0}
  %s0 = inlined_call_operand.vmem [shape: f32[2,4,3,2,16,7], index: 0, kind: input, shape index: {}]
  %s1 = inlined_call_operand.vmem [shape: f32[2,4,3,2,16,7], index: 1, kind: output, shape index: {}]
  $region1: #{reverse.0} parent=0
    #allocation0 [shape = 'u8[393216]{0}', space=vmem, size = 0x60000, scoped, tag = 'operand span for operand 0']
    #allocation1 [shape = 'u8[196608]{0}', space=vmem, size = 0x30000, scoped, tag = 'operand span for operand 1']
    %s2 = scalar_lea.vmem [#allocation0], 8
    // Predicated region
    $region2: #{reverse.0} parent=1 // pred_check
      _
    $region3: #{reverse.0} parent=1 // pred_check_branch
      %4 = sbr.rel (0) target = $region5
    $region4: #{reverse.0} parent=1 // pred_region
      // Predicated region
      $region6: #{reverse.0} parent=4 // pred_check
        _
      $region7: #{reverse.0} parent=4 // pred_check_branch
        %6 = sbr.rel (0) target = $region9
      $region8: #{reverse.0} parent=4 // pred_region
        // Predicated region
        $region21: #{reverse.0} parent=8 // pred_check
          _
        $region22: #{reverse.0} parent=8 // pred_check_branch
          %116 = sbr.rel (0) target = $region24
        $region23: #{reverse.0} parent=8 // pred_region
          loop: start=0, step=1, limit=1
          $region25: #{reverse.0} parent=23 // loop_pre_header
            _
          $region26: #{reverse.0} parent=23 // loop_header
            %s118 = sphi 0, %s122
            %p119 = scmp.ge.s32.totalorder %s118, 1
            %s123 = sphi %s0, %s0
            %s124 = sphi %s2, %s2
          $region27: #{reverse.0} parent=23 // loop_header_branch
            %121 = sbr.rel (%p119) target = $region31
          $region28: #{reverse.0} parent=23 // loop_body
            %v125 = vld [vmem:[%s123] sm:$0xff]
            %126 = vst [vmem:[%s124] sm:$0xff] %v125
            %v127 = vld [vmem:[%s123 + $0x8] sm:$0xff]
            %128 = vst [vmem:[%s124 + $0x10] sm:$0xff] %v127
            %v129 = vld [vmem:[%s123 + $0x10] sm:$0xff]
            %130 = vst [vmem:[%s124 + $0x20] sm:$0xff] %v129
            %v131 = vld [vmem:[%s123 + $0x18] sm:$0xff]
            %132 = vst [vmem:[%s124 + $0x30] sm:$0xff] %v131
            %v133 = vld [vmem:[%s123 + $0x20] sm:$0xff]
            %134 = vst [vmem:[%s124 + $0x40] sm:$0xff] %v133
            %v135 = vld [vmem:[%s123 + $0x28] sm:$0xff]
            %136 = vst [vmem:[%s124 + $0x50] sm:$0xff] %v135
            %v137 = vld [vmem:[%s123 + $0x30] sm:$0xff]
            %138 = vst [vmem:[%s124 + $0x60] sm:$0xff] %v137
            %v139 = vld [vmem:[%s123 + $0x38] sm:$0xff]
            %140 = vst [vmem:[%s124 + $0x70] sm:$0xff] %v139
            %v141 = vld [vmem:[%s123 + $0x40] sm:$0xff]
            %142 = vst [vmem:[%s124 + $0x80] sm:$0xff] %v141
            %v143 = vld [vmem:[%s123 + $0x48] sm:$0xff]
            %144 = vst [vmem:[%s124 + $0x90] sm:$0xff] %v143
            %v145 = vld [vmem:[%s123 + $0x50] sm:$0xff]
            %146 = vst [vmem:[%s124 + $0xa0] sm:$0xff] %v145
            %v147 = vld [vmem:[%s123 + $0x58] sm:$0xff]
            %148 = vst [vmem:[%s124 + $0xb0] sm:$0xff] %v147
            %v149 = vld [vmem:[%s123 + $0x60] sm:$0xff]
            %150 = vst [vmem:[%s124 + $0xc0] sm:$0xff] %v149
            %v151 = vld [vmem:[%s123 + $0x68] sm:$0xff]
            %152 = vst [vmem:[%s124 + $0xd0] sm:$0xff] %v151
            %v153 = vld [vmem:[%s123 + $0x70] sm:$0xff]
            %154 = vst [vmem:[%s124 + $0xe0] sm:$0xff] %v153
            %v155 = vld [vmem:[%s123 + $0x78] sm:$0xff]
            %156 = vst [vmem:[%s124 + $0xf0] sm:$0xff] %v155
            %v157 = vld [vmem:[%s123 + $0x80] sm:$0xff]
            %158 = vst [vmem:[%s124 + $0x100] sm:$0xff] %v157
            %v159 = vld [vmem:[%s123 + $0x88] sm:$0xff]
            %160 = vst [vmem:[%s124 + $0x110] sm:$0xff] %v159
            %v161 = vld [vmem:[%s123 + $0x90] sm:$0xff]
            %162 = vst [vmem:[%s124 + $0x120] sm:$0xff] %v161
            %v163 = vld [vmem:[%s123 + $0x98] sm:$0xff]
            %164 = vst [vmem:[%s124 + $0x130] sm:$0xff] %v163
            %v165 = vld [vmem:[%s123 + $0xa0] sm:$0xff]
            %166 = vst [vmem:[%s124 + $0x140] sm:$0xff] %v165
            %v167 = vld [vmem:[%s123 + $0xa8] sm:$0xff]
            %168 = vst [vmem:[%s124 + $0x150] sm:$0xff] %v167
            %v169 = vld [vmem:[%s123 + $0xb0] sm:$0xff]
            %170 = vst [vmem:[%s124 + $0x160] sm:$0xff] %v169
            %v171 = vld [vmem:[%s123 + $0xb8] sm:$0xff]
            %172 = vst [vmem:[%s124 + $0x170] sm:$0xff] %v171
            %v173 = vld [vmem:[%s123 + $0xc0] sm:$0xff]
            %174 = vst [vmem:[%s124 + $0x180] sm:$0xff] %v173
            %v175 = vld [vmem:[%s123 + $0xc8] sm:$0xff]
            %176 = vst [vmem:[%s124 + $0x190] sm:$0xff] %v175
            %v177 = vld [vmem:[%s123 + $0xd0] sm:$0xff]
            %178 = vst [vmem:[%s124 + $0x1a0] sm:$0xff] %v177
            %v179 = vld [vmem:[%s123 + $0xd8] sm:$0xff]
            %180 = vst [vmem:[%s124 + $0x1b0] sm:$0xff] %v179
            %v181 = vld [vmem:[%s123 + $0xe0] sm:$0xff]
            %182 = vst [vmem:[%s124 + $0x1c0] sm:$0xff] %v181
            %v183 = vld [vmem:[%s123 + $0xe8] sm:$0xff]
            %184 = vst [vmem:[%s124 + $0x1d0] sm:$0xff] %v183
            %v185 = vld [vmem:[%s123 + $0xf0] sm:$0xff]
            %186 = vst [vmem:[%s124 + $0x1e0] sm:$0xff] %v185
            %v187 = vld [vmem:[%s123 + $0xf8] sm:$0xff]
            %188 = vst [vmem:[%s124 + $0x1f0] sm:$0xff] %v187
            %v189 = vld [vmem:[%s123 + $0x100] sm:$0xff]
            %190 = vst [vmem:[%s124 + $0x200] sm:$0xff] %v189
            %v191 = vld [vmem:[%s123 + $0x108] sm:$0xff]
            %192 = vst [vmem:[%s124 + $0x210] sm:$0xff] %v191
            %v193 = vld [vmem:[%s123 + $0x110] sm:$0xff]
            %194 = vst [vmem:[%s124 + $0x220] sm:$0xff] %v193
            %v195 = vld [vmem:[%s123 + $0x118] sm:$0xff]
            %196 = vst [vmem:[%s124 + $0x230] sm:$0xff] %v195
            %v197 = vld [vmem:[%s123 + $0x120] sm:$0xff]
            %198 = vst [vmem:[%s124 + $0x240] sm:$0xff] %v197
            %v199 = vld [vmem:[%s123 + $0x128] sm:$0xff]
            %200 = vst [vmem:[%s124 + $0x250] sm:$0xff] %v199
            %v201 = vld [vmem:[%s123 + $0x130] sm:$0xff]
            %202 = vst [vmem:[%s124 + $0x260] sm:$0xff] %v201
            %v203 = vld [vmem:[%s123 + $0x138] sm:$0xff]
            %204 = vst [vmem:[%s124 + $0x270] sm:$0xff] %v203
            %v205 = vld [vmem:[%s123 + $0x140] sm:$0xff]
            %206 = vst [vmem:[%s124 + $0x280] sm:$0xff] %v205
            %v207 = vld [vmem:[%s123 + $0x148] sm:$0xff]
            %208 = vst [vmem:[%s124 + $0x290] sm:$0xff] %v207
            %v209 = vld [vmem:[%s123 + $0x150] sm:$0xff]
            %210 = vst [vmem:[%s124 + $0x2a0] sm:$0xff] %v209
            %v211 = vld [vmem:[%s123 + $0x158] sm:$0xff]
            %212 = vst [vmem:[%s124 + $0x2b0] sm:$0xff] %v211
            %v213 = vld [vmem:[%s123 + $0x160] sm:$0xff]
            %214 = vst [vmem:[%s124 + $0x2c0] sm:$0xff] %v213
            %v215 = vld [vmem:[%s123 + $0x168] sm:$0xff]
            %216 = vst [vmem:[%s124 + $0x2d0] sm:$0xff] %v215
            %v217 = vld [vmem:[%s123 + $0x170] sm:$0xff]
            %218 = vst [vmem:[%s124 + $0x2e0] sm:$0xff] %v217
            %v219 = vld [vmem:[%s123 + $0x178] sm:$0xff]
            %220 = vst [vmem:[%s124 + $0x2f0] sm:$0xff] %v219
          $region29: #{reverse.0} parent=23 // loop_footer
            %s122 = sadd.s32 1, %s118
          $region30: #{reverse.0} parent=23 // loop_footer_branch
            %117 = sbr.rel target = $region26
          $region31: #{reverse.0} parent=23 // loop_exit
            _
        $region24: #{reverse.0} parent=8 // pred_fallthru
          _
        // Predicated region
        $region32: #{reverse.0} parent=8 // pred_check
          _
        $region33: #{reverse.0} parent=8 // pred_check_branch
          %222 = sbr.rel target = $region35
        $region34: #{reverse.0} parent=8 // pred_region
          _
        $region35: #{reverse.0} parent=8 // pred_fallthru
          _
      $region9: #{reverse.0} parent=4 // pred_fallthru
        _
      // Predicated region
      $region10: #{reverse.0} parent=4 // pred_check
        _
      $region11: #{reverse.0} parent=4 // pred_check_branch
        %8 = sbr.rel target = $region13
      $region12: #{reverse.0} parent=4 // pred_region
        %s10 = ssub.s32 256, 1
        loop: start=0, step=1, limit=1
        $region14: #{reverse.0} parent=12 // loop_pre_header
          _
        $region15: #{reverse.0} parent=12 // loop_header
          %s12 = sphi 0, %s16
          %p13 = scmp.ge.s32.totalorder %s12, 1
          %s17 = sphi %s0, %s0
          %s18 = sphi %s2, %s2
        $region16: #{reverse.0} parent=12 // loop_header_branch
          %15 = sbr.rel (%p13) target = $region20
        $region17: #{reverse.0} parent=12 // loop_body
          %v19 = vld [vmem:[%s17] sm:%s10]
          %20 = vst [vmem:[%s18] sm:%s10] %v19
          %v21 = vld [vmem:[%s17 + $0x8] sm:%s10]
          %22 = vst [vmem:[%s18 + $0x10] sm:%s10] %v21
          %v23 = vld [vmem:[%s17 + $0x10] sm:%s10]
          %24 = vst [vmem:[%s18 + $0x20] sm:%s10] %v23
          %v25 = vld [vmem:[%s17 + $0x18] sm:%s10]
          %26 = vst [vmem:[%s18 + $0x30] sm:%s10] %v25
          %v27 = vld [vmem:[%s17 + $0x20] sm:%s10]
          %28 = vst [vmem:[%s18 + $0x40] sm:%s10] %v27
          %v29 = vld [vmem:[%s17 + $0x28] sm:%s10]
          %30 = vst [vmem:[%s18 + $0x50] sm:%s10] %v29
          %v31 = vld [vmem:[%s17 + $0x30] sm:%s10]
          %32 = vst [vmem:[%s18 + $0x60] sm:%s10] %v31
          %v33 = vld [vmem:[%s17 + $0x38] sm:%s10]
          %34 = vst [vmem:[%s18 + $0x70] sm:%s10] %v33
          %v35 = vld [vmem:[%s17 + $0x40] sm:%s10]
          %36 = vst [vmem:[%s18 + $0x80] sm:%s10] %v35
          %v37 = vld [vmem:[%s17 + $0x48] sm:%s10]
          %38 = vst [vmem:[%s18 + $0x90] sm:%s10] %v37
          %v39 = vld [vmem:[%s17 + $0x50] sm:%s10]
          %40 = vst [vmem:[%s18 + $0xa0] sm:%s10] %v39
          %v41 = vld [vmem:[%s17 + $0x58] sm:%s10]
          %42 = vst [vmem:[%s18 + $0xb0] sm:%s10] %v41
          %v43 = vld [vmem:[%s17 + $0x60] sm:%s10]
          %44 = vst [vmem:[%s18 + $0xc0] sm:%s10] %v43
          %v45 = vld [vmem:[%s17 + $0x68] sm:%s10]
          %46 = vst [vmem:[%s18 + $0xd0] sm:%s10] %v45
          %v47 = vld [vmem:[%s17 + $0x70] sm:%s10]
          %48 = vst [vmem:[%s18 + $0xe0] sm:%s10] %v47
          %v49 = vld [vmem:[%s17 + $0x78] sm:%s10]
          %50 = vst [vmem:[%s18 + $0xf0] sm:%s10] %v49
          %v51 = vld [vmem:[%s17 + $0x80] sm:%s10]
          %52 = vst [vmem:[%s18 + $0x100] sm:%s10] %v51
          %v53 = vld [vmem:[%s17 + $0x88] sm:%s10]
          %54 = vst [vmem:[%s18 + $0x110] sm:%s10] %v53
          %v55 = vld [vmem:[%s17 + $0x90] sm:%s10]
          %56 = vst [vmem:[%s18 + $0x120] sm:%s10] %v55
          %v57 = vld [vmem:[%s17 + $0x98] sm:%s10]
          %58 = vst [vmem:[%s18 + $0x130] sm:%s10] %v57
          %v59 = vld [vmem:[%s17 + $0xa0] sm:%s10]
          %60 = vst [vmem:[%s18 + $0x140] sm:%s10] %v59
          %v61 = vld [vmem:[%s17 + $0xa8] sm:%s10]
          %62 = vst [vmem:[%s18 + $0x150] sm:%s10] %v61
          %v63 = vld [vmem:[%s17 + $0xb0] sm:%s10]
          %64 = vst [vmem:[%s18 + $0x160] sm:%s10] %v63
          %v65 = vld [vmem:[%s17 + $0xb8] sm:%s10]
          %66 = vst [vmem:[%s18 + $0x170] sm:%s10] %v65
          %v67 = vld [vmem:[%s17 + $0xc0] sm:%s10]
          %68 = vst [vmem:[%s18 + $0x180] sm:%s10] %v67
          %v69 = vld [vmem:[%s17 + $0xc8] sm:%s10]
          %70 = vst [vmem:[%s18 + $0x190] sm:%s10] %v69
          %v71 = vld [vmem:[%s17 + $0xd0] sm:%s10]
          %72 = vst [vmem:[%s18 + $0x1a0] sm:%s10] %v71
          %v73 = vld [vmem:[%s17 + $0xd8] sm:%s10]
          %74 = vst [vmem:[%s18 + $0x1b0] sm:%s10] %v73
          %v75 = vld [vmem:[%s17 + $0xe0] sm:%s10]
          %76 = vst [vmem:[%s18 + $0x1c0] sm:%s10] %v75
          %v77 = vld [vmem:[%s17 + $0xe8] sm:%s10]
          %78 = vst [vmem:[%s18 + $0x1d0] sm:%s10] %v77
          %v79 = vld [vmem:[%s17 + $0xf0] sm:%s10]
          %80 = vst [vmem:[%s18 + $0x1e0] sm:%s10] %v79
          %v81 = vld [vmem:[%s17 + $0xf8] sm:%s10]
          %82 = vst [vmem:[%s18 + $0x1f0] sm:%s10] %v81
          %v83 = vld [vmem:[%s17 + $0x100] sm:%s10]
          %84 = vst [vmem:[%s18 + $0x200] sm:%s10] %v83
          %v85 = vld [vmem:[%s17 + $0x108] sm:%s10]
          %86 = vst [vmem:[%s18 + $0x210] sm:%s10] %v85
          %v87 = vld [vmem:[%s17 + $0x110] sm:%s10]
          %88 = vst [vmem:[%s18 + $0x220] sm:%s10] %v87
          %v89 = vld [vmem:[%s17 + $0x118] sm:%s10]
          %90 = vst [vmem:[%s18 + $0x230] sm:%s10] %v89
          %v91 = vld [vmem:[%s17 + $0x120] sm:%s10]
          %92 = vst [vmem:[%s18 + $0x240] sm:%s10] %v91
          %v93 = vld [vmem:[%s17 + $0x128] sm:%s10]
          %94 = vst [vmem:[%s18 + $0x250] sm:%s10] %v93
          %v95 = vld [vmem:[%s17 + $0x130] sm:%s10]
          %96 = vst [vmem:[%s18 + $0x260] sm:%s10] %v95
          %v97 = vld [vmem:[%s17 + $0x138] sm:%s10]
          %98 = vst [vmem:[%s18 + $0x270] sm:%s10] %v97
          %v99 = vld [vmem:[%s17 + $0x140] sm:%s10]
          %100 = vst [vmem:[%s18 + $0x280] sm:%s10] %v99
          %v101 = vld [vmem:[%s17 + $0x148] sm:%s10]
          %102 = vst [vmem:[%s18 + $0x290] sm:%s10] %v101
          %v103 = vld [vmem:[%s17 + $0x150] sm:%s10]
          %104 = vst [vmem:[%s18 + $0x2a0] sm:%s10] %v103
          %v105 = vld [vmem:[%s17 + $0x158] sm:%s10]
          %106 = vst [vmem:[%s18 + $0x2b0] sm:%s10] %v105
          %v107 = vld [vmem:[%s17 + $0x160] sm:%s10]
          %108 = vst [vmem:[%s18 + $0x2c0] sm:%s10] %v107
          %v109 = vld [vmem:[%s17 + $0x168] sm:%s10]
          %110 = vst [vmem:[%s18 + $0x2d0] sm:%s10] %v109
          %v111 = vld [vmem:[%s17 + $0x170] sm:%s10]
          %112 = vst [vmem:[%s18 + $0x2e0] sm:%s10] %v111
          %v113 = vld [vmem:[%s17 + $0x178] sm:%s10]
          %114 = vst [vmem:[%s18 + $0x2f0] sm:%s10] %v113
        $region18: #{reverse.0} parent=12 // loop_footer
          %s16 = sadd.s32 1, %s12
        $region19: #{reverse.0} parent=12 // loop_footer_branch
          %11 = sbr.rel target = $region15
        $region20: #{reverse.0} parent=12 // loop_exit
          _
      $region13: #{reverse.0} parent=4 // pred_fallthru
        _
    $region5: #{reverse.0} parent=1 // pred_fallthru
      _
    %223 = vnop
    %s224 = scalar_lea.vmem [#allocation0], 7
    %v225 = vld [vmem:[%s224] ss:$-1 sm:$0xff]
    %v226 = vrot.slane %v225, 1
    %227 = vst [vmem:[#allocation1] sm:$0xff] %v226
    %s228 = scalar_lea.vmem [#allocation0], 8
    %s229 = scalar_lea.vmem %s228, 7 [#allocation0]
    %v230 = vld [vmem:[%s229] ss:$-1 sm:$0xff]
    %v231 = vrot.slane %v230, 1
    %v232 = vlaneseq
    %v233 = vshrl.u32 %v232, 7
    %vm234 = vcmp.lt.s32.totalorder %v233, 7
    %235 = vst.msk [vmem:[#allocation1] sm:$0xff] %vm234, %v231
    %s236 = scalar_lea.vmem [#allocation1], 8
    %s237 = scalar_lea.vmem [#allocation0], 16
    %s238 = scalar_lea.vmem %s237, 7 [#allocation0]
    %v239 = vld [vmem:[%s238] ss:$-1 sm:$0xff]
    %v240 = vrot.slane %v239, 1
    %241 = vst [vmem:[%s236] sm:$0xff] %v240
    %s242 = scalar_lea.vmem %s237, 8 [#allocation0]
    %s243 = scalar_lea.vmem %s242, 7 [#allocation0]
    %v244 = vld [vmem:[%s243] ss:$-1 sm:$0xff]
    %v245 = vrot.slane %v244, 1
    %v246 = vlaneseq
    %v247 = vshrl.u32 %v246, 7
    %vm248 = vcmp.lt.s32.totalorder %v247, 7
    %249 = vst.msk [vmem:[%s236] sm:$0xff] %vm248, %v245
    %s250 = scalar_lea.vmem [#allocation1], 16
    %s251 = scalar_lea.vmem [#allocation0], 32
    %s252 = scalar_lea.vmem %s251, 7 [#allocation0]
    %v253 = vld [vmem:[%s252] ss:$-1 sm:$0xff]
    %v254 = vrot.slane %v253, 1
    %255 = vst [vmem:[%s250] sm:$0xff] %v254
    %s256 = scalar_lea.vmem %s251, 8 [#allocation0]
    %s257 = scalar_lea.vmem %s256, 7 [#allocation0]
    %v258 = vld [vmem:[%s257] ss:$-1 sm:$0xff]
    %v259 = vrot.slane %v258, 1
    %v260 = vlaneseq
    %v261 = vshrl.u32 %v260, 7
    %vm262 = vcmp.lt.s32.totalorder %v261, 7
    %263 = vst.msk [vmem:[%s250] sm:$0xff] %vm262, %v259
    %s264 = scalar_lea.vmem [#allocation1], 24
    %s265 = scalar_lea.vmem [#allocation0], 48
    %s266 = scalar_lea.vmem %s265, 7 [#allocation0]
    %v267 = vld [vmem:[%s266] ss:$-1 sm:$0xff]
    %v268 = vrot.slane %v267, 1
    %269 = vst [vmem:[%s264] sm:$0xff] %v268
    %s270 = scalar_lea.vmem %s265, 8 [#allocation0]
    %s271 = scalar_lea.vmem %s270, 7 [#allocation0]
    %v272 = vld [vmem:[%s271] ss:$-1 sm:$0xff]
    %v273 = vrot.slane %v272, 1
    %v274 = vlaneseq
    %v275 = vshrl.u32 %v274, 7
    %vm276 = vcmp.lt.s32.totalorder %v275, 7
    %277 = vst.msk [vmem:[%s264] sm:$0xff] %vm276, %v273
    %s278 = scalar_lea.vmem [#allocation1], 32
    %s279 = scalar_lea.vmem [#allocation0], 64
    %s280 = scalar_lea.vmem %s279, 7 [#allocation0]
    %v281 = vld [vmem:[%s280] ss:$-1 sm:$0xff]
    %v282 = vrot.slane %v281, 1
    %283 = vst [vmem:[%s278] sm:$0xff] %v282
    %s284 = scalar_lea.vmem %s279, 8 [#allocation0]
    %s285 = scalar_lea.vmem %s284, 7 [#allocation0]
    %v286 = vld [vmem:[%s285] ss:$-1 sm:$0xff]
    %v287 = vrot.slane %v286, 1
    %v288 = vlaneseq
    %v289 = vshrl.u32 %v288, 7
    %vm290 = vcmp.lt.s32.totalorder %v289, 7
    %291 = vst.msk [vmem:[%s278] sm:$0xff] %vm290, %v287
    %s292 = scalar_lea.vmem [#allocation1], 40
    %s293 = scalar_lea.vmem [#allocation0], 80
    %s294 = scalar_lea.vmem %s293, 7 [#allocation0]
    %v295 = vld [vmem:[%s294] ss:$-1 sm:$0xff]
    %v296 = vrot.slane %v295, 1
    %297 = vst [vmem:[%s292] sm:$0xff] %v296
    %s298 = scalar_lea.vmem %s293, 8 [#allocation0]
    %s299 = scalar_lea.vmem %s298, 7 [#allocation0]
    %v300 = vld [vmem:[%s299] ss:$-1 sm:$0xff]
    %v301 = vrot.slane %v300, 1
    %v302 = vlaneseq
    %v303 = vshrl.u32 %v302, 7
    %vm304 = vcmp.lt.s32.totalorder %v303, 7
    %305 = vst.msk [vmem:[%s292] sm:$0xff] %vm304, %v301
    %s306 = scalar_lea.vmem [#allocation1], 48
    %s307 = scalar_lea.vmem [#allocation0], 96
    %s308 = scalar_lea.vmem %s307, 7 [#allocation0]
    %v309 = vld [vmem:[%s308] ss:$-1 sm:$0xff]
    %v310 = vrot.slane %v309, 1
    %311 = vst [vmem:[%s306] sm:$0xff] %v310
    %s312 = scalar_lea.vmem %s307, 8 [#allocation0]
    %s313 = scalar_lea.vmem %s312, 7 [#allocation0]
    %v314 = vld [vmem:[%s313] ss:$-1 sm:$0xff]
    %v315 = vrot.slane %v314, 1
    %v316 = vlaneseq
    %v317 = vshrl.u32 %v316, 7
    %vm318 = vcmp.lt.s32.totalorder %v317, 7
    %319 = vst.msk [vmem:[%s306] sm:$0xff] %vm318, %v315
    %s320 = scalar_lea.vmem [#allocation1], 56
    %s321 = scalar_lea.vmem [#allocation0], 112
    %s322 = scalar_lea.vmem %s321, 7 [#allocation0]
    %v323 = vld [vmem:[%s322] ss:$-1 sm:$0xff]
    %v324 = vrot.slane %v323, 1
    %325 = vst [vmem:[%s320] sm:$0xff] %v324
    %s326 = scalar_lea.vmem %s321, 8 [#allocation0]
    %s327 = scalar_lea.vmem %s326, 7 [#allocation0]
    %v328 = vld [vmem:[%s327] ss:$-1 sm:$0xff]
    %v329 = vrot.slane %v328, 1
    %v330 = vlaneseq
    %v331 = vshrl.u32 %v330, 7
    %vm332 = vcmp.lt.s32.totalorder %v331, 7
    %333 = vst.msk [vmem:[%s320] sm:$0xff] %vm332, %v329
    %s334 = scalar_lea.vmem [#allocation1], 64
    %s335 = scalar_lea.vmem [#allocation0], 128
    %s336 = scalar_lea.vmem %s335, 7 [#allocation0]
    %v337 = vld [vmem:[%s336] ss:$-1 sm:$0xff]
    %v338 = vrot.slane %v337, 1
    %339 = vst [vmem:[%s334] sm:$0xff] %v338
    %s340 = scalar_lea.vmem %s335, 8 [#allocation0]
    %s341 = scalar_lea.vmem %s340, 7 [#allocation0]
    %v342 = vld [vmem:[%s341] ss:$-1 sm:$0xff]
    %v343 = vrot.slane %v342, 1
    %v344 = vlaneseq
    %v345 = vshrl.u32 %v344, 7
    %vm346 = vcmp.lt.s32.totalorder %v345, 7
    %347 = vst.msk [vmem:[%s334] sm:$0xff] %vm346, %v343
    %s348 = scalar_lea.vmem [#allocation1], 72
    %s349 = scalar_lea.vmem [#allocation0], 144
    %s350 = scalar_lea.vmem %s349, 7 [#allocation0]
    %v351 = vld [vmem:[%s350] ss:$-1 sm:$0xff]
    %v352 = vrot.slane %v351, 1
    %353 = vst [vmem:[%s348] sm:$0xff] %v352
    %s354 = scalar_lea.vmem %s349, 8 [#allocation0]
    %s355 = scalar_lea.vmem %s354, 7 [#allocation0]
    %v356 = vld [vmem:[%s355] ss:$-1 sm:$0xff]
    %v357 = vrot.slane %v356, 1
    %v358 = vlaneseq
    %v359 = vshrl.u32 %v358, 7
    %vm360 = vcmp.lt.s32.totalorder %v359, 7
    %361 = vst.msk [vmem:[%s348] sm:$0xff] %vm360, %v357
    %s362 = scalar_lea.vmem [#allocation1], 80
    %s363 = scalar_lea.vmem [#allocation0], 160
    %s364 = scalar_lea.vmem %s363, 7 [#allocation0]
    %v365 = vld [vmem:[%s364] ss:$-1 sm:$0xff]
    %v366 = vrot.slane %v365, 1
    %367 = vst [vmem:[%s362] sm:$0xff] %v366
    %s368 = scalar_lea.vmem %s363, 8 [#allocation0]
    %s369 = scalar_lea.vmem %s368, 7 [#allocation0]
    %v370 = vld [vmem:[%s369] ss:$-1 sm:$0xff]
    %v371 = vrot.slane %v370, 1
    %v372 = vlaneseq
    %v373 = vshrl.u32 %v372, 7
    %vm374 = vcmp.lt.s32.totalorder %v373, 7
    %375 = vst.msk [vmem:[%s362] sm:$0xff] %vm374, %v371
    %s376 = scalar_lea.vmem [#allocation1], 88
    %s377 = scalar_lea.vmem [#allocation0], 176
    %s378 = scalar_lea.vmem %s377, 7 [#allocation0]
    %v379 = vld [vmem:[%s378] ss:$-1 sm:$0xff]
    %v380 = vrot.slane %v379, 1
    %381 = vst [vmem:[%s376] sm:$0xff] %v380
    %s382 = scalar_lea.vmem %s377, 8 [#allocation0]
    %s383 = scalar_lea.vmem %s382, 7 [#allocation0]
    %v384 = vld [vmem:[%s383] ss:$-1 sm:$0xff]
    %v385 = vrot.slane %v384, 1
    %v386 = vlaneseq
    %v387 = vshrl.u32 %v386, 7
    %vm388 = vcmp.lt.s32.totalorder %v387, 7
    %389 = vst.msk [vmem:[%s376] sm:$0xff] %vm388, %v385
    %s390 = scalar_lea.vmem [#allocation1], 96
    %s391 = scalar_lea.vmem [#allocation0], 192
    %s392 = scalar_lea.vmem %s391, 7 [#allocation0]
    %v393 = vld [vmem:[%s392] ss:$-1 sm:$0xff]
    %v394 = vrot.slane %v393, 1
    %395 = vst [vmem:[%s390] sm:$0xff] %v394
    %s396 = scalar_lea.vmem %s391, 8 [#allocation0]
    %s397 = scalar_lea.vmem %s396, 7 [#allocation0]
    %v398 = vld [vmem:[%s397] ss:$-1 sm:$0xff]
    %v399 = vrot.slane %v398, 1
    %v400 = vlaneseq
    %v401 = vshrl.u32 %v400, 7
    %vm402 = vcmp.lt.s32.totalorder %v401, 7
    %403 = vst.msk [vmem:[%s390] sm:$0xff] %vm402, %v399
    %s404 = scalar_lea.vmem [#allocation1], 104
    %s405 = scalar_lea.vmem [#allocation0], 208
    %s406 = scalar_lea.vmem %s405, 7 [#allocation0]
    %v407 = vld [vmem:[%s406] ss:$-1 sm:$0xff]
    %v408 = vrot.slane %v407, 1
    %409 = vst [vmem:[%s404] sm:$0xff] %v408
    %s410 = scalar_lea.vmem %s405, 8 [#allocation0]
    %s411 = scalar_lea.vmem %s410, 7 [#allocation0]
    %v412 = vld [vmem:[%s411] ss:$-1 sm:$0xff]
    %v413 = vrot.slane %v412, 1
    %v414 = vlaneseq
    %v415 = vshrl.u32 %v414, 7
    %vm416 = vcmp.lt.s32.totalorder %v415, 7
    %417 = vst.msk [vmem:[%s404] sm:$0xff] %vm416, %v413
    %s418 = scalar_lea.vmem [#allocation1], 112
    %s419 = scalar_lea.vmem [#allocation0], 224
    %s420 = scalar_lea.vmem %s419, 7 [#allocation0]
    %v421 = vld [vmem:[%s420] ss:$-1 sm:$0xff]
    %v422 = vrot.slane %v421, 1
    %423 = vst [vmem:[%s418] sm:$0xff] %v422
    %s424 = scalar_lea.vmem %s419, 8 [#allocation0]
    %s425 = scalar_lea.vmem %s424, 7 [#allocation0]
    %v426 = vld [vmem:[%s425] ss:$-1 sm:$0xff]
    %v427 = vrot.slane %v426, 1
    %v428 = vlaneseq
    %v429 = vshrl.u32 %v428, 7
    %vm430 = vcmp.lt.s32.totalorder %v429, 7
    %431 = vst.msk [vmem:[%s418] sm:$0xff] %vm430, %v427
    %s432 = scalar_lea.vmem [#allocation1], 120
    %s433 = scalar_lea.vmem [#allocation0], 240
    %s434 = scalar_lea.vmem %s433, 7 [#allocation0]
    %v435 = vld [vmem:[%s434] ss:$-1 sm:$0xff]
    %v436 = vrot.slane %v435, 1
    %437 = vst [vmem:[%s432] sm:$0xff] %v436
    %s438 = scalar_lea.vmem %s433, 8 [#allocation0]
    %s439 = scalar_lea.vmem %s438, 7 [#allocation0]
    %v440 = vld [vmem:[%s439] ss:$-1 sm:$0xff]
    %v441 = vrot.slane %v440, 1
    %v442 = vlaneseq
    %v443 = vshrl.u32 %v442, 7
    %vm444 = vcmp.lt.s32.totalorder %v443, 7
    %445 = vst.msk [vmem:[%s432] sm:$0xff] %vm444, %v441
    %s446 = scalar_lea.vmem [#allocation1], 128
    %s447 = scalar_lea.vmem [#allocation0], 256
    %s448 = scalar_lea.vmem %s447, 7 [#allocation0]
    %v449 = vld [vmem:[%s448] ss:$-1 sm:$0xff]
    %v450 = vrot.slane %v449, 1
    %451 = vst [vmem:[%s446] sm:$0xff] %v450
    %s452 = scalar_lea.vmem %s447, 8 [#allocation0]
    %s453 = scalar_lea.vmem %s452, 7 [#allocation0]
    %v454 = vld [vmem:[%s453] ss:$-1 sm:$0xff]
    %v455 = vrot.slane %v454, 1
    %v456 = vlaneseq
    %v457 = vshrl.u32 %v456, 7
    %vm458 = vcmp.lt.s32.totalorder %v457, 7
    %459 = vst.msk [vmem:[%s446] sm:$0xff] %vm458, %v455
    %s460 = scalar_lea.vmem [#allocation1], 136
    %s461 = scalar_lea.vmem [#allocation0], 272
    %s462 = scalar_lea.vmem %s461, 7 [#allocation0]
    %v463 = vld [vmem:[%s462] ss:$-1 sm:$0xff]
    %v464 = vrot.slane %v463, 1
    %465 = vst [vmem:[%s460] sm:$0xff] %v464
    %s466 = scalar_lea.vmem %s461, 8 [#allocation0]
    %s467 = scalar_lea.vmem %s466, 7 [#allocation0]
    %v468 = vld [vmem:[%s467] ss:$-1 sm:$0xff]
    %v469 = vrot.slane %v468, 1
    %v470 = vlaneseq
    %v471 = vshrl.u32 %v470, 7
    %vm472 = vcmp.lt.s32.totalorder %v471, 7
    %473 = vst.msk [vmem:[%s460] sm:$0xff] %vm472, %v469
    %s474 = scalar_lea.vmem [#allocation1], 144
    %s475 = scalar_lea.vmem [#allocation0], 288
    %s476 = scalar_lea.vmem %s475, 7 [#allocation0]
    %v477 = vld [vmem:[%s476] ss:$-1 sm:$0xff]
    %v478 = vrot.slane %v477, 1
    %479 = vst [vmem:[%s474] sm:$0xff] %v478
    %s480 = scalar_lea.vmem %s475, 8 [#allocation0]
    %s481 = scalar_lea.vmem %s480, 7 [#allocation0]
    %v482 = vld [vmem:[%s481] ss:$-1 sm:$0xff]
    %v483 = vrot.slane %v482, 1
    %v484 = vlaneseq
    %v485 = vshrl.u32 %v484, 7
    %vm486 = vcmp.lt.s32.totalorder %v485, 7
    %487 = vst.msk [vmem:[%s474] sm:$0xff] %vm486, %v483
    %s488 = scalar_lea.vmem [#allocation1], 152
    %s489 = scalar_lea.vmem [#allocation0], 304
    %s490 = scalar_lea.vmem %s489, 7 [#allocation0]
    %v491 = vld [vmem:[%s490] ss:$-1 sm:$0xff]
    %v492 = vrot.slane %v491, 1
    %493 = vst [vmem:[%s488] sm:$0xff] %v492
    %s494 = scalar_lea.vmem %s489, 8 [#allocation0]
    %s495 = scalar_lea.vmem %s494, 7 [#allocation0]
    %v496 = vld [vmem:[%s495] ss:$-1 sm:$0xff]
    %v497 = vrot.slane %v496, 1
    %v498 = vlaneseq
    %v499 = vshrl.u32 %v498, 7
    %vm500 = vcmp.lt.s32.totalorder %v499, 7
    %501 = vst.msk [vmem:[%s488] sm:$0xff] %vm500, %v497
    %s502 = scalar_lea.vmem [#allocation1], 160
    %s503 = scalar_lea.vmem [#allocation0], 320
    %s504 = scalar_lea.vmem %s503, 7 [#allocation0]
    %v505 = vld [vmem:[%s504] ss:$-1 sm:$0xff]
    %v506 = vrot.slane %v505, 1
    %507 = vst [vmem:[%s502] sm:$0xff] %v506
    %s508 = scalar_lea.vmem %s503, 8 [#allocation0]
    %s509 = scalar_lea.vmem %s508, 7 [#allocation0]
    %v510 = vld [vmem:[%s509] ss:$-1 sm:$0xff]
    %v511 = vrot.slane %v510, 1
    %v512 = vlaneseq
    %v513 = vshrl.u32 %v512, 7
    %vm514 = vcmp.lt.s32.totalorder %v513, 7
    %515 = vst.msk [vmem:[%s502] sm:$0xff] %vm514, %v511
    %s516 = scalar_lea.vmem [#allocation1], 168
    %s517 = scalar_lea.vmem [#allocation0], 336
    %s518 = scalar_lea.vmem %s517, 7 [#allocation0]
    %v519 = vld [vmem:[%s518] ss:$-1 sm:$0xff]
    %v520 = vrot.slane %v519, 1
    %521 = vst [vmem:[%s516] sm:$0xff] %v520
    %s522 = scalar_lea.vmem %s517, 8 [#allocation0]
    %s523 = scalar_lea.vmem %s522, 7 [#allocation0]
    %v524 = vld [vmem:[%s523] ss:$-1 sm:$0xff]
    %v525 = vrot.slane %v524, 1
    %v526 = vlaneseq
    %v527 = vshrl.u32 %v526, 7
    %vm528 = vcmp.lt.s32.totalorder %v527, 7
    %529 = vst.msk [vmem:[%s516] sm:$0xff] %vm528, %v525
    %s530 = scalar_lea.vmem [#allocation1], 176
    %s531 = scalar_lea.vmem [#allocation0], 352
    %s532 = scalar_lea.vmem %s531, 7 [#allocation0]
    %v533 = vld [vmem:[%s532] ss:$-1 sm:$0xff]
    %v534 = vrot.slane %v533, 1
    %535 = vst [vmem:[%s530] sm:$0xff] %v534
    %s536 = scalar_lea.vmem %s531, 8 [#allocation0]
    %s537 = scalar_lea.vmem %s536, 7 [#allocation0]
    %v538 = vld [vmem:[%s537] ss:$-1 sm:$0xff]
    %v539 = vrot.slane %v538, 1
    %v540 = vlaneseq
    %v541 = vshrl.u32 %v540, 7
    %vm542 = vcmp.lt.s32.totalorder %v541, 7
    %543 = vst.msk [vmem:[%s530] sm:$0xff] %vm542, %v539
    %s544 = scalar_lea.vmem [#allocation1], 184
    %s545 = scalar_lea.vmem [#allocation0], 368
    %s546 = scalar_lea.vmem %s545, 7 [#allocation0]
    %v547 = vld [vmem:[%s546] ss:$-1 sm:$0xff]
    %v548 = vrot.slane %v547, 1
    %549 = vst [vmem:[%s544] sm:$0xff] %v548
    %s550 = scalar_lea.vmem %s545, 8 [#allocation0]
    %s551 = scalar_lea.vmem %s550, 7 [#allocation0]
    %v552 = vld [vmem:[%s551] ss:$-1 sm:$0xff]
    %v553 = vrot.slane %v552, 1
    %v554 = vlaneseq
    %v555 = vshrl.u32 %v554, 7
    %vm556 = vcmp.lt.s32.totalorder %v555, 7
    %557 = vst.msk [vmem:[%s544] sm:$0xff] %vm556, %v553
    %s558 = scalar_lea.vmem [#allocation1], 192
    %s559 = scalar_lea.vmem [#allocation0], 384
    %s560 = scalar_lea.vmem %s559, 7 [#allocation0]
    %v561 = vld [vmem:[%s560] ss:$-1 sm:$0xff]
    %v562 = vrot.slane %v561, 1
    %563 = vst [vmem:[%s558] sm:$0xff] %v562
    %s564 = scalar_lea.vmem %s559, 8 [#allocation0]
    %s565 = scalar_lea.vmem %s564, 7 [#allocation0]
    %v566 = vld [vmem:[%s565] ss:$-1 sm:$0xff]
    %v567 = vrot.slane %v566, 1
    %v568 = vlaneseq
    %v569 = vshrl.u32 %v568, 7
    %vm570 = vcmp.lt.s32.totalorder %v569, 7
    %571 = vst.msk [vmem:[%s558] sm:$0xff] %vm570, %v567
    %s572 = scalar_lea.vmem [#allocation1], 200
    %s573 = scalar_lea.vmem [#allocation0], 400
    %s574 = scalar_lea.vmem %s573, 7 [#allocation0]
    %v575 = vld [vmem:[%s574] ss:$-1 sm:$0xff]
    %v576 = vrot.slane %v575, 1
    %577 = vst [vmem:[%s572] sm:$0xff] %v576
    %s578 = scalar_lea.vmem %s573, 8 [#allocation0]
    %s579 = scalar_lea.vmem %s578, 7 [#allocation0]
    %v580 = vld [vmem:[%s579] ss:$-1 sm:$0xff]
    %v581 = vrot.slane %v580, 1
    %v582 = vlaneseq
    %v583 = vshrl.u32 %v582, 7
    %vm584 = vcmp.lt.s32.totalorder %v583, 7
    %585 = vst.msk [vmem:[%s572] sm:$0xff] %vm584, %v581
    %s586 = scalar_lea.vmem [#allocation1], 208
    %s587 = scalar_lea.vmem [#allocation0], 416
    %s588 = scalar_lea.vmem %s587, 7 [#allocation0]
    %v589 = vld [vmem:[%s588] ss:$-1 sm:$0xff]
    %v590 = vrot.slane %v589, 1
    %591 = vst [vmem:[%s586] sm:$0xff] %v590
    %s592 = scalar_lea.vmem %s587, 8 [#allocation0]
    %s593 = scalar_lea.vmem %s592, 7 [#allocation0]
    %v594 = vld [vmem:[%s593] ss:$-1 sm:$0xff]
    %v595 = vrot.slane %v594, 1
    %v596 = vlaneseq
    %v597 = vshrl.u32 %v596, 7
    %vm598 = vcmp.lt.s32.totalorder %v597, 7
    %599 = vst.msk [vmem:[%s586] sm:$0xff] %vm598, %v595
    %s600 = scalar_lea.vmem [#allocation1], 216
    %s601 = scalar_lea.vmem [#allocation0], 432
    %s602 = scalar_lea.vmem %s601, 7 [#allocation0]
    %v603 = vld [vmem:[%s602] ss:$-1 sm:$0xff]
    %v604 = vrot.slane %v603, 1
    %605 = vst [vmem:[%s600] sm:$0xff] %v604
    %s606 = scalar_lea.vmem %s601, 8 [#allocation0]
    %s607 = scalar_lea.vmem %s606, 7 [#allocation0]
    %v608 = vld [vmem:[%s607] ss:$-1 sm:$0xff]
    %v609 = vrot.slane %v608, 1
    %v610 = vlaneseq
    %v611 = vshrl.u32 %v610, 7
    %vm612 = vcmp.lt.s32.totalorder %v611, 7
    %613 = vst.msk [vmem:[%s600] sm:$0xff] %vm612, %v609
    %s614 = scalar_lea.vmem [#allocation1], 224
    %s615 = scalar_lea.vmem [#allocation0], 448
    %s616 = scalar_lea.vmem %s615, 7 [#allocation0]
    %v617 = vld [vmem:[%s616] ss:$-1 sm:$0xff]
    %v618 = vrot.slane %v617, 1
    %619 = vst [vmem:[%s614] sm:$0xff] %v618
    %s620 = scalar_lea.vmem %s615, 8 [#allocation0]
    %s621 = scalar_lea.vmem %s620, 7 [#allocation0]
    %v622 = vld [vmem:[%s621] ss:$-1 sm:$0xff]
    %v623 = vrot.slane %v622, 1
    %v624 = vlaneseq
    %v625 = vshrl.u32 %v624, 7
    %vm626 = vcmp.lt.s32.totalorder %v625, 7
    %627 = vst.msk [vmem:[%s614] sm:$0xff] %vm626, %v623
    %s628 = scalar_lea.vmem [#allocation1], 232
    %s629 = scalar_lea.vmem [#allocation0], 464
    %s630 = scalar_lea.vmem %s629, 7 [#allocation0]
    %v631 = vld [vmem:[%s630] ss:$-1 sm:$0xff]
    %v632 = vrot.slane %v631, 1
    %633 = vst [vmem:[%s628] sm:$0xff] %v632
    %s634 = scalar_lea.vmem %s629, 8 [#allocation0]
    %s635 = scalar_lea.vmem %s634, 7 [#allocation0]
    %v636 = vld [vmem:[%s635] ss:$-1 sm:$0xff]
    %v637 = vrot.slane %v636, 1
    %v638 = vlaneseq
    %v639 = vshrl.u32 %v638, 7
    %vm640 = vcmp.lt.s32.totalorder %v639, 7
    %641 = vst.msk [vmem:[%s628] sm:$0xff] %vm640, %v637
    %s642 = scalar_lea.vmem [#allocation1], 240
    %s643 = scalar_lea.vmem [#allocation0], 480
    %s644 = scalar_lea.vmem %s643, 7 [#allocation0]
    %v645 = vld [vmem:[%s644] ss:$-1 sm:$0xff]
    %v646 = vrot.slane %v645, 1
    %647 = vst [vmem:[%s642] sm:$0xff] %v646
    %s648 = scalar_lea.vmem %s643, 8 [#allocation0]
    %s649 = scalar_lea.vmem %s648, 7 [#allocation0]
    %v650 = vld [vmem:[%s649] ss:$-1 sm:$0xff]
    %v651 = vrot.slane %v650, 1
    %v652 = vlaneseq
    %v653 = vshrl.u32 %v652, 7
    %vm654 = vcmp.lt.s32.totalorder %v653, 7
    %655 = vst.msk [vmem:[%s642] sm:$0xff] %vm654, %v651
    %s656 = scalar_lea.vmem [#allocation1], 248
    %s657 = scalar_lea.vmem [#allocation0], 496
    %s658 = scalar_lea.vmem %s657, 7 [#allocation0]
    %v659 = vld [vmem:[%s658] ss:$-1 sm:$0xff]
    %v660 = vrot.slane %v659, 1
    %661 = vst [vmem:[%s656] sm:$0xff] %v660
    %s662 = scalar_lea.vmem %s657, 8 [#allocation0]
    %s663 = scalar_lea.vmem %s662, 7 [#allocation0]
    %v664 = vld [vmem:[%s663] ss:$-1 sm:$0xff]
    %v665 = vrot.slane %v664, 1
    %v666 = vlaneseq
    %v667 = vshrl.u32 %v666, 7
    %vm668 = vcmp.lt.s32.totalorder %v667, 7
    %669 = vst.msk [vmem:[%s656] sm:$0xff] %vm668, %v665
    %s670 = scalar_lea.vmem [#allocation1], 256
    %s671 = scalar_lea.vmem [#allocation0], 512
    %s672 = scalar_lea.vmem %s671, 7 [#allocation0]
    %v673 = vld [vmem:[%s672] ss:$-1 sm:$0xff]
    %v674 = vrot.slane %v673, 1
    %675 = vst [vmem:[%s670] sm:$0xff] %v674
    %s676 = scalar_lea.vmem %s671, 8 [#allocation0]
    %s677 = scalar_lea.vmem %s676, 7 [#allocation0]
    %v678 = vld [vmem:[%s677] ss:$-1 sm:$0xff]
    %v679 = vrot.slane %v678, 1
    %v680 = vlaneseq
    %v681 = vshrl.u32 %v680, 7
    %vm682 = vcmp.lt.s32.totalorder %v681, 7
    %683 = vst.msk [vmem:[%s670] sm:$0xff] %vm682, %v679
    %s684 = scalar_lea.vmem [#allocation1], 264
    %s685 = scalar_lea.vmem [#allocation0], 528
    %s686 = scalar_lea.vmem %s685, 7 [#allocation0]
    %v687 = vld [vmem:[%s686] ss:$-1 sm:$0xff]
    %v688 = vrot.slane %v687, 1
    %689 = vst [vmem:[%s684] sm:$0xff] %v688
    %s690 = scalar_lea.vmem %s685, 8 [#allocation0]
    %s691 = scalar_lea.vmem %s690, 7 [#allocation0]
    %v692 = vld [vmem:[%s691] ss:$-1 sm:$0xff]
    %v693 = vrot.slane %v692, 1
    %v694 = vlaneseq
    %v695 = vshrl.u32 %v694, 7
    %vm696 = vcmp.lt.s32.totalorder %v695, 7
    %697 = vst.msk [vmem:[%s684] sm:$0xff] %vm696, %v693
    %s698 = scalar_lea.vmem [#allocation1], 272
    %s699 = scalar_lea.vmem [#allocation0], 544
    %s700 = scalar_lea.vmem %s699, 7 [#allocation0]
    %v701 = vld [vmem:[%s700] ss:$-1 sm:$0xff]
    %v702 = vrot.slane %v701, 1
    %703 = vst [vmem:[%s698] sm:$0xff] %v702
    %s704 = scalar_lea.vmem %s699, 8 [#allocation0]
    %s705 = scalar_lea.vmem %s704, 7 [#allocation0]
    %v706 = vld [vmem:[%s705] ss:$-1 sm:$0xff]
    %v707 = vrot.slane %v706, 1
    %v708 = vlaneseq
    %v709 = vshrl.u32 %v708, 7
    %vm710 = vcmp.lt.s32.totalorder %v709, 7
    %711 = vst.msk [vmem:[%s698] sm:$0xff] %vm710, %v707
    %s712 = scalar_lea.vmem [#allocation1], 280
    %s713 = scalar_lea.vmem [#allocation0], 560
    %s714 = scalar_lea.vmem %s713, 7 [#allocation0]
    %v715 = vld [vmem:[%s714] ss:$-1 sm:$0xff]
    %v716 = vrot.slane %v715, 1
    %717 = vst [vmem:[%s712] sm:$0xff] %v716
    %s718 = scalar_lea.vmem %s713, 8 [#allocation0]
    %s719 = scalar_lea.vmem %s718, 7 [#allocation0]
    %v720 = vld [vmem:[%s719] ss:$-1 sm:$0xff]
    %v721 = vrot.slane %v720, 1
    %v722 = vlaneseq
    %v723 = vshrl.u32 %v722, 7
    %vm724 = vcmp.lt.s32.totalorder %v723, 7
    %725 = vst.msk [vmem:[%s712] sm:$0xff] %vm724, %v721
    %s726 = scalar_lea.vmem [#allocation1], 288
    %s727 = scalar_lea.vmem [#allocation0], 576
    %s728 = scalar_lea.vmem %s727, 7 [#allocation0]
    %v729 = vld [vmem:[%s728] ss:$-1 sm:$0xff]
    %v730 = vrot.slane %v729, 1
    %731 = vst [vmem:[%s726] sm:$0xff] %v730
    %s732 = scalar_lea.vmem %s727, 8 [#allocation0]
    %s733 = scalar_lea.vmem %s732, 7 [#allocation0]
    %v734 = vld [vmem:[%s733] ss:$-1 sm:$0xff]
    %v735 = vrot.slane %v734, 1
    %v736 = vlaneseq
    %v737 = vshrl.u32 %v736, 7
    %vm738 = vcmp.lt.s32.totalorder %v737, 7
    %739 = vst.msk [vmem:[%s726] sm:$0xff] %vm738, %v735
    %s740 = scalar_lea.vmem [#allocation1], 296
    %s741 = scalar_lea.vmem [#allocation0], 592
    %s742 = scalar_lea.vmem %s741, 7 [#allocation0]
    %v743 = vld [vmem:[%s742] ss:$-1 sm:$0xff]
    %v744 = vrot.slane %v743, 1
    %745 = vst [vmem:[%s740] sm:$0xff] %v744
    %s746 = scalar_lea.vmem %s741, 8 [#allocation0]
    %s747 = scalar_lea.vmem %s746, 7 [#allocation0]
    %v748 = vld [vmem:[%s747] ss:$-1 sm:$0xff]
    %v749 = vrot.slane %v748, 1
    %v750 = vlaneseq
    %v751 = vshrl.u32 %v750, 7
    %vm752 = vcmp.lt.s32.totalorder %v751, 7
    %753 = vst.msk [vmem:[%s740] sm:$0xff] %vm752, %v749
    %s754 = scalar_lea.vmem [#allocation1], 304
    %s755 = scalar_lea.vmem [#allocation0], 608
    %s756 = scalar_lea.vmem %s755, 7 [#allocation0]
    %v757 = vld [vmem:[%s756] ss:$-1 sm:$0xff]
    %v758 = vrot.slane %v757, 1
    %759 = vst [vmem:[%s754] sm:$0xff] %v758
    %s760 = scalar_lea.vmem %s755, 8 [#allocation0]
    %s761 = scalar_lea.vmem %s760, 7 [#allocation0]
    %v762 = vld [vmem:[%s761] ss:$-1 sm:$0xff]
    %v763 = vrot.slane %v762, 1
    %v764 = vlaneseq
    %v765 = vshrl.u32 %v764, 7
    %vm766 = vcmp.lt.s32.totalorder %v765, 7
    %767 = vst.msk [vmem:[%s754] sm:$0xff] %vm766, %v763
    %s768 = scalar_lea.vmem [#allocation1], 312
    %s769 = scalar_lea.vmem [#allocation0], 624
    %s770 = scalar_lea.vmem %s769, 7 [#allocation0]
    %v771 = vld [vmem:[%s770] ss:$-1 sm:$0xff]
    %v772 = vrot.slane %v771, 1
    %773 = vst [vmem:[%s768] sm:$0xff] %v772
    %s774 = scalar_lea.vmem %s769, 8 [#allocation0]
    %s775 = scalar_lea.vmem %s774, 7 [#allocation0]
    %v776 = vld [vmem:[%s775] ss:$-1 sm:$0xff]
    %v777 = vrot.slane %v776, 1
    %v778 = vlaneseq
    %v779 = vshrl.u32 %v778, 7
    %vm780 = vcmp.lt.s32.totalorder %v779, 7
    %781 = vst.msk [vmem:[%s768] sm:$0xff] %vm780, %v777
    %s782 = scalar_lea.vmem [#allocation1], 320
    %s783 = scalar_lea.vmem [#allocation0], 640
    %s784 = scalar_lea.vmem %s783, 7 [#allocation0]
    %v785 = vld [vmem:[%s784] ss:$-1 sm:$0xff]
    %v786 = vrot.slane %v785, 1
    %787 = vst [vmem:[%s782] sm:$0xff] %v786
    %s788 = scalar_lea.vmem %s783, 8 [#allocation0]
    %s789 = scalar_lea.vmem %s788, 7 [#allocation0]
    %v790 = vld [vmem:[%s789] ss:$-1 sm:$0xff]
    %v791 = vrot.slane %v790, 1
    %v792 = vlaneseq
    %v793 = vshrl.u32 %v792, 7
    %vm794 = vcmp.lt.s32.totalorder %v793, 7
    %795 = vst.msk [vmem:[%s782] sm:$0xff] %vm794, %v791
    %s796 = scalar_lea.vmem [#allocation1], 328
    %s797 = scalar_lea.vmem [#allocation0], 656
    %s798 = scalar_lea.vmem %s797, 7 [#allocation0]
    %v799 = vld [vmem:[%s798] ss:$-1 sm:$0xff]
    %v800 = vrot.slane %v799, 1
    %801 = vst [vmem:[%s796] sm:$0xff] %v800
    %s802 = scalar_lea.vmem %s797, 8 [#allocation0]
    %s803 = scalar_lea.vmem %s802, 7 [#allocation0]
    %v804 = vld [vmem:[%s803] ss:$-1 sm:$0xff]
    %v805 = vrot.slane %v804, 1
    %v806 = vlaneseq
    %v807 = vshrl.u32 %v806, 7
    %vm808 = vcmp.lt.s32.totalorder %v807, 7
    %809 = vst.msk [vmem:[%s796] sm:$0xff] %vm808, %v805
    %s810 = scalar_lea.vmem [#allocation1], 336
    %s811 = scalar_lea.vmem [#allocation0], 672
    %s812 = scalar_lea.vmem %s811, 7 [#allocation0]
    %v813 = vld [vmem:[%s812] ss:$-1 sm:$0xff]
    %v814 = vrot.slane %v813, 1
    %815 = vst [vmem:[%s810] sm:$0xff] %v814
    %s816 = scalar_lea.vmem %s811, 8 [#allocation0]
    %s817 = scalar_lea.vmem %s816, 7 [#allocation0]
    %v818 = vld [vmem:[%s817] ss:$-1 sm:$0xff]
    %v819 = vrot.slane %v818, 1
    %v820 = vlaneseq
    %v821 = vshrl.u32 %v820, 7
    %vm822 = vcmp.lt.s32.totalorder %v821, 7
    %823 = vst.msk [vmem:[%s810] sm:$0xff] %vm822, %v819
    %s824 = scalar_lea.vmem [#allocation1], 344
    %s825 = scalar_lea.vmem [#allocation0], 688
    %s826 = scalar_lea.vmem %s825, 7 [#allocation0]
    %v827 = vld [vmem:[%s826] ss:$-1 sm:$0xff]
    %v828 = vrot.slane %v827, 1
    %829 = vst [vmem:[%s824] sm:$0xff] %v828
    %s830 = scalar_lea.vmem %s825, 8 [#allocation0]
    %s831 = scalar_lea.vmem %s830, 7 [#allocation0]
    %v832 = vld [vmem:[%s831] ss:$-1 sm:$0xff]
    %v833 = vrot.slane %v832, 1
    %v834 = vlaneseq
    %v835 = vshrl.u32 %v834, 7
    %vm836 = vcmp.lt.s32.totalorder %v835, 7
    %837 = vst.msk [vmem:[%s824] sm:$0xff] %vm836, %v833
    %s838 = scalar_lea.vmem [#allocation1], 352
    %s839 = scalar_lea.vmem [#allocation0], 704
    %s840 = scalar_lea.vmem %s839, 7 [#allocation0]
    %v841 = vld [vmem:[%s840] ss:$-1 sm:$0xff]
    %v842 = vrot.slane %v841, 1
    %843 = vst [vmem:[%s838] sm:$0xff] %v842
    %s844 = scalar_lea.vmem %s839, 8 [#allocation0]
    %s845 = scalar_lea.vmem %s844, 7 [#allocation0]
    %v846 = vld [vmem:[%s845] ss:$-1 sm:$0xff]
    %v847 = vrot.slane %v846, 1
    %v848 = vlaneseq
    %v849 = vshrl.u32 %v848, 7
    %vm850 = vcmp.lt.s32.totalorder %v849, 7
    %851 = vst.msk [vmem:[%s838] sm:$0xff] %vm850, %v847
    %s852 = scalar_lea.vmem [#allocation1], 360
    %s853 = scalar_lea.vmem [#allocation0], 720
    %s854 = scalar_lea.vmem %s853, 7 [#allocation0]
    %v855 = vld [vmem:[%s854] ss:$-1 sm:$0xff]
    %v856 = vrot.slane %v855, 1
    %857 = vst [vmem:[%s852] sm:$0xff] %v856
    %s858 = scalar_lea.vmem %s853, 8 [#allocation0]
    %s859 = scalar_lea.vmem %s858, 7 [#allocation0]
    %v860 = vld [vmem:[%s859] ss:$-1 sm:$0xff]
    %v861 = vrot.slane %v860, 1
    %v862 = vlaneseq
    %v863 = vshrl.u32 %v862, 7
    %vm864 = vcmp.lt.s32.totalorder %v863, 7
    %865 = vst.msk [vmem:[%s852] sm:$0xff] %vm864, %v861
    %s866 = scalar_lea.vmem [#allocation1], 368
    %s867 = scalar_lea.vmem [#allocation0], 736
    %s868 = scalar_lea.vmem %s867, 7 [#allocation0]
    %v869 = vld [vmem:[%s868] ss:$-1 sm:$0xff]
    %v870 = vrot.slane %v869, 1
    %871 = vst [vmem:[%s866] sm:$0xff] %v870
    %s872 = scalar_lea.vmem %s867, 8 [#allocation0]
    %s873 = scalar_lea.vmem %s872, 7 [#allocation0]
    %v874 = vld [vmem:[%s873] ss:$-1 sm:$0xff]
    %v875 = vrot.slane %v874, 1
    %v876 = vlaneseq
    %v877 = vshrl.u32 %v876, 7
    %vm878 = vcmp.lt.s32.totalorder %v877, 7
    %879 = vst.msk [vmem:[%s866] sm:$0xff] %vm878, %v875
    %s880 = scalar_lea.vmem [#allocation1], 376
    %s881 = scalar_lea.vmem [#allocation0], 752
    %s882 = scalar_lea.vmem %s881, 7 [#allocation0]
    %v883 = vld [vmem:[%s882] ss:$-1 sm:$0xff]
    %v884 = vrot.slane %v883, 1
    %885 = vst [vmem:[%s880] sm:$0xff] %v884
    %s886 = scalar_lea.vmem %s881, 8 [#allocation0]
    %s887 = scalar_lea.vmem %s886, 7 [#allocation0]
    %v888 = vld [vmem:[%s887] ss:$-1 sm:$0xff]
    %v889 = vrot.slane %v888, 1
    %v890 = vlaneseq
    %v891 = vshrl.u32 %v890, 7
    %vm892 = vcmp.lt.s32.totalorder %v891, 7
    %893 = vst.msk [vmem:[%s880] sm:$0xff] %vm892, %v889
    // Predicated region
    $region36: #{reverse.0} parent=1 // pred_check
      _
    $region37: #{reverse.0} parent=1 // pred_check_branch
      %895 = sbr.rel (0) target = $region39
    $region38: #{reverse.0} parent=1 // pred_region
      // Predicated region
      $region40: #{reverse.0} parent=38 // pred_check
        _
      $region41: #{reverse.0} parent=38 // pred_check_branch
        %897 = sbr.rel (0) target = $region43
      $region42: #{reverse.0} parent=38 // pred_region
        // Predicated region
        $region55: #{reverse.0} parent=42 // pred_check
          _
        $region56: #{reverse.0} parent=42 // pred_check_branch
          %1007 = sbr.rel (0) target = $region58
        $region57: #{reverse.0} parent=42 // pred_region
          loop: start=0, step=1, limit=1
          $region59: #{reverse.0} parent=57 // loop_pre_header
            _
          $region60: #{reverse.0} parent=57 // loop_header
            %s1009 = sphi 0, %s1013
            %p1010 = scmp.ge.s32.totalorder %s1009, 1
            %s1014 = sphi [#allocation1], [#allocation1]
            %s1015 = sphi %s1, %s1
          $region61: #{reverse.0} parent=57 // loop_header_branch
            %1012 = sbr.rel (%p1010) target = $region65
          $region62: #{reverse.0} parent=57 // loop_body
            %v1016 = vld [vmem:[%s1014] sm:$0xff]
            %1017 = vst [vmem:[%s1015] sm:$0xff] %v1016
            %v1018 = vld [vmem:[%s1014 + $0x8] sm:$0xff]
            %1019 = vst [vmem:[%s1015 + $0x8] sm:$0xff] %v1018
            %v1020 = vld [vmem:[%s1014 + $0x10] sm:$0xff]
            %1021 = vst [vmem:[%s1015 + $0x10] sm:$0xff] %v1020
            %v1022 = vld [vmem:[%s1014 + $0x18] sm:$0xff]
            %1023 = vst [vmem:[%s1015 + $0x18] sm:$0xff] %v1022
            %v1024 = vld [vmem:[%s1014 + $0x20] sm:$0xff]
            %1025 = vst [vmem:[%s1015 + $0x20] sm:$0xff] %v1024
            %v1026 = vld [vmem:[%s1014 + $0x28] sm:$0xff]
            %1027 = vst [vmem:[%s1015 + $0x28] sm:$0xff] %v1026
            %v1028 = vld [vmem:[%s1014 + $0x30] sm:$0xff]
            %1029 = vst [vmem:[%s1015 + $0x30] sm:$0xff] %v1028
            %v1030 = vld [vmem:[%s1014 + $0x38] sm:$0xff]
            %1031 = vst [vmem:[%s1015 + $0x38] sm:$0xff] %v1030
            %v1032 = vld [vmem:[%s1014 + $0x40] sm:$0xff]
            %1033 = vst [vmem:[%s1015 + $0x40] sm:$0xff] %v1032
            %v1034 = vld [vmem:[%s1014 + $0x48] sm:$0xff]
            %1035 = vst [vmem:[%s1015 + $0x48] sm:$0xff] %v1034
            %v1036 = vld [vmem:[%s1014 + $0x50] sm:$0xff]
            %1037 = vst [vmem:[%s1015 + $0x50] sm:$0xff] %v1036
            %v1038 = vld [vmem:[%s1014 + $0x58] sm:$0xff]
            %1039 = vst [vmem:[%s1015 + $0x58] sm:$0xff] %v1038
            %v1040 = vld [vmem:[%s1014 + $0x60] sm:$0xff]
            %1041 = vst [vmem:[%s1015 + $0x60] sm:$0xff] %v1040
            %v1042 = vld [vmem:[%s1014 + $0x68] sm:$0xff]
            %1043 = vst [vmem:[%s1015 + $0x68] sm:$0xff] %v1042
            %v1044 = vld [vmem:[%s1014 + $0x70] sm:$0xff]
            %1045 = vst [vmem:[%s1015 + $0x70] sm:$0xff] %v1044
            %v1046 = vld [vmem:[%s1014 + $0x78] sm:$0xff]
            %1047 = vst [vmem:[%s1015 + $0x78] sm:$0xff] %v1046
            %v1048 = vld [vmem:[%s1014 + $0x80] sm:$0xff]
            %1049 = vst [vmem:[%s1015 + $0x80] sm:$0xff] %v1048
            %v1050 = vld [vmem:[%s1014 + $0x88] sm:$0xff]
            %1051 = vst [vmem:[%s1015 + $0x88] sm:$0xff] %v1050
            %v1052 = vld [vmem:[%s1014 + $0x90] sm:$0xff]
            %1053 = vst [vmem:[%s1015 + $0x90] sm:$0xff] %v1052
            %v1054 = vld [vmem:[%s1014 + $0x98] sm:$0xff]
            %1055 = vst [vmem:[%s1015 + $0x98] sm:$0xff] %v1054
            %v1056 = vld [vmem:[%s1014 + $0xa0] sm:$0xff]
            %1057 = vst [vmem:[%s1015 + $0xa0] sm:$0xff] %v1056
            %v1058 = vld [vmem:[%s1014 + $0xa8] sm:$0xff]
            %1059 = vst [vmem:[%s1015 + $0xa8] sm:$0xff] %v1058
            %v1060 = vld [vmem:[%s1014 + $0xb0] sm:$0xff]
            %1061 = vst [vmem:[%s1015 + $0xb0] sm:$0xff] %v1060
            %v1062 = vld [vmem:[%s1014 + $0xb8] sm:$0xff]
            %1063 = vst [vmem:[%s1015 + $0xb8] sm:$0xff] %v1062
            %v1064 = vld [vmem:[%s1014 + $0xc0] sm:$0xff]
            %1065 = vst [vmem:[%s1015 + $0xc0] sm:$0xff] %v1064
            %v1066 = vld [vmem:[%s1014 + $0xc8] sm:$0xff]
            %1067 = vst [vmem:[%s1015 + $0xc8] sm:$0xff] %v1066
            %v1068 = vld [vmem:[%s1014 + $0xd0] sm:$0xff]
            %1069 = vst [vmem:[%s1015 + $0xd0] sm:$0xff] %v1068
            %v1070 = vld [vmem:[%s1014 + $0xd8] sm:$0xff]
            %1071 = vst [vmem:[%s1015 + $0xd8] sm:$0xff] %v1070
            %v1072 = vld [vmem:[%s1014 + $0xe0] sm:$0xff]
            %1073 = vst [vmem:[%s1015 + $0xe0] sm:$0xff] %v1072
            %v1074 = vld [vmem:[%s1014 + $0xe8] sm:$0xff]
            %1075 = vst [vmem:[%s1015 + $0xe8] sm:$0xff] %v1074
            %v1076 = vld [vmem:[%s1014 + $0xf0] sm:$0xff]
            %1077 = vst [vmem:[%s1015 + $0xf0] sm:$0xff] %v1076
            %v1078 = vld [vmem:[%s1014 + $0xf8] sm:$0xff]
            %1079 = vst [vmem:[%s1015 + $0xf8] sm:$0xff] %v1078
            %v1080 = vld [vmem:[%s1014 + $0x100] sm:$0xff]
            %1081 = vst [vmem:[%s1015 + $0x100] sm:$0xff] %v1080
            %v1082 = vld [vmem:[%s1014 + $0x108] sm:$0xff]
            %1083 = vst [vmem:[%s1015 + $0x108] sm:$0xff] %v1082
            %v1084 = vld [vmem:[%s1014 + $0x110] sm:$0xff]
            %1085 = vst [vmem:[%s1015 + $0x110] sm:$0xff] %v1084
            %v1086 = vld [vmem:[%s1014 + $0x118] sm:$0xff]
            %1087 = vst [vmem:[%s1015 + $0x118] sm:$0xff] %v1086
            %v1088 = vld [vmem:[%s1014 + $0x120] sm:$0xff]
            %1089 = vst [vmem:[%s1015 + $0x120] sm:$0xff] %v1088
            %v1090 = vld [vmem:[%s1014 + $0x128] sm:$0xff]
            %1091 = vst [vmem:[%s1015 + $0x128] sm:$0xff] %v1090
            %v1092 = vld [vmem:[%s1014 + $0x130] sm:$0xff]
            %1093 = vst [vmem:[%s1015 + $0x130] sm:$0xff] %v1092
            %v1094 = vld [vmem:[%s1014 + $0x138] sm:$0xff]
            %1095 = vst [vmem:[%s1015 + $0x138] sm:$0xff] %v1094
            %v1096 = vld [vmem:[%s1014 + $0x140] sm:$0xff]
            %1097 = vst [vmem:[%s1015 + $0x140] sm:$0xff] %v1096
            %v1098 = vld [vmem:[%s1014 + $0x148] sm:$0xff]
            %1099 = vst [vmem:[%s1015 + $0x148] sm:$0xff] %v1098
            %v1100 = vld [vmem:[%s1014 + $0x150] sm:$0xff]
            %1101 = vst [vmem:[%s1015 + $0x150] sm:$0xff] %v1100
            %v1102 = vld [vmem:[%s1014 + $0x158] sm:$0xff]
            %1103 = vst [vmem:[%s1015 + $0x158] sm:$0xff] %v1102
            %v1104 = vld [vmem:[%s1014 + $0x160] sm:$0xff]
            %1105 = vst [vmem:[%s1015 + $0x160] sm:$0xff] %v1104
            %v1106 = vld [vmem:[%s1014 + $0x168] sm:$0xff]
            %1107 = vst [vmem:[%s1015 + $0x168] sm:$0xff] %v1106
            %v1108 = vld [vmem:[%s1014 + $0x170] sm:$0xff]
            %1109 = vst [vmem:[%s1015 + $0x170] sm:$0xff] %v1108
            %v1110 = vld [vmem:[%s1014 + $0x178] sm:$0xff]
            %1111 = vst [vmem:[%s1015 + $0x178] sm:$0xff] %v1110
          $region63: #{reverse.0} parent=57 // loop_footer
            %s1013 = sadd.s32 1, %s1009
          $region64: #{reverse.0} parent=57 // loop_footer_branch
            %1008 = sbr.rel target = $region60
          $region65: #{reverse.0} parent=57 // loop_exit
            _
        $region58: #{reverse.0} parent=42 // pred_fallthru
          _
        // Predicated region
        $region66: #{reverse.0} parent=42 // pred_check
          _
        $region67: #{reverse.0} parent=42 // pred_check_branch
          %1113 = sbr.rel target = $region69
        $region68: #{reverse.0} parent=42 // pred_region
          _
        $region69: #{reverse.0} parent=42 // pred_fallthru
          _
      $region43: #{reverse.0} parent=38 // pred_fallthru
        _
      // Predicated region
      $region44: #{reverse.0} parent=38 // pred_check
        _
      $region45: #{reverse.0} parent=38 // pred_check_branch
        %899 = sbr.rel target = $region47
      $region46: #{reverse.0} parent=38 // pred_region
        %s901 = ssub.s32 256, 1
        loop: start=0, step=1, limit=1
        $region48: #{reverse.0} parent=46 // loop_pre_header
          _
        $region49: #{reverse.0} parent=46 // loop_header
          %s903 = sphi 0, %s907
          %p904 = scmp.ge.s32.totalorder %s903, 1
          %s908 = sphi [#allocation1], [#allocation1]
          %s909 = sphi %s1, %s1
        $region50: #{reverse.0} parent=46 // loop_header_branch
          %906 = sbr.rel (%p904) target = $region54
        $region51: #{reverse.0} parent=46 // loop_body
          %v910 = vld [vmem:[%s908] sm:%s901]
          %911 = vst [vmem:[%s909] sm:%s901] %v910
          %v912 = vld [vmem:[%s908 + $0x8] sm:%s901]
          %913 = vst [vmem:[%s909 + $0x8] sm:%s901] %v912
          %v914 = vld [vmem:[%s908 + $0x10] sm:%s901]
          %915 = vst [vmem:[%s909 + $0x10] sm:%s901] %v914
          %v916 = vld [vmem:[%s908 + $0x18] sm:%s901]
          %917 = vst [vmem:[%s909 + $0x18] sm:%s901] %v916
          %v918 = vld [vmem:[%s908 + $0x20] sm:%s901]
          %919 = vst [vmem:[%s909 + $0x20] sm:%s901] %v918
          %v920 = vld [vmem:[%s908 + $0x28] sm:%s901]
          %921 = vst [vmem:[%s909 + $0x28] sm:%s901] %v920
          %v922 = vld [vmem:[%s908 + $0x30] sm:%s901]
          %923 = vst [vmem:[%s909 + $0x30] sm:%s901] %v922
          %v924 = vld [vmem:[%s908 + $0x38] sm:%s901]
          %925 = vst [vmem:[%s909 + $0x38] sm:%s901] %v924
          %v926 = vld [vmem:[%s908 + $0x40] sm:%s901]
          %927 = vst [vmem:[%s909 + $0x40] sm:%s901] %v926
          %v928 = vld [vmem:[%s908 + $0x48] sm:%s901]
          %929 = vst [vmem:[%s909 + $0x48] sm:%s901] %v928
          %v930 = vld [vmem:[%s908 + $0x50] sm:%s901]
          %931 = vst [vmem:[%s909 + $0x50] sm:%s901] %v930
          %v932 = vld [vmem:[%s908 + $0x58] sm:%s901]
          %933 = vst [vmem:[%s909 + $0x58] sm:%s901] %v932
          %v934 = vld [vmem:[%s908 + $0x60] sm:%s901]
          %935 = vst [vmem:[%s909 + $0x60] sm:%s901] %v934
          %v936 = vld [vmem:[%s908 + $0x68] sm:%s901]
          %937 = vst [vmem:[%s909 + $0x68] sm:%s901] %v936
          %v938 = vld [vmem:[%s908 + $0x70] sm:%s901]
          %939 = vst [vmem:[%s909 + $0x70] sm:%s901] %v938
          %v940 = vld [vmem:[%s908 + $0x78] sm:%s901]
          %941 = vst [vmem:[%s909 + $0x78] sm:%s901] %v940
          %v942 = vld [vmem:[%s908 + $0x80] sm:%s901]
          %943 = vst [vmem:[%s909 + $0x80] sm:%s901] %v942
          %v944 = vld [vmem:[%s908 + $0x88] sm:%s901]
          %945 = vst [vmem:[%s909 + $0x88] sm:%s901] %v944
          %v946 = vld [vmem:[%s908 + $0x90] sm:%s901]
          %947 = vst [vmem:[%s909 + $0x90] sm:%s901] %v946
          %v948 = vld [vmem:[%s908 + $0x98] sm:%s901]
          %949 = vst [vmem:[%s909 + $0x98] sm:%s901] %v948
          %v950 = vld [vmem:[%s908 + $0xa0] sm:%s901]
          %951 = vst [vmem:[%s909 + $0xa0] sm:%s901] %v950
          %v952 = vld [vmem:[%s908 + $0xa8] sm:%s901]
          %953 = vst [vmem:[%s909 + $0xa8] sm:%s901] %v952
          %v954 = vld [vmem:[%s908 + $0xb0] sm:%s901]
          %955 = vst [vmem:[%s909 + $0xb0] sm:%s901] %v954
          %v956 = vld [vmem:[%s908 + $0xb8] sm:%s901]
          %957 = vst [vmem:[%s909 + $0xb8] sm:%s901] %v956
          %v958 = vld [vmem:[%s908 + $0xc0] sm:%s901]
          %959 = vst [vmem:[%s909 + $0xc0] sm:%s901] %v958
          %v960 = vld [vmem:[%s908 + $0xc8] sm:%s901]
          %961 = vst [vmem:[%s909 + $0xc8] sm:%s901] %v960
          %v962 = vld [vmem:[%s908 + $0xd0] sm:%s901]
          %963 = vst [vmem:[%s909 + $0xd0] sm:%s901] %v962
          %v964 = vld [vmem:[%s908 + $0xd8] sm:%s901]
          %965 = vst [vmem:[%s909 + $0xd8] sm:%s901] %v964
          %v966 = vld [vmem:[%s908 + $0xe0] sm:%s901]
          %967 = vst [vmem:[%s909 + $0xe0] sm:%s901] %v966
          %v968 = vld [vmem:[%s908 + $0xe8] sm:%s901]
          %969 = vst [vmem:[%s909 + $0xe8] sm:%s901] %v968
          %v970 = vld [vmem:[%s908 + $0xf0] sm:%s901]
          %971 = vst [vmem:[%s909 + $0xf0] sm:%s901] %v970
          %v972 = vld [vmem:[%s908 + $0xf8] sm:%s901]
          %973 = vst [vmem:[%s909 + $0xf8] sm:%s901] %v972
          %v974 = vld [vmem:[%s908 + $0x100] sm:%s901]
          %975 = vst [vmem:[%s909 + $0x100] sm:%s901] %v974
          %v976 = vld [vmem:[%s908 + $0x108] sm:%s901]
          %977 = vst [vmem:[%s909 + $0x108] sm:%s901] %v976
          %v978 = vld [vmem:[%s908 + $0x110] sm:%s901]
          %979 = vst [vmem:[%s909 + $0x110] sm:%s901] %v978
          %v980 = vld [vmem:[%s908 + $0x118] sm:%s901]
          %981 = vst [vmem:[%s909 + $0x118] sm:%s901] %v980
          %v982 = vld [vmem:[%s908 + $0x120] sm:%s901]
          %983 = vst [vmem:[%s909 + $0x120] sm:%s901] %v982
          %v984 = vld [vmem:[%s908 + $0x128] sm:%s901]
          %985 = vst [vmem:[%s909 + $0x128] sm:%s901] %v984
          %v986 = vld [vmem:[%s908 + $0x130] sm:%s901]
          %987 = vst [vmem:[%s909 + $0x130] sm:%s901] %v986
          %v988 = vld [vmem:[%s908 + $0x138] sm:%s901]
          %989 = vst [vmem:[%s909 + $0x138] sm:%s901] %v988
          %v990 = vld [vmem:[%s908 + $0x140] sm:%s901]
          %991 = vst [vmem:[%s909 + $0x140] sm:%s901] %v990
          %v992 = vld [vmem:[%s908 + $0x148] sm:%s901]
          %993 = vst [vmem:[%s909 + $0x148] sm:%s901] %v992
          %v994 = vld [vmem:[%s908 + $0x150] sm:%s901]
          %995 = vst [vmem:[%s909 + $0x150] sm:%s901] %v994
          %v996 = vld [vmem:[%s908 + $0x158] sm:%s901]
          %997 = vst [vmem:[%s909 + $0x158] sm:%s901] %v996
          %v998 = vld [vmem:[%s908 + $0x160] sm:%s901]
          %999 = vst [vmem:[%s909 + $0x160] sm:%s901] %v998
          %v1000 = vld [vmem:[%s908 + $0x168] sm:%s901]
          %1001 = vst [vmem:[%s909 + $0x168] sm:%s901] %v1000
          %v1002 = vld [vmem:[%s908 + $0x170] sm:%s901]
          %1003 = vst [vmem:[%s909 + $0x170] sm:%s901] %v1002
          %v1004 = vld [vmem:[%s908 + $0x178] sm:%s901]
          %1005 = vst [vmem:[%s909 + $0x178] sm:%s901] %v1004
        $region52: #{reverse.0} parent=46 // loop_footer
          %s907 = sadd.s32 1, %s903
        $region53: #{reverse.0} parent=46 // loop_footer_branch
          %902 = sbr.rel target = $region49
        $region54: #{reverse.0} parent=46 // loop_exit
          _
      $region47: #{reverse.0} parent=38 // pred_fallthru
        _
    $region39: #{reverse.0} parent=1 // pred_fallthru
      _
    %1114 = vnop

</llo_original>
